<compile_context>
chip_gen: v7x
topology: tpu7x:2x2x1
jax: 0.10.0
libtpu: 0.0.40
codegen_flags: <defaults>
</compile_context>

<pallas_src>
import jax
import jax.numpy as jnp
from jax.experimental import pallas as pl
from jax.experimental.pallas import tpu as pltpu


# -----------------------------------------------------------------------------
# Kernel 1: input projections for both directions as one big T-parallel GEMM.
#   gi_f = x @ W_ih_f + b_ih_f,  gi_b = x @ W_ih_b + b_ih_b,  x = [T*Bp, E]
# -----------------------------------------------------------------------------
def _input_proj_kernel(x_ref, wf_ref, wb_ref, bf_ref, bb_ref, gf_ref, gb_ref):
    x = x_ref[...]
    gf_ref[...] = (jnp.dot(x, wf_ref[...], preferred_element_type=jnp.float32)
                   + bf_ref[...]).astype(gf_ref.dtype)
    gb_ref[...] = (jnp.dot(x, wb_ref[...], preferred_element_type=jnp.float32)
                   + bb_ref[...]).astype(gb_ref.dtype)


def input_projections(x2d, w_ih_f, w_ih_b, b_ih_f, b_ih_b):
    M = x2d.shape[0]
    G = w_ih_f.shape[1]  # 3H
    # Whole-array blocks (single invocation).  TODO(synk): row-tile for very large T*B.
    return pl.pallas_call(
        _input_proj_kernel,
        out_shape=(jax.ShapeDtypeStruct((M, G), jnp.float32),
                   jax.ShapeDtypeStruct((M, G), jnp.float32)),
    )(x2d, w_ih_f, w_ih_b, b_ih_f, b_ih_b)


# -----------------------------------------------------------------------------
# Kernel 2: fused bidirectional GRU recurrence + fc/tanh head.
# Grid = (T // C,), sequential ("arbitrary").  Each grid step processes C timesteps:
# forward direction at global times c*C+i, backward direction at T-1-(c*C+i).
# Hidden states are carried across grid steps in VMEM scratch.
# -----------------------------------------------------------------------------
def _bigru_kernel(gi_f_ref, gi_b_ref, w_hh_f_ref, w_hh_b_ref,
                  b_hh_f_ref, b_hh_b_ref, fc_w_ref, fc_b_ref,
                  out_f_ref, out_b_ref, hid_ref,
                  hf_scratch, hb_scratch):
    c = pl.program_id(0)
    num_chunks = pl.num_programs(0)
    C = gi_f_ref.shape[0]
    H = w_hh_f_ref.shape[0]

    @pl.when(c == 0)
    def _():
        hf_scratch[...] = jnp.zeros_like(hf_scratch)
        hb_scratch[...] = jnp.zeros_like(hb_scratch)

    w_hh_f = w_hh_f_ref[...]
    w_hh_b = w_hh_b_ref[...]
    b_hh_f = b_hh_f_ref[...]
    b_hh_b = b_hh_b_ref[...]

    def gru_step(gi, h, w_hh, b_hh):
        # Single fused [B, H] x [H, 3H] matmul for all three gates (PyTorch order r, z, n).
        gh = jnp.dot(h, w_hh, preferred_element_type=jnp.float32) + b_hh
        r = jax.nn.sigmoid(gi[:, 0 * H:1 * H] + gh[:, 0 * H:1 * H])
        z = jax.nn.sigmoid(gi[:, 1 * H:2 * H] + gh[:, 1 * H:2 * H])
        n = jnp.tanh(gi[:, 2 * H:3 * H] + r * gh[:, 2 * H:3 * H])
        return (1.0 - z) * n + z * h

    def body(i, carry):
        h_f, h_b = carry
        h_f = gru_step(gi_f_ref[i], h_f, w_hh_f, b_hh_f)
        h_b = gru_step(gi_b_ref[C - 1 - i], h_b, w_hh_b, b_hh_b)
        out_f_ref[i] = h_f.astype(out_f_ref.dtype)
        out_b_ref[C - 1 - i] = h_b.astype(out_b_ref.dtype)
        return h_f, h_b

    h_f, h_b = jax.lax.fori_loop(0, C, body,
                                 (hf_scratch[...], hb_scratch[...]),
                                 unroll=True)
    hf_scratch[...] = h_f
    hb_scratch[...] = h_b

    # fc + tanh head, only on the last grid step (final hidden of both directions is ready).
    @pl.when(c == num_chunks - 1)
    def _():
        fc_w = fc_w_ref[...]
        hf = hf_scratch[...]
        hb = hb_scratch[...]
        d = (jnp.dot(hf, fc_w[:H, :], preferred_element_type=jnp.float32)
             + jnp.dot(hb, fc_w[H:, :], preferred_element_type=jnp.float32)
             + fc_b_ref[...])
        hid_ref[...] = jnp.tanh(d).astype(hid_ref.dtype)


def bigru(gi_f, gi_b, w_hh_f, w_hh_b, b_hh_f, b_hh_b, fc_w, fc_b, *, chunk=None):
    T, Bp, G = gi_f.shape
    H = w_hh_f.shape[0]
    D = fc_w.shape[1]

    if chunk is None:
        chunk = T
        for cand in (32, 16, 8, 4, 2):
            if cand <= T and T % cand == 0:
                chunk = cand
                break
    assert T % chunk == 0
    num_chunks = T // chunk

    grid_spec = pltpu.PrefetchScalarGridSpec(
        num_scalar_prefetch=0,
        grid=(num_chunks,),
        in_specs=[
            pl.BlockSpec((chunk, Bp, G), lambda c: (c, 0, 0)),                   # gi_f
            pl.BlockSpec((chunk, Bp, G), lambda c: (num_chunks - 1 - c, 0, 0)),  # gi_b (reversed)
            pl.BlockSpec((H, G), lambda c: (0, 0)),                              # w_hh_f
            pl.BlockSpec((H, G), lambda c: (0, 0)),                              # w_hh_b
            pl.BlockSpec((1, G), lambda c: (0, 0)),                              # b_hh_f
            pl.BlockSpec((1, G), lambda c: (0, 0)),                              # b_hh_b
            pl.BlockSpec((2 * H, D), lambda c: (0, 0)),                          # fc_w
            pl.BlockSpec((1, D), lambda c: (0, 0)),                              # fc_b
        ],
        out_specs=[
            pl.BlockSpec((chunk, Bp, H), lambda c: (c, 0, 0)),                   # out_f
            pl.BlockSpec((chunk, Bp, H), lambda c: (num_chunks - 1 - c, 0, 0)),  # out_b
            pl.BlockSpec((Bp, D), lambda c: (0, 0)),                             # hidden (resident)
        ],
        scratch_shapes=[pltpu.VMEM((Bp, H), jnp.float32),
                        pltpu.VMEM((Bp, H), jnp.float32)],
    )

    return pl.pallas_call(
        _bigru_kernel,
        out_shape=(jax.ShapeDtypeStruct((T, Bp, H), jnp.float32),
                   jax.ShapeDtypeStruct((T, Bp, H), jnp.float32),
                   jax.ShapeDtypeStruct((Bp, D), jnp.float32)),
        grid_spec=grid_spec,
        compiler_params=pltpu.CompilerParams(dimension_semantics=("arbitrary",)),
    )(gi_f, gi_b, w_hh_f, w_hh_b, b_hh_f, b_hh_b, fc_w, fc_b)


# -----------------------------------------------------------------------------
# Encoder forward (embedding gather stays in XLA glue).
# -----------------------------------------------------------------------------
def encoder_forward(params, src):
    T, B = src.shape
    H = params["w_hh_f"].shape[0]
    D = params["fc_w"].shape[1]

    embedded = jnp.take(params["emb"], src, axis=0)          # [T, B, E]
    # TODO(synk): training-mode dropout not implemented (identity at inference).

    # Pad batch to a multiple of 8 so (B, *) tiles fill vreg sublanes.
    Bp = ((B + 7) // 8) * 8
    if Bp != B:
        embedded = jnp.pad(embedded, ((0, 0), (0, Bp - B), (0, 0)))
    E = embedded.shape[-1]

    gi_f2, gi_b2 = input_projections(
        embedded.reshape(T * Bp, E),
        params["w_ih_f"], params["w_ih_b"],
        params["b_ih_f"], params["b_ih_b"])
    gi_f = gi_f2.reshape(T, Bp, 3 * H)
    gi_b = gi_b2.reshape(T, Bp, 3 * H)

    out_f, out_b, hid = bigru(gi_f, gi_b,
                              params["w_hh_f"], params["w_hh_b"],
                              params["b_hh_f"], params["b_hh_b"],
                              params["fc_w"], params["fc_b"].reshape(1, D))

    outputs = jnp.concatenate([out_f[:, :B], out_b[:, :B]], axis=-1)   # [T, B, 2H]
    hidden = hid[:B]                                                   # [B, dec_hid]
    return outputs, hidden


# -----------------------------------------------------------------------------
# Pure-JAX reference (lax.scan) for correctness checking.
# Weight layout: w_ih [E, 3H], w_hh [H, 3H], biases [1, 3H]; gate order (r, z, n).
# -----------------------------------------------------------------------------
def _gru_ref(x, w_ih, w_hh, b_ih, b_hh, reverse):
    T, B, _ = x.shape
    H = w_hh.shape[0]
    xs = x[::-1] if reverse else x

    def step(h, xt):
        gi = xt @ w_ih + b_ih
        gh = h @ w_hh + b_hh
        r = jax.nn.sigmoid(gi[:, :H] + gh[:, :H])
        z = jax.nn.sigmoid(gi[:, H:2 * H] + gh[:, H:2 * H])
        n = jnp.tanh(gi[:, 2 * H:] + r * gh[:, 2 * H:])
        h_new = (1.0 - z) * n + z * h
        return h_new, h_new

    h_last, outs = jax.lax.scan(step, jnp.zeros((B, H), jnp.float32), xs)
    if reverse:
        outs = outs[::-1]
    return outs, h_last


def _encoder_ref(params, src):
    emb = jnp.take(params["emb"], src, axis=0)
    of, hf = _gru_ref(emb, params["w_ih_f"], params["w_hh_f"],
                      params["b_ih_f"], params["b_hh_f"], reverse=False)
    ob, hb = _gru_ref(emb, params["w_ih_b"], params["w_hh_b"],
                      params["b_ih_b"], params["b_hh_b"], reverse=True)
    outputs = jnp.concatenate([of, ob], axis=-1)
    hcat = jnp.concatenate([hf, hb], axis=-1)
    hidden = jnp.tanh(hcat @ params["fc_w"] + params["fc_b"])
    return outputs, hidden


def init_params(key, input_dim, emb_dim, enc_hid_dim, dec_hid_dim):
    ks = jax.random.split(key, 11)
    u = lambda k, shape: jax.random.uniform(k, shape, jnp.float32, -0.1, 0.1)
    H = enc_hid_dim
    return {
        "emb":    u(ks[0], (input_dim, emb_dim)),
        "w_ih_f": u(ks[1], (emb_dim, 3 * H)),
        "w_hh_f": u(ks[2], (H, 3 * H)),
        "b_ih_f": u(ks[3], (1, 3 * H)),
        "b_hh_f": u(ks[4], (1, 3 * H)),
        "w_ih_b": u(ks[5], (emb_dim, 3 * H)),
        "w_hh_b": u(ks[6], (H, 3 * H)),
        "b_ih_b": u(ks[7], (1, 3 * H)),
        "b_hh_b": u(ks[8], (1, 3 * H)),
        "fc_w":   u(ks[9], (2 * H, dec_hid_dim)),
        "fc_b":   u(ks[10], (dec_hid_dim,)),
    }


if __name__ == "__main__":
    INPUT_DIM, EMB_DIM, ENC_HID, DEC_HID = 50, 32, 32, 32
    T, B = 8, 2

    key = jax.random.PRNGKey(0)
    k_param, k_src = jax.random.split(key)
    params = init_params(k_param, INPUT_DIM, EMB_DIM, ENC_HID, DEC_HID)
    src = jax.random.randint(k_src, (T, B), 0, INPUT_DIM, dtype=jnp.int32)

    outputs, hidden = jax.jit(encoder_forward)(params, src)
    jax.block_until_ready((outputs, hidden))

    ref_out, ref_hid = _encoder_ref(params, src)
    assert outputs.shape == (T, B, 2 * ENC_HID)
    assert hidden.shape == (B, DEC_HID)
    assert jnp.allclose(outputs, ref_out, atol=1e-5, rtol=1e-5)
    assert jnp.allclose(hidden, ref_hid, atol=1e-5, rtol=1e-5)

    print("KERNEL_OK")
</pallas_src>

<mosaic_0001>
module attributes {stable_mosaic.version = 11 : i64} {
  func.func @_input_proj_kernel(%arg0: memref<64x32xf32, #tpu.memory_space<vmem>>, %arg1: memref<32x96xf32, #tpu.memory_space<vmem>>, %arg2: memref<32x96xf32, #tpu.memory_space<vmem>>, %arg3: memref<1x96xf32, #tpu.memory_space<vmem>>, %arg4: memref<1x96xf32, #tpu.memory_space<vmem>>, %arg5: memref<64x96xf32, #tpu.memory_space<vmem>>, %arg6: memref<64x96xf32, #tpu.memory_space<vmem>>) attributes {dimension_semantics = [], scalar_prefetch = 0 : i64, scratch_operands = 0 : i64, tpu.core_type = #tpu.core_type<tc>} {
    %c0 = arith.constant 0 : index
    %c0_0 = arith.constant 0 : index
    %0 = vector.load %arg0[%c0, %c0_0] : memref<64x32xf32, #tpu.memory_space<vmem>>, vector<64x32xf32>
    %c0_1 = arith.constant 0 : index
    %c0_2 = arith.constant 0 : index
    %1 = vector.load %arg1[%c0_1, %c0_2] : memref<32x96xf32, #tpu.memory_space<vmem>>, vector<32x96xf32>
    %cst = arith.constant dense<0.000000e+00> : vector<64x96xf32>
    %2 = tpu.matmul %0, %1, %cst {dimension_numbers = #tpu.dot_dimension_numbers<[1], [0], [0], [1], [0, 0, 1, 1], [], []>} : vector<64x32xf32>, vector<32x96xf32>, vector<64x96xf32> -> vector<64x96xf32>
    %c0_3 = arith.constant 0 : index
    %c0_4 = arith.constant 0 : index
    %3 = vector.load %arg3[%c0_3, %c0_4] : memref<1x96xf32, #tpu.memory_space<vmem>>, vector<1x96xf32>
    %4 = vector.broadcast %3 : vector<1x96xf32> to vector<64x96xf32>
    %5 = arith.addf %2, %4 : vector<64x96xf32>
    %c0_5 = arith.constant 0 : index
    %c0_6 = arith.constant 0 : index
    %6 = vector.load %arg5[%c0_5, %c0_6] : memref<64x96xf32, #tpu.memory_space<vmem>>, vector<64x96xf32>
    tpu.vector_store %arg5[%c0_5, %c0_6], %5 {strides = array<i32>} : memref<64x96xf32, #tpu.memory_space<vmem>>, vector<64x96xf32>,
    %c0_7 = arith.constant 0 : index
    %c0_8 = arith.constant 0 : index
    %7 = vector.load %arg2[%c0_7, %c0_8] : memref<32x96xf32, #tpu.memory_space<vmem>>, vector<32x96xf32>
    %cst_9 = arith.constant dense<0.000000e+00> : vector<64x96xf32>
    %8 = tpu.matmul %0, %7, %cst_9 {dimension_numbers = #tpu.dot_dimension_numbers<[1], [0], [0], [1], [0, 0, 1, 1], [], []>} : vector<64x32xf32>, vector<32x96xf32>, vector<64x96xf32> -> vector<64x96xf32>
    %c0_10 = arith.constant 0 : index
    %c0_11 = arith.constant 0 : index
    %9 = vector.load %arg4[%c0_10, %c0_11] : memref<1x96xf32, #tpu.memory_space<vmem>>, vector<1x96xf32>
    %10 = vector.broadcast %9 : vector<1x96xf32> to vector<64x96xf32>
    %11 = arith.addf %8, %10 : vector<64x96xf32>
    %c0_12 = arith.constant 0 : index
    %c0_13 = arith.constant 0 : index
    %12 = vector.load %arg6[%c0_12, %c0_13] : memref<64x96xf32, #tpu.memory_space<vmem>>, vector<64x96xf32>
    tpu.vector_store %arg6[%c0_12, %c0_13], %11 {strides = array<i32>} : memref<64x96xf32, #tpu.memory_space<vmem>>, vector<64x96xf32>,
    return
  }
}

module attributes {stable_mosaic.version = 11 : i64} {
  func.func @_bigru_kernel(%arg0: i32, %arg1: memref<8x8x96xf32, #tpu.memory_space<vmem>>, %arg2: memref<8x8x96xf32, #tpu.memory_space<vmem>>, %arg3: memref<32x96xf32, #tpu.memory_space<vmem>>, %arg4: memref<32x96xf32, #tpu.memory_space<vmem>>, %arg5: memref<1x96xf32, #tpu.memory_space<vmem>>, %arg6: memref<1x96xf32, #tpu.memory_space<vmem>>, %arg7: memref<64x32xf32, #tpu.memory_space<vmem>>, %arg8: memref<1x32xf32, #tpu.memory_space<vmem>>, %arg9: memref<8x8x32xf32, #tpu.memory_space<vmem>>, %arg10: memref<8x8x32xf32, #tpu.memory_space<vmem>>, %arg11: memref<8x32xf32, #tpu.memory_space<vmem>>, %arg12: memref<8x32xf32, #tpu.memory_space<vmem>>, %arg13: memref<8x32xf32, #tpu.memory_space<vmem>>) attributes {dimension_semantics = [#tpu.dimension_semantics<arbitrary>], iteration_bounds = array<i64: 1>, scalar_prefetch = 0 : i64, scratch_operands = 2 : i64, tpu.core_type = #tpu.core_type<tc>, window_params = [{transform_indices = @transform_0, window_bounds = array<i64: 8, 8, 96>}, {transform_indices = @transform_1, window_bounds = array<i64: 8, 8, 96>}, {pipeline_mode = #tpu.pipeline_mode<synchronous>, transform_indices = @transform_2, window_bounds = array<i64: 32, 96>}, {pipeline_mode = #tpu.pipeline_mode<synchronous>, transform_indices = @transform_3, window_bounds = array<i64: 32, 96>}, {pipeline_mode = #tpu.pipeline_mode<synchronous>, transform_indices = @transform_4, window_bounds = array<i64: 1, 96>}, {pipeline_mode = #tpu.pipeline_mode<synchronous>, transform_indices = @transform_5, window_bounds = array<i64: 1, 96>}, {pipeline_mode = #tpu.pipeline_mode<synchronous>, transform_indices = @transform_6, window_bounds = array<i64: 64, 32>}, {pipeline_mode = #tpu.pipeline_mode<synchronous>, transform_indices = @transform_7, window_bounds = array<i64: 1, 32>}, {transform_indices = @transform_8, window_bounds = array<i64: 8, 8, 32>}, {transform_indices = @transform_9, window_bounds = array<i64: 8, 8, 32>}, {pipeline_mode = #tpu.pipeline_mode<synchronous>, transform_indices = @transform_10, window_bounds = array<i64: 8, 32>}]} {
    %c0_i32 = arith.constant 0 : i32
    %0 = arith.cmpi eq, %arg0, %c0_i32 : i32
    %1 = arith.extui %0 : i1 to i32
    %c0_i32_0 = arith.constant 0 : i32
    %2 = arith.cmpi ne, %1, %c0_i32_0 : i32
    scf.if %2 {
      %cst_162 = arith.constant 0.000000e+00 : f32
      %606 = vector.broadcast %cst_162 : f32 to vector<8x32xf32>
      %c0_163 = arith.constant 0 : index
      %c0_164 = arith.constant 0 : index
      %607 = vector.load %arg12[%c0_163, %c0_164] : memref<8x32xf32, #tpu.memory_space<vmem>>, vector<8x32xf32>
      tpu.vector_store %arg12[%c0_163, %c0_164], %606 {strides = array<i32>} : memref<8x32xf32, #tpu.memory_space<vmem>>, vector<8x32xf32>,
      %cst_165 = arith.constant 0.000000e+00 : f32
      %608 = vector.broadcast %cst_165 : f32 to vector<8x32xf32>
      %c0_166 = arith.constant 0 : index
      %c0_167 = arith.constant 0 : index
      %609 = vector.load %arg13[%c0_166, %c0_167] : memref<8x32xf32, #tpu.memory_space<vmem>>, vector<8x32xf32>
      tpu.vector_store %arg13[%c0_166, %c0_167], %608 {strides = array<i32>} : memref<8x32xf32, #tpu.memory_space<vmem>>, vector<8x32xf32>,
    } else {
    }
    %c0 = arith.constant 0 : index
    %c0_1 = arith.constant 0 : index
    %3 = vector.load %arg3[%c0, %c0_1] : memref<32x96xf32, #tpu.memory_space<vmem>>, vector<32x96xf32>
    %c0_2 = arith.constant 0 : index
    %c0_3 = arith.constant 0 : index
    %4 = vector.load %arg4[%c0_2, %c0_3] : memref<32x96xf32, #tpu.memory_space<vmem>>, vector<32x96xf32>
    %c0_4 = arith.constant 0 : index
    %c0_5 = arith.constant 0 : index
    %5 = vector.load %arg5[%c0_4, %c0_5] : memref<1x96xf32, #tpu.memory_space<vmem>>, vector<1x96xf32>
    %c0_6 = arith.constant 0 : index
    %c0_7 = arith.constant 0 : index
    %6 = vector.load %arg6[%c0_6, %c0_7] : memref<1x96xf32, #tpu.memory_space<vmem>>, vector<1x96xf32>
    %c0_8 = arith.constant 0 : index
    %c0_9 = arith.constant 0 : index
    %7 = vector.load %arg12[%c0_8, %c0_9] : memref<8x32xf32, #tpu.memory_space<vmem>>, vector<8x32xf32>
    %c0_10 = arith.constant 0 : index
    %c0_11 = arith.constant 0 : index
    %8 = vector.load %arg13[%c0_10, %c0_11] : memref<8x32xf32, #tpu.memory_space<vmem>>, vector<8x32xf32>
    %c0_i32_12 = arith.constant 0 : i32
    %9 = arith.index_cast %c0_i32_12 : i32 to index
    %c0_13 = arith.constant 0 : index
    %c0_14 = arith.constant 0 : index
    %10 = vector.load %arg1[%9, %c0_13, %c0_14] : memref<8x8x96xf32, #tpu.memory_space<vmem>>, vector<1x8x96xf32>
    %11 = vector.shape_cast %10 : vector<1x8x96xf32> to vector<8x96xf32>
    %cst = arith.constant dense<0.000000e+00> : vector<8x96xf32>
    %12 = tpu.matmul %7, %3, %cst {dimension_numbers = #tpu.dot_dimension_numbers<[1], [0], [0], [1], [0, 0, 1, 1], [], []>} : vector<8x32xf32>, vector<32x96xf32>, vector<8x96xf32> -> vector<8x96xf32>
    %13 = vector.broadcast %5 : vector<1x96xf32> to vector<8x96xf32>
    %14 = arith.addf %12, %13 : vector<8x96xf32>
    %15 = vector.extract_strided_slice %11 {offsets = [0, 0], sizes = [8, 32], strides = [1, 1]} : vector<8x96xf32> to vector<8x32xf32>
    %16 = vector.extract_strided_slice %14 {offsets = [0, 0], sizes = [8, 32], strides = [1, 1]} : vector<8x96xf32> to vector<8x32xf32>
    %17 = arith.addf %15, %16 : vector<8x32xf32>
    %18 = arith.negf %17 : vector<8x32xf32>
    %19 = math.exp %18 : vector<8x32xf32>
    %cst_15 = arith.constant 1.000000e+00 : f32
    %20 = vector.broadcast %cst_15 : f32 to vector<8x32xf32>
    %21 = arith.addf %20, %19 : vector<8x32xf32>
    %22 = arith.divf %20, %21 : vector<8x32xf32>
    %23 = vector.extract_strided_slice %11 {offsets = [0, 32], sizes = [8, 32], strides = [1, 1]} : vector<8x96xf32> to vector<8x32xf32>
    %24 = vector.extract_strided_slice %14 {offsets = [0, 32], sizes = [8, 32], strides = [1, 1]} : vector<8x96xf32> to vector<8x32xf32>
    %25 = arith.addf %23, %24 : vector<8x32xf32>
    %26 = arith.negf %25 : vector<8x32xf32>
    %27 = math.exp %26 : vector<8x32xf32>
    %cst_16 = arith.constant 1.000000e+00 : f32
    %28 = vector.broadcast %cst_16 : f32 to vector<8x32xf32>
    %29 = arith.addf %28, %27 : vector<8x32xf32>
    %30 = arith.divf %28, %29 : vector<8x32xf32>
    %31 = vector.extract_strided_slice %11 {offsets = [0, 64], sizes = [8, 32], strides = [1, 1]} : vector<8x96xf32> to vector<8x32xf32>
    %32 = vector.extract_strided_slice %14 {offsets = [0, 64], sizes = [8, 32], strides = [1, 1]} : vector<8x96xf32> to vector<8x32xf32>
    %33 = arith.mulf %22, %32 : vector<8x32xf32>
    %34 = arith.addf %31, %33 : vector<8x32xf32>
    %35 = math.tanh %34 : vector<8x32xf32>
    %cst_17 = arith.constant 1.000000e+00 : f32
    %36 = vector.broadcast %cst_17 : f32 to vector<8x32xf32>
    %37 = arith.subf %36, %30 : vector<8x32xf32>
    %38 = arith.mulf %37, %35 : vector<8x32xf32>
    %39 = arith.mulf %30, %7 : vector<8x32xf32>
    %40 = arith.addf %38, %39 : vector<8x32xf32>
    %c7_i32 = arith.constant 7 : i32
    %41 = arith.subi %c7_i32, %c0_i32_12 : i32
    %42 = arith.index_cast %41 : i32 to index
    %c0_18 = arith.constant 0 : index
    %c0_19 = arith.constant 0 : index
    %43 = vector.load %arg2[%42, %c0_18, %c0_19] : memref<8x8x96xf32, #tpu.memory_space<vmem>>, vector<1x8x96xf32>
    %44 = vector.shape_cast %43 : vector<1x8x96xf32> to vector<8x96xf32>
    %cst_20 = arith.constant dense<0.000000e+00> : vector<8x96xf32>
    %45 = tpu.matmul %8, %4, %cst_20 {dimension_numbers = #tpu.dot_dimension_numbers<[1], [0], [0], [1], [0, 0, 1, 1], [], []>} : vector<8x32xf32>, vector<32x96xf32>, vector<8x96xf32> -> vector<8x96xf32>
    %46 = vector.broadcast %6 : vector<1x96xf32> to vector<8x96xf32>
    %47 = arith.addf %45, %46 : vector<8x96xf32>
    %48 = vector.extract_strided_slice %44 {offsets = [0, 0], sizes = [8, 32], strides = [1, 1]} : vector<8x96xf32> to vector<8x32xf32>
    %49 = vector.extract_strided_slice %47 {offsets = [0, 0], sizes = [8, 32], strides = [1, 1]} : vector<8x96xf32> to vector<8x32xf32>
    %50 = arith.addf %48, %49 : vector<8x32xf32>
    %51 = arith.negf %50 : vector<8x32xf32>
    %52 = math.exp %51 : vector<8x32xf32>
    %cst_21 = arith.constant 1.000000e+00 : f32
    %53 = vector.broadcast %cst_21 : f32 to vector<8x32xf32>
    %54 = arith.addf %53, %52 : vector<8x32xf32>
    %55 = arith.divf %53, %54 : vector<8x32xf32>
    %56 = vector.extract_strided_slice %44 {offsets = [0, 32], sizes = [8, 32], strides = [1, 1]} : vector<8x96xf32> to vector<8x32xf32>
    %57 = vector.extract_strided_slice %47 {offsets = [0, 32], sizes = [8, 32], strides = [1, 1]} : vector<8x96xf32> to vector<8x32xf32>
    %58 = arith.addf %56, %57 : vector<8x32xf32>
    %59 = arith.negf %58 : vector<8x32xf32>
    %60 = math.exp %59 : vector<8x32xf32>
    %cst_22 = arith.constant 1.000000e+00 : f32
    %61 = vector.broadcast %cst_22 : f32 to vector<8x32xf32>
    %62 = arith.addf %61, %60 : vector<8x32xf32>
    %63 = arith.divf %61, %62 : vector<8x32xf32>
    %64 = vector.extract_strided_slice %44 {offsets = [0, 64], sizes = [8, 32], strides = [1, 1]} : vector<8x96xf32> to vector<8x32xf32>
    %65 = vector.extract_strided_slice %47 {offsets = [0, 64], sizes = [8, 32], strides = [1, 1]} : vector<8x96xf32> to vector<8x32xf32>
    %66 = arith.mulf %55, %65 : vector<8x32xf32>
    %67 = arith.addf %64, %66 : vector<8x32xf32>
    %68 = math.tanh %67 : vector<8x32xf32>
    %cst_23 = arith.constant 1.000000e+00 : f32
    %69 = vector.broadcast %cst_23 : f32 to vector<8x32xf32>
    %70 = arith.subf %69, %63 : vector<8x32xf32>
    %71 = arith.mulf %70, %68 : vector<8x32xf32>
    %72 = arith.mulf %63, %8 : vector<8x32xf32>
    %73 = arith.addf %71, %72 : vector<8x32xf32>
    %74 = arith.index_cast %c0_i32_12 : i32 to index
    %c0_24 = arith.constant 0 : index
    %c0_25 = arith.constant 0 : index
    %75 = vector.load %arg9[%74, %c0_24, %c0_25] : memref<8x8x32xf32, #tpu.memory_space<vmem>>, vector<1x8x32xf32>
    %76 = vector.shape_cast %75 : vector<1x8x32xf32> to vector<8x32xf32>
    %77 = vector.shape_cast %40 : vector<8x32xf32> to vector<1x8x32xf32>
    tpu.vector_store %arg9[%74, %c0_24, %c0_25], %77 {strides = array<i32>} : memref<8x8x32xf32, #tpu.memory_space<vmem>>, vector<1x8x32xf32>,
    %c7_i32_26 = arith.constant 7 : i32
    %78 = arith.subi %c7_i32_26, %c0_i32_12 : i32
    %79 = arith.index_cast %78 : i32 to index
    %c0_27 = arith.constant 0 : index
    %c0_28 = arith.constant 0 : index
    %80 = vector.load %arg10[%79, %c0_27, %c0_28] : memref<8x8x32xf32, #tpu.memory_space<vmem>>, vector<1x8x32xf32>
    %81 = vector.shape_cast %80 : vector<1x8x32xf32> to vector<8x32xf32>
    %82 = vector.shape_cast %73 : vector<8x32xf32> to vector<1x8x32xf32>
    tpu.vector_store %arg10[%79, %c0_27, %c0_28], %82 {strides = array<i32>} : memref<8x8x32xf32, #tpu.memory_space<vmem>>, vector<1x8x32xf32>,
    %c1_i32 = arith.constant 1 : i32
    %83 = arith.index_cast %c1_i32 : i32 to index
    %c0_29 = arith.constant 0 : index
    %c0_30 = arith.constant 0 : index
    %84 = vector.load %arg1[%83, %c0_29, %c0_30] : memref<8x8x96xf32, #tpu.memory_space<vmem>>, vector<1x8x96xf32>
    %85 = vector.shape_cast %84 : vector<1x8x96xf32> to vector<8x96xf32>
    %cst_31 = arith.constant dense<0.000000e+00> : vector<8x96xf32>
    %86 = tpu.matmul %40, %3, %cst_31 {dimension_numbers = #tpu.dot_dimension_numbers<[1], [0], [0], [1], [0, 0, 1, 1], [], []>} : vector<8x32xf32>, vector<32x96xf32>, vector<8x96xf32> -> vector<8x96xf32>
    %87 = vector.broadcast %5 : vector<1x96xf32> to vector<8x96xf32>
    %88 = arith.addf %86, %87 : vector<8x96xf32>
    %89 = vector.extract_strided_slice %85 {offsets = [0, 0], sizes = [8, 32], strides = [1, 1]} : vector<8x96xf32> to vector<8x32xf32>
    %90 = vector.extract_strided_slice %88 {offsets = [0, 0], sizes = [8, 32], strides = [1, 1]} : vector<8x96xf32> to vector<8x32xf32>
    %91 = arith.addf %89, %90 : vector<8x32xf32>
    %92 = arith.negf %91 : vector<8x32xf32>
    %93 = math.exp %92 : vector<8x32xf32>
    %cst_32 = arith.constant 1.000000e+00 : f32
    %94 = vector.broadcast %cst_32 : f32 to vector<8x32xf32>
    %95 = arith.addf %94, %93 : vector<8x32xf32>
    %96 = arith.divf %94, %95 : vector<8x32xf32>
    %97 = vector.extract_strided_slice %85 {offsets = [0, 32], sizes = [8, 32], strides = [1, 1]} : vector<8x96xf32> to vector<8x32xf32>
    %98 = vector.extract_strided_slice %88 {offsets = [0, 32], sizes = [8, 32], strides = [1, 1]} : vector<8x96xf32> to vector<8x32xf32>
    %99 = arith.addf %97, %98 : vector<8x32xf32>
    %100 = arith.negf %99 : vector<8x32xf32>
    %101 = math.exp %100 : vector<8x32xf32>
    %cst_33 = arith.constant 1.000000e+00 : f32
    %102 = vector.broadcast %cst_33 : f32 to vector<8x32xf32>
    %103 = arith.addf %102, %101 : vector<8x32xf32>
    %104 = arith.divf %102, %103 : vector<8x32xf32>
    %105 = vector.extract_strided_slice %85 {offsets = [0, 64], sizes = [8, 32], strides = [1, 1]} : vector<8x96xf32> to vector<8x32xf32>
    %106 = vector.extract_strided_slice %88 {offsets = [0, 64], sizes = [8, 32], strides = [1, 1]} : vector<8x96xf32> to vector<8x32xf32>
    %107 = arith.mulf %96, %106 : vector<8x32xf32>
    %108 = arith.addf %105, %107 : vector<8x32xf32>
    %109 = math.tanh %108 : vector<8x32xf32>
    %cst_34 = arith.constant 1.000000e+00 : f32
    %110 = vector.broadcast %cst_34 : f32 to vector<8x32xf32>
    %111 = arith.subf %110, %104 : vector<8x32xf32>
    %112 = arith.mulf %111, %109 : vector<8x32xf32>
    %113 = arith.mulf %104, %40 : vector<8x32xf32>
    %114 = arith.addf %112, %113 : vector<8x32xf32>
    %c7_i32_35 = arith.constant 7 : i32
    %115 = arith.subi %c7_i32_35, %c1_i32 : i32
    %116 = arith.index_cast %115 : i32 to index
    %c0_36 = arith.constant 0 : index
    %c0_37 = arith.constant 0 : index
    %117 = vector.load %arg2[%116, %c0_36, %c0_37] : memref<8x8x96xf32, #tpu.memory_space<vmem>>, vector<1x8x96xf32>
    %118 = vector.shape_cast %117 : vector<1x8x96xf32> to vector<8x96xf32>
    %cst_38 = arith.constant dense<0.000000e+00> : vector<8x96xf32>
    %119 = tpu.matmul %73, %4, %cst_38 {dimension_numbers = #tpu.dot_dimension_numbers<[1], [0], [0], [1], [0, 0, 1, 1], [], []>} : vector<8x32xf32>, vector<32x96xf32>, vector<8x96xf32> -> vector<8x96xf32>
    %120 = vector.broadcast %6 : vector<1x96xf32> to vector<8x96xf32>
    %121 = arith.addf %119, %120 : vector<8x96xf32>
    %122 = vector.extract_strided_slice %118 {offsets = [0, 0], sizes = [8, 32], strides = [1, 1]} : vector<8x96xf32> to vector<8x32xf32>
    %123 = vector.extract_strided_slice %121 {offsets = [0, 0], sizes = [8, 32], strides = [1, 1]} : vector<8x96xf32> to vector<8x32xf32>
    %124 = arith.addf %122, %123 : vector<8x32xf32>
    %125 = arith.negf %124 : vector<8x32xf32>
    %126 = math.exp %125 : vector<8x32xf32>
    %cst_39 = arith.constant 1.000000e+00 : f32
    %127 = vector.broadcast %cst_39 : f32 to vector<8x32xf32>
    %128 = arith.addf %127, %126 : vector<8x32xf32>
    %129 = arith.divf %127, %128 : vector<8x32xf32>
    %130 = vector.extract_strided_slice %118 {offsets = [0, 32], sizes = [8, 32], strides = [1, 1]} : vector<8x96xf32> to vector<8x32xf32>
    %131 = vector.extract_strided_slice %121 {offsets = [0, 32], sizes = [8, 32], strides = [1, 1]} : vector<8x96xf32> to vector<8x32xf32>
    %132 = arith.addf %130, %131 : vector<8x32xf32>
    %133 = arith.negf %132 : vector<8x32xf32>
    %134 = math.exp %133 : vector<8x32xf32>
    %cst_40 = arith.constant 1.000000e+00 : f32
    %135 = vector.broadcast %cst_40 : f32 to vector<8x32xf32>
    %136 = arith.addf %135, %134 : vector<8x32xf32>
    %137 = arith.divf %135, %136 : vector<8x32xf32>
    %138 = vector.extract_strided_slice %118 {offsets = [0, 64], sizes = [8, 32], strides = [1, 1]} : vector<8x96xf32> to vector<8x32xf32>
    %139 = vector.extract_strided_slice %121 {offsets = [0, 64], sizes = [8, 32], strides = [1, 1]} : vector<8x96xf32> to vector<8x32xf32>
    %140 = arith.mulf %129, %139 : vector<8x32xf32>
    %141 = arith.addf %138, %140 : vector<8x32xf32>
    %142 = math.tanh %141 : vector<8x32xf32>
    %cst_41 = arith.constant 1.000000e+00 : f32
    %143 = vector.broadcast %cst_41 : f32 to vector<8x32xf32>
    %144 = arith.subf %143, %137 : vector<8x32xf32>
    %145 = arith.mulf %144, %142 : vector<8x32xf32>
    %146 = arith.mulf %137, %73 : vector<8x32xf32>
    %147 = arith.addf %145, %146 : vector<8x32xf32>
    %148 = arith.index_cast %c1_i32 : i32 to index
    %c0_42 = arith.constant 0 : index
    %c0_43 = arith.constant 0 : index
    %149 = vector.load %arg9[%148, %c0_42, %c0_43] : memref<8x8x32xf32, #tpu.memory_space<vmem>>, vector<1x8x32xf32>
    %150 = vector.shape_cast %149 : vector<1x8x32xf32> to vector<8x32xf32>
    %151 = vector.shape_cast %114 : vector<8x32xf32> to vector<1x8x32xf32>
    tpu.vector_store %arg9[%148, %c0_42, %c0_43], %151 {strides = array<i32>} : memref<8x8x32xf32, #tpu.memory_space<vmem>>, vector<1x8x32xf32>,
    %c7_i32_44 = arith.constant 7 : i32
    %152 = arith.subi %c7_i32_44, %c1_i32 : i32
    %153 = arith.index_cast %152 : i32 to index
    %c0_45 = arith.constant 0 : index
    %c0_46 = arith.constant 0 : index
    %154 = vector.load %arg10[%153, %c0_45, %c0_46] : memref<8x8x32xf32, #tpu.memory_space<vmem>>, vector<1x8x32xf32>
    %155 = vector.shape_cast %154 : vector<1x8x32xf32> to vector<8x32xf32>
    %156 = vector.shape_cast %147 : vector<8x32xf32> to vector<1x8x32xf32>
    tpu.vector_store %arg10[%153, %c0_45, %c0_46], %156 {strides = array<i32>} : memref<8x8x32xf32, #tpu.memory_space<vmem>>, vector<1x8x32xf32>,
    %c2_i32 = arith.constant 2 : i32
    %157 = arith.index_cast %c2_i32 : i32 to index
    %c0_47 = arith.constant 0 : index
    %c0_48 = arith.constant 0 : index
    %158 = vector.load %arg1[%157, %c0_47, %c0_48] : memref<8x8x96xf32, #tpu.memory_space<vmem>>, vector<1x8x96xf32>
    %159 = vector.shape_cast %158 : vector<1x8x96xf32> to vector<8x96xf32>
    %cst_49 = arith.constant dense<0.000000e+00> : vector<8x96xf32>
    %160 = tpu.matmul %114, %3, %cst_49 {dimension_numbers = #tpu.dot_dimension_numbers<[1], [0], [0], [1], [0, 0, 1, 1], [], []>} : vector<8x32xf32>, vector<32x96xf32>, vector<8x96xf32> -> vector<8x96xf32>
    %161 = vector.broadcast %5 : vector<1x96xf32> to vector<8x96xf32>
    %162 = arith.addf %160, %161 : vector<8x96xf32>
    %163 = vector.extract_strided_slice %159 {offsets = [0, 0], sizes = [8, 32], strides = [1, 1]} : vector<8x96xf32> to vector<8x32xf32>
    %164 = vector.extract_strided_slice %162 {offsets = [0, 0], sizes = [8, 32], strides = [1, 1]} : vector<8x96xf32> to vector<8x32xf32>
    %165 = arith.addf %163, %164 : vector<8x32xf32>
    %166 = arith.negf %165 : vector<8x32xf32>
    %167 = math.exp %166 : vector<8x32xf32>
    %cst_50 = arith.constant 1.000000e+00 : f32
    %168 = vector.broadcast %cst_50 : f32 to vector<8x32xf32>
    %169 = arith.addf %168, %167 : vector<8x32xf32>
    %170 = arith.divf %168, %169 : vector<8x32xf32>
    %171 = vector.extract_strided_slice %159 {offsets = [0, 32], sizes = [8, 32], strides = [1, 1]} : vector<8x96xf32> to vector<8x32xf32>
    %172 = vector.extract_strided_slice %162 {offsets = [0, 32], sizes = [8, 32], strides = [1, 1]} : vector<8x96xf32> to vector<8x32xf32>
    %173 = arith.addf %171, %172 : vector<8x32xf32>
    %174 = arith.negf %173 : vector<8x32xf32>
    %175 = math.exp %174 : vector<8x32xf32>
    %cst_51 = arith.constant 1.000000e+00 : f32
    %176 = vector.broadcast %cst_51 : f32 to vector<8x32xf32>
    %177 = arith.addf %176, %175 : vector<8x32xf32>
    %178 = arith.divf %176, %177 : vector<8x32xf32>
    %179 = vector.extract_strided_slice %159 {offsets = [0, 64], sizes = [8, 32], strides = [1, 1]} : vector<8x96xf32> to vector<8x32xf32>
    %180 = vector.extract_strided_slice %162 {offsets = [0, 64], sizes = [8, 32], strides = [1, 1]} : vector<8x96xf32> to vector<8x32xf32>
    %181 = arith.mulf %170, %180 : vector<8x32xf32>
    %182 = arith.addf %179, %181 : vector<8x32xf32>
    %183 = math.tanh %182 : vector<8x32xf32>
    %cst_52 = arith.constant 1.000000e+00 : f32
    %184 = vector.broadcast %cst_52 : f32 to vector<8x32xf32>
    %185 = arith.subf %184, %178 : vector<8x32xf32>
    %186 = arith.mulf %185, %183 : vector<8x32xf32>
    %187 = arith.mulf %178, %114 : vector<8x32xf32>
    %188 = arith.addf %186, %187 : vector<8x32xf32>
    %c7_i32_53 = arith.constant 7 : i32
    %189 = arith.subi %c7_i32_53, %c2_i32 : i32
    %190 = arith.index_cast %189 : i32 to index
    %c0_54 = arith.constant 0 : index
    %c0_55 = arith.constant 0 : index
    %191 = vector.load %arg2[%190, %c0_54, %c0_55] : memref<8x8x96xf32, #tpu.memory_space<vmem>>, vector<1x8x96xf32>
    %192 = vector.shape_cast %191 : vector<1x8x96xf32> to vector<8x96xf32>
    %cst_56 = arith.constant dense<0.000000e+00> : vector<8x96xf32>
    %193 = tpu.matmul %147, %4, %cst_56 {dimension_numbers = #tpu.dot_dimension_numbers<[1], [0], [0], [1], [0, 0, 1, 1], [], []>} : vector<8x32xf32>, vector<32x96xf32>, vector<8x96xf32> -> vector<8x96xf32>
    %194 = vector.broadcast %6 : vector<1x96xf32> to vector<8x96xf32>
    %195 = arith.addf %193, %194 : vector<8x96xf32>
    %196 = vector.extract_strided_slice %192 {offsets = [0, 0], sizes = [8, 32], strides = [1, 1]} : vector<8x96xf32> to vector<8x32xf32>
    %197 = vector.extract_strided_slice %195 {offsets = [0, 0], sizes = [8, 32], strides = [1, 1]} : vector<8x96xf32> to vector<8x32xf32>
    %198 = arith.addf %196, %197 : vector<8x32xf32>
    %199 = arith.negf %198 : vector<8x32xf32>
    %200 = math.exp %199 : vector<8x32xf32>
    %cst_57 = arith.constant 1.000000e+00 : f32
    %201 = vector.broadcast %cst_57 : f32 to vector<8x32xf32>
    %202 = arith.addf %201, %200 : vector<8x32xf32>
    %203 = arith.divf %201, %202 : vector<8x32xf32>
    %204 = vector.extract_strided_slice %192 {offsets = [0, 32], sizes = [8, 32], strides = [1, 1]} : vector<8x96xf32> to vector<8x32xf32>
    %205 = vector.extract_strided_slice %195 {offsets = [0, 32], sizes = [8, 32], strides = [1, 1]} : vector<8x96xf32> to vector<8x32xf32>
    %206 = arith.addf %204, %205 : vector<8x32xf32>
    %207 = arith.negf %206 : vector<8x32xf32>
    %208 = math.exp %207 : vector<8x32xf32>
    %cst_58 = arith.constant 1.000000e+00 : f32
    %209 = vector.broadcast %cst_58 : f32 to vector<8x32xf32>
    %210 = arith.addf %209, %208 : vector<8x32xf32>
    %211 = arith.divf %209, %210 : vector<8x32xf32>
    %212 = vector.extract_strided_slice %192 {offsets = [0, 64], sizes = [8, 32], strides = [1, 1]} : vector<8x96xf32> to vector<8x32xf32>
    %213 = vector.extract_strided_slice %195 {offsets = [0, 64], sizes = [8, 32], strides = [1, 1]} : vector<8x96xf32> to vector<8x32xf32>
    %214 = arith.mulf %203, %213 : vector<8x32xf32>
    %215 = arith.addf %212, %214 : vector<8x32xf32>
    %216 = math.tanh %215 : vector<8x32xf32>
    %cst_59 = arith.constant 1.000000e+00 : f32
    %217 = vector.broadcast %cst_59 : f32 to vector<8x32xf32>
    %218 = arith.subf %217, %211 : vector<8x32xf32>
    %219 = arith.mulf %218, %216 : vector<8x32xf32>
    %220 = arith.mulf %211, %147 : vector<8x32xf32>
    %221 = arith.addf %219, %220 : vector<8x32xf32>
    %222 = arith.index_cast %c2_i32 : i32 to index
    %c0_60 = arith.constant 0 : index
    %c0_61 = arith.constant 0 : index
    %223 = vector.load %arg9[%222, %c0_60, %c0_61] : memref<8x8x32xf32, #tpu.memory_space<vmem>>, vector<1x8x32xf32>
    %224 = vector.shape_cast %223 : vector<1x8x32xf32> to vector<8x32xf32>
    %225 = vector.shape_cast %188 : vector<8x32xf32> to vector<1x8x32xf32>
    tpu.vector_store %arg9[%222, %c0_60, %c0_61], %225 {strides = array<i32>} : memref<8x8x32xf32, #tpu.memory_space<vmem>>, vector<1x8x32xf32>,
    %c7_i32_62 = arith.constant 7 : i32
    %226 = arith.subi %c7_i32_62, %c2_i32 : i32
    %227 = arith.index_cast %226 : i32 to index
    %c0_63 = arith.constant 0 : index
    %c0_64 = arith.constant 0 : index
    %228 = vector.load %arg10[%227, %c0_63, %c0_64] : memref<8x8x32xf32, #tpu.memory_space<vmem>>, vector<1x8x32xf32>
    %229 = vector.shape_cast %228 : vector<1x8x32xf32> to vector<8x32xf32>
    %230 = vector.shape_cast %221 : vector<8x32xf32> to vector<1x8x32xf32>
    tpu.vector_store %arg10[%227, %c0_63, %c0_64], %230 {strides = array<i32>} : memref<8x8x32xf32, #tpu.memory_space<vmem>>, vector<1x8x32xf32>,
    %c3_i32 = arith.constant 3 : i32
    %231 = arith.index_cast %c3_i32 : i32 to index
    %c0_65 = arith.constant 0 : index
    %c0_66 = arith.constant 0 : index
    %232 = vector.load %arg1[%231, %c0_65, %c0_66] : memref<8x8x96xf32, #tpu.memory_space<vmem>>, vector<1x8x96xf32>
    %233 = vector.shape_cast %232 : vector<1x8x96xf32> to vector<8x96xf32>
    %cst_67 = arith.constant dense<0.000000e+00> : vector<8x96xf32>
    %234 = tpu.matmul %188, %3, %cst_67 {dimension_numbers = #tpu.dot_dimension_numbers<[1], [0], [0], [1], [0, 0, 1, 1], [], []>} : vector<8x32xf32>, vector<32x96xf32>, vector<8x96xf32> -> vector<8x96xf32>
    %235 = vector.broadcast %5 : vector<1x96xf32> to vector<8x96xf32>
    %236 = arith.addf %234, %235 : vector<8x96xf32>
    %237 = vector.extract_strided_slice %233 {offsets = [0, 0], sizes = [8, 32], strides = [1, 1]} : vector<8x96xf32> to vector<8x32xf32>
    %238 = vector.extract_strided_slice %236 {offsets = [0, 0], sizes = [8, 32], strides = [1, 1]} : vector<8x96xf32> to vector<8x32xf32>
    %239 = arith.addf %237, %238 : vector<8x32xf32>
    %240 = arith.negf %239 : vector<8x32xf32>
    %241 = math.exp %240 : vector<8x32xf32>
    %cst_68 = arith.constant 1.000000e+00 : f32
    %242 = vector.broadcast %cst_68 : f32 to vector<8x32xf32>
    %243 = arith.addf %242, %241 : vector<8x32xf32>
    %244 = arith.divf %242, %243 : vector<8x32xf32>
    %245 = vector.extract_strided_slice %233 {offsets = [0, 32], sizes = [8, 32], strides = [1, 1]} : vector<8x96xf32> to vector<8x32xf32>
    %246 = vector.extract_strided_slice %236 {offsets = [0, 32], sizes = [8, 32], strides = [1, 1]} : vector<8x96xf32> to vector<8x32xf32>
    %247 = arith.addf %245, %246 : vector<8x32xf32>
    %248 = arith.negf %247 : vector<8x32xf32>
    %249 = math.exp %248 : vector<8x32xf32>
    %cst_69 = arith.constant 1.000000e+00 : f32
    %250 = vector.broadcast %cst_69 : f32 to vector<8x32xf32>
    %251 = arith.addf %250, %249 : vector<8x32xf32>
    %252 = arith.divf %250, %251 : vector<8x32xf32>
    %253 = vector.extract_strided_slice %233 {offsets = [0, 64], sizes = [8, 32], strides = [1, 1]} : vector<8x96xf32> to vector<8x32xf32>
    %254 = vector.extract_strided_slice %236 {offsets = [0, 64], sizes = [8, 32], strides = [1, 1]} : vector<8x96xf32> to vector<8x32xf32>
    %255 = arith.mulf %244, %254 : vector<8x32xf32>
    %256 = arith.addf %253, %255 : vector<8x32xf32>
    %257 = math.tanh %256 : vector<8x32xf32>
    %cst_70 = arith.constant 1.000000e+00 : f32
    %258 = vector.broadcast %cst_70 : f32 to vector<8x32xf32>
    %259 = arith.subf %258, %252 : vector<8x32xf32>
    %260 = arith.mulf %259, %257 : vector<8x32xf32>
    %261 = arith.mulf %252, %188 : vector<8x32xf32>
    %262 = arith.addf %260, %261 : vector<8x32xf32>
    %c7_i32_71 = arith.constant 7 : i32
    %263 = arith.subi %c7_i32_71, %c3_i32 : i32
    %264 = arith.index_cast %263 : i32 to index
    %c0_72 = arith.constant 0 : index
    %c0_73 = arith.constant 0 : index
    %265 = vector.load %arg2[%264, %c0_72, %c0_73] : memref<8x8x96xf32, #tpu.memory_space<vmem>>, vector<1x8x96xf32>
    %266 = vector.shape_cast %265 : vector<1x8x96xf32> to vector<8x96xf32>
    %cst_74 = arith.constant dense<0.000000e+00> : vector<8x96xf32>
    %267 = tpu.matmul %221, %4, %cst_74 {dimension_numbers = #tpu.dot_dimension_numbers<[1], [0], [0], [1], [0, 0, 1, 1], [], []>} : vector<8x32xf32>, vector<32x96xf32>, vector<8x96xf32> -> vector<8x96xf32>
    %268 = vector.broadcast %6 : vector<1x96xf32> to vector<8x96xf32>
    %269 = arith.addf %267, %268 : vector<8x96xf32>
    %270 = vector.extract_strided_slice %266 {offsets = [0, 0], sizes = [8, 32], strides = [1, 1]} : vector<8x96xf32> to vector<8x32xf32>
    %271 = vector.extract_strided_slice %269 {offsets = [0, 0], sizes = [8, 32], strides = [1, 1]} : vector<8x96xf32> to vector<8x32xf32>
    %272 = arith.addf %270, %271 : vector<8x32xf32>
    %273 = arith.negf %272 : vector<8x32xf32>
    %274 = math.exp %273 : vector<8x32xf32>
    %cst_75 = arith.constant 1.000000e+00 : f32
    %275 = vector.broadcast %cst_75 : f32 to vector<8x32xf32>
    %276 = arith.addf %275, %274 : vector<8x32xf32>
    %277 = arith.divf %275, %276 : vector<8x32xf32>
    %278 = vector.extract_strided_slice %266 {offsets = [0, 32], sizes = [8, 32], strides = [1, 1]} : vector<8x96xf32> to vector<8x32xf32>
    %279 = vector.extract_strided_slice %269 {offsets = [0, 32], sizes = [8, 32], strides = [1, 1]} : vector<8x96xf32> to vector<8x32xf32>
    %280 = arith.addf %278, %279 : vector<8x32xf32>
    %281 = arith.negf %280 : vector<8x32xf32>
    %282 = math.exp %281 : vector<8x32xf32>
    %cst_76 = arith.constant 1.000000e+00 : f32
    %283 = vector.broadcast %cst_76 : f32 to vector<8x32xf32>
    %284 = arith.addf %283, %282 : vector<8x32xf32>
    %285 = arith.divf %283, %284 : vector<8x32xf32>
    %286 = vector.extract_strided_slice %266 {offsets = [0, 64], sizes = [8, 32], strides = [1, 1]} : vector<8x96xf32> to vector<8x32xf32>
    %287 = vector.extract_strided_slice %269 {offsets = [0, 64], sizes = [8, 32], strides = [1, 1]} : vector<8x96xf32> to vector<8x32xf32>
    %288 = arith.mulf %277, %287 : vector<8x32xf32>
    %289 = arith.addf %286, %288 : vector<8x32xf32>
    %290 = math.tanh %289 : vector<8x32xf32>
    %cst_77 = arith.constant 1.000000e+00 : f32
    %291 = vector.broadcast %cst_77 : f32 to vector<8x32xf32>
    %292 = arith.subf %291, %285 : vector<8x32xf32>
    %293 = arith.mulf %292, %290 : vector<8x32xf32>
    %294 = arith.mulf %285, %221 : vector<8x32xf32>
    %295 = arith.addf %293, %294 : vector<8x32xf32>
    %296 = arith.index_cast %c3_i32 : i32 to index
    %c0_78 = arith.constant 0 : index
    %c0_79 = arith.constant 0 : index
    %297 = vector.load %arg9[%296, %c0_78, %c0_79] : memref<8x8x32xf32, #tpu.memory_space<vmem>>, vector<1x8x32xf32>
    %298 = vector.shape_cast %297 : vector<1x8x32xf32> to vector<8x32xf32>
    %299 = vector.shape_cast %262 : vector<8x32xf32> to vector<1x8x32xf32>
    tpu.vector_store %arg9[%296, %c0_78, %c0_79], %299 {strides = array<i32>} : memref<8x8x32xf32, #tpu.memory_space<vmem>>, vector<1x8x32xf32>,
    %c7_i32_80 = arith.constant 7 : i32
    %300 = arith.subi %c7_i32_80, %c3_i32 : i32
    %301 = arith.index_cast %300 : i32 to index
    %c0_81 = arith.constant 0 : index
    %c0_82 = arith.constant 0 : index
    %302 = vector.load %arg10[%301, %c0_81, %c0_82] : memref<8x8x32xf32, #tpu.memory_space<vmem>>, vector<1x8x32xf32>
    %303 = vector.shape_cast %302 : vector<1x8x32xf32> to vector<8x32xf32>
    %304 = vector.shape_cast %295 : vector<8x32xf32> to vector<1x8x32xf32>
    tpu.vector_store %arg10[%301, %c0_81, %c0_82], %304 {strides = array<i32>} : memref<8x8x32xf32, #tpu.memory_space<vmem>>, vector<1x8x32xf32>,
    %c4_i32 = arith.constant 4 : i32
    %305 = arith.index_cast %c4_i32 : i32 to index
    %c0_83 = arith.constant 0 : index
    %c0_84 = arith.constant 0 : index
    %306 = vector.load %arg1[%305, %c0_83, %c0_84] : memref<8x8x96xf32, #tpu.memory_space<vmem>>, vector<1x8x96xf32>
    %307 = vector.shape_cast %306 : vector<1x8x96xf32> to vector<8x96xf32>
    %cst_85 = arith.constant dense<0.000000e+00> : vector<8x96xf32>
    %308 = tpu.matmul %262, %3, %cst_85 {dimension_numbers = #tpu.dot_dimension_numbers<[1], [0], [0], [1], [0, 0, 1, 1], [], []>} : vector<8x32xf32>, vector<32x96xf32>, vector<8x96xf32> -> vector<8x96xf32>
    %309 = vector.broadcast %5 : vector<1x96xf32> to vector<8x96xf32>
    %310 = arith.addf %308, %309 : vector<8x96xf32>
    %311 = vector.extract_strided_slice %307 {offsets = [0, 0], sizes = [8, 32], strides = [1, 1]} : vector<8x96xf32> to vector<8x32xf32>
    %312 = vector.extract_strided_slice %310 {offsets = [0, 0], sizes = [8, 32], strides = [1, 1]} : vector<8x96xf32> to vector<8x32xf32>
    %313 = arith.addf %311, %312 : vector<8x32xf32>
    %314 = arith.negf %313 : vector<8x32xf32>
    %315 = math.exp %314 : vector<8x32xf32>
    %cst_86 = arith.constant 1.000000e+00 : f32
    %316 = vector.broadcast %cst_86 : f32 to vector<8x32xf32>
    %317 = arith.addf %316, %315 : vector<8x32xf32>
    %318 = arith.divf %316, %317 : vector<8x32xf32>
    %319 = vector.extract_strided_slice %307 {offsets = [0, 32], sizes = [8, 32], strides = [1, 1]} : vector<8x96xf32> to vector<8x32xf32>
    %320 = vector.extract_strided_slice %310 {offsets = [0, 32], sizes = [8, 32], strides = [1, 1]} : vector<8x96xf32> to vector<8x32xf32>
    %321 = arith.addf %319, %320 : vector<8x32xf32>
    %322 = arith.negf %321 : vector<8x32xf32>
    %323 = math.exp %322 : vector<8x32xf32>
    %cst_87 = arith.constant 1.000000e+00 : f32
    %324 = vector.broadcast %cst_87 : f32 to vector<8x32xf32>
    %325 = arith.addf %324, %323 : vector<8x32xf32>
    %326 = arith.divf %324, %325 : vector<8x32xf32>
    %327 = vector.extract_strided_slice %307 {offsets = [0, 64], sizes = [8, 32], strides = [1, 1]} : vector<8x96xf32> to vector<8x32xf32>
    %328 = vector.extract_strided_slice %310 {offsets = [0, 64], sizes = [8, 32], strides = [1, 1]} : vector<8x96xf32> to vector<8x32xf32>
    %329 = arith.mulf %318, %328 : vector<8x32xf32>
    %330 = arith.addf %327, %329 : vector<8x32xf32>
    %331 = math.tanh %330 : vector<8x32xf32>
    %cst_88 = arith.constant 1.000000e+00 : f32
    %332 = vector.broadcast %cst_88 : f32 to vector<8x32xf32>
    %333 = arith.subf %332, %326 : vector<8x32xf32>
    %334 = arith.mulf %333, %331 : vector<8x32xf32>
    %335 = arith.mulf %326, %262 : vector<8x32xf32>
    %336 = arith.addf %334, %335 : vector<8x32xf32>
    %c7_i32_89 = arith.constant 7 : i32
    %337 = arith.subi %c7_i32_89, %c4_i32 : i32
    %338 = arith.index_cast %337 : i32 to index
    %c0_90 = arith.constant 0 : index
    %c0_91 = arith.constant 0 : index
    %339 = vector.load %arg2[%338, %c0_90, %c0_91] : memref<8x8x96xf32, #tpu.memory_space<vmem>>, vector<1x8x96xf32>
    %340 = vector.shape_cast %339 : vector<1x8x96xf32> to vector<8x96xf32>
    %cst_92 = arith.constant dense<0.000000e+00> : vector<8x96xf32>
    %341 = tpu.matmul %295, %4, %cst_92 {dimension_numbers = #tpu.dot_dimension_numbers<[1], [0], [0], [1], [0, 0, 1, 1], [], []>} : vector<8x32xf32>, vector<32x96xf32>, vector<8x96xf32> -> vector<8x96xf32>
    %342 = vector.broadcast %6 : vector<1x96xf32> to vector<8x96xf32>
    %343 = arith.addf %341, %342 : vector<8x96xf32>
    %344 = vector.extract_strided_slice %340 {offsets = [0, 0], sizes = [8, 32], strides = [1, 1]} : vector<8x96xf32> to vector<8x32xf32>
    %345 = vector.extract_strided_slice %343 {offsets = [0, 0], sizes = [8, 32], strides = [1, 1]} : vector<8x96xf32> to vector<8x32xf32>
    %346 = arith.addf %344, %345 : vector<8x32xf32>
    %347 = arith.negf %346 : vector<8x32xf32>
    %348 = math.exp %347 : vector<8x32xf32>
    %cst_93 = arith.constant 1.000000e+00 : f32
    %349 = vector.broadcast %cst_93 : f32 to vector<8x32xf32>
    %350 = arith.addf %349, %348 : vector<8x32xf32>
    %351 = arith.divf %349, %350 : vector<8x32xf32>
    %352 = vector.extract_strided_slice %340 {offsets = [0, 32], sizes = [8, 32], strides = [1, 1]} : vector<8x96xf32> to vector<8x32xf32>
    %353 = vector.extract_strided_slice %343 {offsets = [0, 32], sizes = [8, 32], strides = [1, 1]} : vector<8x96xf32> to vector<8x32xf32>
    %354 = arith.addf %352, %353 : vector<8x32xf32>
    %355 = arith.negf %354 : vector<8x32xf32>
    %356 = math.exp %355 : vector<8x32xf32>
    %cst_94 = arith.constant 1.000000e+00 : f32
    %357 = vector.broadcast %cst_94 : f32 to vector<8x32xf32>
    %358 = arith.addf %357, %356 : vector<8x32xf32>
    %359 = arith.divf %357, %358 : vector<8x32xf32>
    %360 = vector.extract_strided_slice %340 {offsets = [0, 64], sizes = [8, 32], strides = [1, 1]} : vector<8x96xf32> to vector<8x32xf32>
    %361 = vector.extract_strided_slice %343 {offsets = [0, 64], sizes = [8, 32], strides = [1, 1]} : vector<8x96xf32> to vector<8x32xf32>
    %362 = arith.mulf %351, %361 : vector<8x32xf32>
    %363 = arith.addf %360, %362 : vector<8x32xf32>
    %364 = math.tanh %363 : vector<8x32xf32>
    %cst_95 = arith.constant 1.000000e+00 : f32
    %365 = vector.broadcast %cst_95 : f32 to vector<8x32xf32>
    %366 = arith.subf %365, %359 : vector<8x32xf32>
    %367 = arith.mulf %366, %364 : vector<8x32xf32>
    %368 = arith.mulf %359, %295 : vector<8x32xf32>
    %369 = arith.addf %367, %368 : vector<8x32xf32>
    %370 = arith.index_cast %c4_i32 : i32 to index
    %c0_96 = arith.constant 0 : index
    %c0_97 = arith.constant 0 : index
    %371 = vector.load %arg9[%370, %c0_96, %c0_97] : memref<8x8x32xf32, #tpu.memory_space<vmem>>, vector<1x8x32xf32>
    %372 = vector.shape_cast %371 : vector<1x8x32xf32> to vector<8x32xf32>
    %373 = vector.shape_cast %336 : vector<8x32xf32> to vector<1x8x32xf32>
    tpu.vector_store %arg9[%370, %c0_96, %c0_97], %373 {strides = array<i32>} : memref<8x8x32xf32, #tpu.memory_space<vmem>>, vector<1x8x32xf32>,
    %c7_i32_98 = arith.constant 7 : i32
    %374 = arith.subi %c7_i32_98, %c4_i32 : i32
    %375 = arith.index_cast %374 : i32 to index
    %c0_99 = arith.constant 0 : index
    %c0_100 = arith.constant 0 : index
    %376 = vector.load %arg10[%375, %c0_99, %c0_100] : memref<8x8x32xf32, #tpu.memory_space<vmem>>, vector<1x8x32xf32>
    %377 = vector.shape_cast %376 : vector<1x8x32xf32> to vector<8x32xf32>
    %378 = vector.shape_cast %369 : vector<8x32xf32> to vector<1x8x32xf32>
    tpu.vector_store %arg10[%375, %c0_99, %c0_100], %378 {strides = array<i32>} : memref<8x8x32xf32, #tpu.memory_space<vmem>>, vector<1x8x32xf32>,
    %c5_i32 = arith.constant 5 : i32
    %379 = arith.index_cast %c5_i32 : i32 to index
    %c0_101 = arith.constant 0 : index
    %c0_102 = arith.constant 0 : index
    %380 = vector.load %arg1[%379, %c0_101, %c0_102] : memref<8x8x96xf32, #tpu.memory_space<vmem>>, vector<1x8x96xf32>
    %381 = vector.shape_cast %380 : vector<1x8x96xf32> to vector<8x96xf32>
    %cst_103 = arith.constant dense<0.000000e+00> : vector<8x96xf32>
    %382 = tpu.matmul %336, %3, %cst_103 {dimension_numbers = #tpu.dot_dimension_numbers<[1], [0], [0], [1], [0, 0, 1, 1], [], []>} : vector<8x32xf32>, vector<32x96xf32>, vector<8x96xf32> -> vector<8x96xf32>
    %383 = vector.broadcast %5 : vector<1x96xf32> to vector<8x96xf32>
    %384 = arith.addf %382, %383 : vector<8x96xf32>
    %385 = vector.extract_strided_slice %381 {offsets = [0, 0], sizes = [8, 32], strides = [1, 1]} : vector<8x96xf32> to vector<8x32xf32>
    %386 = vector.extract_strided_slice %384 {offsets = [0, 0], sizes = [8, 32], strides = [1, 1]} : vector<8x96xf32> to vector<8x32xf32>
    %387 = arith.addf %385, %386 : vector<8x32xf32>
    %388 = arith.negf %387 : vector<8x32xf32>
    %389 = math.exp %388 : vector<8x32xf32>
    %cst_104 = arith.constant 1.000000e+00 : f32
    %390 = vector.broadcast %cst_104 : f32 to vector<8x32xf32>
    %391 = arith.addf %390, %389 : vector<8x32xf32>
    %392 = arith.divf %390, %391 : vector<8x32xf32>
    %393 = vector.extract_strided_slice %381 {offsets = [0, 32], sizes = [8, 32], strides = [1, 1]} : vector<8x96xf32> to vector<8x32xf32>
    %394 = vector.extract_strided_slice %384 {offsets = [0, 32], sizes = [8, 32], strides = [1, 1]} : vector<8x96xf32> to vector<8x32xf32>
    %395 = arith.addf %393, %394 : vector<8x32xf32>
    %396 = arith.negf %395 : vector<8x32xf32>
    %397 = math.exp %396 : vector<8x32xf32>
    %cst_105 = arith.constant 1.000000e+00 : f32
    %398 = vector.broadcast %cst_105 : f32 to vector<8x32xf32>
    %399 = arith.addf %398, %397 : vector<8x32xf32>
    %400 = arith.divf %398, %399 : vector<8x32xf32>
    %401 = vector.extract_strided_slice %381 {offsets = [0, 64], sizes = [8, 32], strides = [1, 1]} : vector<8x96xf32> to vector<8x32xf32>
    %402 = vector.extract_strided_slice %384 {offsets = [0, 64], sizes = [8, 32], strides = [1, 1]} : vector<8x96xf32> to vector<8x32xf32>
    %403 = arith.mulf %392, %402 : vector<8x32xf32>
    %404 = arith.addf %401, %403 : vector<8x32xf32>
    %405 = math.tanh %404 : vector<8x32xf32>
    %cst_106 = arith.constant 1.000000e+00 : f32
    %406 = vector.broadcast %cst_106 : f32 to vector<8x32xf32>
    %407 = arith.subf %406, %400 : vector<8x32xf32>
    %408 = arith.mulf %407, %405 : vector<8x32xf32>
    %409 = arith.mulf %400, %336 : vector<8x32xf32>
    %410 = arith.addf %408, %409 : vector<8x32xf32>
    %c7_i32_107 = arith.constant 7 : i32
    %411 = arith.subi %c7_i32_107, %c5_i32 : i32
    %412 = arith.index_cast %411 : i32 to index
    %c0_108 = arith.constant 0 : index
    %c0_109 = arith.constant 0 : index
    %413 = vector.load %arg2[%412, %c0_108, %c0_109] : memref<8x8x96xf32, #tpu.memory_space<vmem>>, vector<1x8x96xf32>
    %414 = vector.shape_cast %413 : vector<1x8x96xf32> to vector<8x96xf32>
    %cst_110 = arith.constant dense<0.000000e+00> : vector<8x96xf32>
    %415 = tpu.matmul %369, %4, %cst_110 {dimension_numbers = #tpu.dot_dimension_numbers<[1], [0], [0], [1], [0, 0, 1, 1], [], []>} : vector<8x32xf32>, vector<32x96xf32>, vector<8x96xf32> -> vector<8x96xf32>
    %416 = vector.broadcast %6 : vector<1x96xf32> to vector<8x96xf32>
    %417 = arith.addf %415, %416 : vector<8x96xf32>
    %418 = vector.extract_strided_slice %414 {offsets = [0, 0], sizes = [8, 32], strides = [1, 1]} : vector<8x96xf32> to vector<8x32xf32>
    %419 = vector.extract_strided_slice %417 {offsets = [0, 0], sizes = [8, 32], strides = [1, 1]} : vector<8x96xf32> to vector<8x32xf32>
    %420 = arith.addf %418, %419 : vector<8x32xf32>
    %421 = arith.negf %420 : vector<8x32xf32>
    %422 = math.exp %421 : vector<8x32xf32>
    %cst_111 = arith.constant 1.000000e+00 : f32
    %423 = vector.broadcast %cst_111 : f32 to vector<8x32xf32>
    %424 = arith.addf %423, %422 : vector<8x32xf32>
    %425 = arith.divf %423, %424 : vector<8x32xf32>
    %426 = vector.extract_strided_slice %414 {offsets = [0, 32], sizes = [8, 32], strides = [1, 1]} : vector<8x96xf32> to vector<8x32xf32>
    %427 = vector.extract_strided_slice %417 {offsets = [0, 32], sizes = [8, 32], strides = [1, 1]} : vector<8x96xf32> to vector<8x32xf32>
    %428 = arith.addf %426, %427 : vector<8x32xf32>
    %429 = arith.negf %428 : vector<8x32xf32>
    %430 = math.exp %429 : vector<8x32xf32>
    %cst_112 = arith.constant 1.000000e+00 : f32
    %431 = vector.broadcast %cst_112 : f32 to vector<8x32xf32>
    %432 = arith.addf %431, %430 : vector<8x32xf32>
    %433 = arith.divf %431, %432 : vector<8x32xf32>
    %434 = vector.extract_strided_slice %414 {offsets = [0, 64], sizes = [8, 32], strides = [1, 1]} : vector<8x96xf32> to vector<8x32xf32>
    %435 = vector.extract_strided_slice %417 {offsets = [0, 64], sizes = [8, 32], strides = [1, 1]} : vector<8x96xf32> to vector<8x32xf32>
    %436 = arith.mulf %425, %435 : vector<8x32xf32>
    %437 = arith.addf %434, %436 : vector<8x32xf32>
    %438 = math.tanh %437 : vector<8x32xf32>
    %cst_113 = arith.constant 1.000000e+00 : f32
    %439 = vector.broadcast %cst_113 : f32 to vector<8x32xf32>
    %440 = arith.subf %439, %433 : vector<8x32xf32>
    %441 = arith.mulf %440, %438 : vector<8x32xf32>
    %442 = arith.mulf %433, %369 : vector<8x32xf32>
    %443 = arith.addf %441, %442 : vector<8x32xf32>
    %444 = arith.index_cast %c5_i32 : i32 to index
    %c0_114 = arith.constant 0 : index
    %c0_115 = arith.constant 0 : index
    %445 = vector.load %arg9[%444, %c0_114, %c0_115] : memref<8x8x32xf32, #tpu.memory_space<vmem>>, vector<1x8x32xf32>
    %446 = vector.shape_cast %445 : vector<1x8x32xf32> to vector<8x32xf32>
    %447 = vector.shape_cast %410 : vector<8x32xf32> to vector<1x8x32xf32>
    tpu.vector_store %arg9[%444, %c0_114, %c0_115], %447 {strides = array<i32>} : memref<8x8x32xf32, #tpu.memory_space<vmem>>, vector<1x8x32xf32>,
    %c7_i32_116 = arith.constant 7 : i32
    %448 = arith.subi %c7_i32_116, %c5_i32 : i32
    %449 = arith.index_cast %448 : i32 to index
    %c0_117 = arith.constant 0 : index
    %c0_118 = arith.constant 0 : index
    %450 = vector.load %arg10[%449, %c0_117, %c0_118] : memref<8x8x32xf32, #tpu.memory_space<vmem>>, vector<1x8x32xf32>
    %451 = vector.shape_cast %450 : vector<1x8x32xf32> to vector<8x32xf32>
    %452 = vector.shape_cast %443 : vector<8x32xf32> to vector<1x8x32xf32>
    tpu.vector_store %arg10[%449, %c0_117, %c0_118], %452 {strides = array<i32>} : memref<8x8x32xf32, #tpu.memory_space<vmem>>, vector<1x8x32xf32>,
    %c6_i32 = arith.constant 6 : i32
    %453 = arith.index_cast %c6_i32 : i32 to index
    %c0_119 = arith.constant 0 : index
    %c0_120 = arith.constant 0 : index
    %454 = vector.load %arg1[%453, %c0_119, %c0_120] : memref<8x8x96xf32, #tpu.memory_space<vmem>>, vector<1x8x96xf32>
    %455 = vector.shape_cast %454 : vector<1x8x96xf32> to vector<8x96xf32>
    %cst_121 = arith.constant dense<0.000000e+00> : vector<8x96xf32>
    %456 = tpu.matmul %410, %3, %cst_121 {dimension_numbers = #tpu.dot_dimension_numbers<[1], [0], [0], [1], [0, 0, 1, 1], [], []>} : vector<8x32xf32>, vector<32x96xf32>, vector<8x96xf32> -> vector<8x96xf32>
    %457 = vector.broadcast %5 : vector<1x96xf32> to vector<8x96xf32>
    %458 = arith.addf %456, %457 : vector<8x96xf32>
    %459 = vector.extract_strided_slice %455 {offsets = [0, 0], sizes = [8, 32], strides = [1, 1]} : vector<8x96xf32> to vector<8x32xf32>
    %460 = vector.extract_strided_slice %458 {offsets = [0, 0], sizes = [8, 32], strides = [1, 1]} : vector<8x96xf32> to vector<8x32xf32>
    %461 = arith.addf %459, %460 : vector<8x32xf32>
    %462 = arith.negf %461 : vector<8x32xf32>
    %463 = math.exp %462 : vector<8x32xf32>
    %cst_122 = arith.constant 1.000000e+00 : f32
    %464 = vector.broadcast %cst_122 : f32 to vector<8x32xf32>
    %465 = arith.addf %464, %463 : vector<8x32xf32>
    %466 = arith.divf %464, %465 : vector<8x32xf32>
    %467 = vector.extract_strided_slice %455 {offsets = [0, 32], sizes = [8, 32], strides = [1, 1]} : vector<8x96xf32> to vector<8x32xf32>
    %468 = vector.extract_strided_slice %458 {offsets = [0, 32], sizes = [8, 32], strides = [1, 1]} : vector<8x96xf32> to vector<8x32xf32>
    %469 = arith.addf %467, %468 : vector<8x32xf32>
    %470 = arith.negf %469 : vector<8x32xf32>
    %471 = math.exp %470 : vector<8x32xf32>
    %cst_123 = arith.constant 1.000000e+00 : f32
    %472 = vector.broadcast %cst_123 : f32 to vector<8x32xf32>
    %473 = arith.addf %472, %471 : vector<8x32xf32>
    %474 = arith.divf %472, %473 : vector<8x32xf32>
    %475 = vector.extract_strided_slice %455 {offsets = [0, 64], sizes = [8, 32], strides = [1, 1]} : vector<8x96xf32> to vector<8x32xf32>
    %476 = vector.extract_strided_slice %458 {offsets = [0, 64], sizes = [8, 32], strides = [1, 1]} : vector<8x96xf32> to vector<8x32xf32>
    %477 = arith.mulf %466, %476 : vector<8x32xf32>
    %478 = arith.addf %475, %477 : vector<8x32xf32>
    %479 = math.tanh %478 : vector<8x32xf32>
    %cst_124 = arith.constant 1.000000e+00 : f32
    %480 = vector.broadcast %cst_124 : f32 to vector<8x32xf32>
    %481 = arith.subf %480, %474 : vector<8x32xf32>
    %482 = arith.mulf %481, %479 : vector<8x32xf32>
    %483 = arith.mulf %474, %410 : vector<8x32xf32>
    %484 = arith.addf %482, %483 : vector<8x32xf32>
    %c7_i32_125 = arith.constant 7 : i32
    %485 = arith.subi %c7_i32_125, %c6_i32 : i32
    %486 = arith.index_cast %485 : i32 to index
    %c0_126 = arith.constant 0 : index
    %c0_127 = arith.constant 0 : index
    %487 = vector.load %arg2[%486, %c0_126, %c0_127] : memref<8x8x96xf32, #tpu.memory_space<vmem>>, vector<1x8x96xf32>
    %488 = vector.shape_cast %487 : vector<1x8x96xf32> to vector<8x96xf32>
    %cst_128 = arith.constant dense<0.000000e+00> : vector<8x96xf32>
    %489 = tpu.matmul %443, %4, %cst_128 {dimension_numbers = #tpu.dot_dimension_numbers<[1], [0], [0], [1], [0, 0, 1, 1], [], []>} : vector<8x32xf32>, vector<32x96xf32>, vector<8x96xf32> -> vector<8x96xf32>
    %490 = vector.broadcast %6 : vector<1x96xf32> to vector<8x96xf32>
    %491 = arith.addf %489, %490 : vector<8x96xf32>
    %492 = vector.extract_strided_slice %488 {offsets = [0, 0], sizes = [8, 32], strides = [1, 1]} : vector<8x96xf32> to vector<8x32xf32>
    %493 = vector.extract_strided_slice %491 {offsets = [0, 0], sizes = [8, 32], strides = [1, 1]} : vector<8x96xf32> to vector<8x32xf32>
    %494 = arith.addf %492, %493 : vector<8x32xf32>
    %495 = arith.negf %494 : vector<8x32xf32>
    %496 = math.exp %495 : vector<8x32xf32>
    %cst_129 = arith.constant 1.000000e+00 : f32
    %497 = vector.broadcast %cst_129 : f32 to vector<8x32xf32>
    %498 = arith.addf %497, %496 : vector<8x32xf32>
    %499 = arith.divf %497, %498 : vector<8x32xf32>
    %500 = vector.extract_strided_slice %488 {offsets = [0, 32], sizes = [8, 32], strides = [1, 1]} : vector<8x96xf32> to vector<8x32xf32>
    %501 = vector.extract_strided_slice %491 {offsets = [0, 32], sizes = [8, 32], strides = [1, 1]} : vector<8x96xf32> to vector<8x32xf32>
    %502 = arith.addf %500, %501 : vector<8x32xf32>
    %503 = arith.negf %502 : vector<8x32xf32>
    %504 = math.exp %503 : vector<8x32xf32>
    %cst_130 = arith.constant 1.000000e+00 : f32
    %505 = vector.broadcast %cst_130 : f32 to vector<8x32xf32>
    %506 = arith.addf %505, %504 : vector<8x32xf32>
    %507 = arith.divf %505, %506 : vector<8x32xf32>
    %508 = vector.extract_strided_slice %488 {offsets = [0, 64], sizes = [8, 32], strides = [1, 1]} : vector<8x96xf32> to vector<8x32xf32>
    %509 = vector.extract_strided_slice %491 {offsets = [0, 64], sizes = [8, 32], strides = [1, 1]} : vector<8x96xf32> to vector<8x32xf32>
    %510 = arith.mulf %499, %509 : vector<8x32xf32>
    %511 = arith.addf %508, %510 : vector<8x32xf32>
    %512 = math.tanh %511 : vector<8x32xf32>
    %cst_131 = arith.constant 1.000000e+00 : f32
    %513 = vector.broadcast %cst_131 : f32 to vector<8x32xf32>
    %514 = arith.subf %513, %507 : vector<8x32xf32>
    %515 = arith.mulf %514, %512 : vector<8x32xf32>
    %516 = arith.mulf %507, %443 : vector<8x32xf32>
    %517 = arith.addf %515, %516 : vector<8x32xf32>
    %518 = arith.index_cast %c6_i32 : i32 to index
    %c0_132 = arith.constant 0 : index
    %c0_133 = arith.constant 0 : index
    %519 = vector.load %arg9[%518, %c0_132, %c0_133] : memref<8x8x32xf32, #tpu.memory_space<vmem>>, vector<1x8x32xf32>
    %520 = vector.shape_cast %519 : vector<1x8x32xf32> to vector<8x32xf32>
    %521 = vector.shape_cast %484 : vector<8x32xf32> to vector<1x8x32xf32>
    tpu.vector_store %arg9[%518, %c0_132, %c0_133], %521 {strides = array<i32>} : memref<8x8x32xf32, #tpu.memory_space<vmem>>, vector<1x8x32xf32>,
    %c7_i32_134 = arith.constant 7 : i32
    %522 = arith.subi %c7_i32_134, %c6_i32 : i32
    %523 = arith.index_cast %522 : i32 to index
    %c0_135 = arith.constant 0 : index
    %c0_136 = arith.constant 0 : index
    %524 = vector.load %arg10[%523, %c0_135, %c0_136] : memref<8x8x32xf32, #tpu.memory_space<vmem>>, vector<1x8x32xf32>
    %525 = vector.shape_cast %524 : vector<1x8x32xf32> to vector<8x32xf32>
    %526 = vector.shape_cast %517 : vector<8x32xf32> to vector<1x8x32xf32>
    tpu.vector_store %arg10[%523, %c0_135, %c0_136], %526 {strides = array<i32>} : memref<8x8x32xf32, #tpu.memory_space<vmem>>, vector<1x8x32xf32>,
    %c7_i32_137 = arith.constant 7 : i32
    %527 = arith.index_cast %c7_i32_137 : i32 to index
    %c0_138 = arith.constant 0 : index
    %c0_139 = arith.constant 0 : index
    %528 = vector.load %arg1[%527, %c0_138, %c0_139] : memref<8x8x96xf32, #tpu.memory_space<vmem>>, vector<1x8x96xf32>
    %529 = vector.shape_cast %528 : vector<1x8x96xf32> to vector<8x96xf32>
    %cst_140 = arith.constant dense<0.000000e+00> : vector<8x96xf32>
    %530 = tpu.matmul %484, %3, %cst_140 {dimension_numbers = #tpu.dot_dimension_numbers<[1], [0], [0], [1], [0, 0, 1, 1], [], []>} : vector<8x32xf32>, vector<32x96xf32>, vector<8x96xf32> -> vector<8x96xf32>
    %531 = vector.broadcast %5 : vector<1x96xf32> to vector<8x96xf32>
    %532 = arith.addf %530, %531 : vector<8x96xf32>
    %533 = vector.extract_strided_slice %529 {offsets = [0, 0], sizes = [8, 32], strides = [1, 1]} : vector<8x96xf32> to vector<8x32xf32>
    %534 = vector.extract_strided_slice %532 {offsets = [0, 0], sizes = [8, 32], strides = [1, 1]} : vector<8x96xf32> to vector<8x32xf32>
    %535 = arith.addf %533, %534 : vector<8x32xf32>
    %536 = arith.negf %535 : vector<8x32xf32>
    %537 = math.exp %536 : vector<8x32xf32>
    %cst_141 = arith.constant 1.000000e+00 : f32
    %538 = vector.broadcast %cst_141 : f32 to vector<8x32xf32>
    %539 = arith.addf %538, %537 : vector<8x32xf32>
    %540 = arith.divf %538, %539 : vector<8x32xf32>
    %541 = vector.extract_strided_slice %529 {offsets = [0, 32], sizes = [8, 32], strides = [1, 1]} : vector<8x96xf32> to vector<8x32xf32>
    %542 = vector.extract_strided_slice %532 {offsets = [0, 32], sizes = [8, 32], strides = [1, 1]} : vector<8x96xf32> to vector<8x32xf32>
    %543 = arith.addf %541, %542 : vector<8x32xf32>
    %544 = arith.negf %543 : vector<8x32xf32>
    %545 = math.exp %544 : vector<8x32xf32>
    %cst_142 = arith.constant 1.000000e+00 : f32
    %546 = vector.broadcast %cst_142 : f32 to vector<8x32xf32>
    %547 = arith.addf %546, %545 : vector<8x32xf32>
    %548 = arith.divf %546, %547 : vector<8x32xf32>
    %549 = vector.extract_strided_slice %529 {offsets = [0, 64], sizes = [8, 32], strides = [1, 1]} : vector<8x96xf32> to vector<8x32xf32>
    %550 = vector.extract_strided_slice %532 {offsets = [0, 64], sizes = [8, 32], strides = [1, 1]} : vector<8x96xf32> to vector<8x32xf32>
    %551 = arith.mulf %540, %550 : vector<8x32xf32>
    %552 = arith.addf %549, %551 : vector<8x32xf32>
    %553 = math.tanh %552 : vector<8x32xf32>
    %cst_143 = arith.constant 1.000000e+00 : f32
    %554 = vector.broadcast %cst_143 : f32 to vector<8x32xf32>
    %555 = arith.subf %554, %548 : vector<8x32xf32>
    %556 = arith.mulf %555, %553 : vector<8x32xf32>
    %557 = arith.mulf %548, %484 : vector<8x32xf32>
    %558 = arith.addf %556, %557 : vector<8x32xf32>
    %c7_i32_144 = arith.constant 7 : i32
    %559 = arith.subi %c7_i32_144, %c7_i32_137 : i32
    %560 = arith.index_cast %559 : i32 to index
    %c0_145 = arith.constant 0 : index
    %c0_146 = arith.constant 0 : index
    %561 = vector.load %arg2[%560, %c0_145, %c0_146] : memref<8x8x96xf32, #tpu.memory_space<vmem>>, vector<1x8x96xf32>
    %562 = vector.shape_cast %561 : vector<1x8x96xf32> to vector<8x96xf32>
    %cst_147 = arith.constant dense<0.000000e+00> : vector<8x96xf32>
    %563 = tpu.matmul %517, %4, %cst_147 {dimension_numbers = #tpu.dot_dimension_numbers<[1], [0], [0], [1], [0, 0, 1, 1], [], []>} : vector<8x32xf32>, vector<32x96xf32>, vector<8x96xf32> -> vector<8x96xf32>
    %564 = vector.broadcast %6 : vector<1x96xf32> to vector<8x96xf32>
    %565 = arith.addf %563, %564 : vector<8x96xf32>
    %566 = vector.extract_strided_slice %562 {offsets = [0, 0], sizes = [8, 32], strides = [1, 1]} : vector<8x96xf32> to vector<8x32xf32>
    %567 = vector.extract_strided_slice %565 {offsets = [0, 0], sizes = [8, 32], strides = [1, 1]} : vector<8x96xf32> to vector<8x32xf32>
    %568 = arith.addf %566, %567 : vector<8x32xf32>
    %569 = arith.negf %568 : vector<8x32xf32>
    %570 = math.exp %569 : vector<8x32xf32>
    %cst_148 = arith.constant 1.000000e+00 : f32
    %571 = vector.broadcast %cst_148 : f32 to vector<8x32xf32>
    %572 = arith.addf %571, %570 : vector<8x32xf32>
    %573 = arith.divf %571, %572 : vector<8x32xf32>
    %574 = vector.extract_strided_slice %562 {offsets = [0, 32], sizes = [8, 32], strides = [1, 1]} : vector<8x96xf32> to vector<8x32xf32>
    %575 = vector.extract_strided_slice %565 {offsets = [0, 32], sizes = [8, 32], strides = [1, 1]} : vector<8x96xf32> to vector<8x32xf32>
    %576 = arith.addf %574, %575 : vector<8x32xf32>
    %577 = arith.negf %576 : vector<8x32xf32>
    %578 = math.exp %577 : vector<8x32xf32>
    %cst_149 = arith.constant 1.000000e+00 : f32
    %579 = vector.broadcast %cst_149 : f32 to vector<8x32xf32>
    %580 = arith.addf %579, %578 : vector<8x32xf32>
    %581 = arith.divf %579, %580 : vector<8x32xf32>
    %582 = vector.extract_strided_slice %562 {offsets = [0, 64], sizes = [8, 32], strides = [1, 1]} : vector<8x96xf32> to vector<8x32xf32>
    %583 = vector.extract_strided_slice %565 {offsets = [0, 64], sizes = [8, 32], strides = [1, 1]} : vector<8x96xf32> to vector<8x32xf32>
    %584 = arith.mulf %573, %583 : vector<8x32xf32>
    %585 = arith.addf %582, %584 : vector<8x32xf32>
    %586 = math.tanh %585 : vector<8x32xf32>
    %cst_150 = arith.constant 1.000000e+00 : f32
    %587 = vector.broadcast %cst_150 : f32 to vector<8x32xf32>
    %588 = arith.subf %587, %581 : vector<8x32xf32>
    %589 = arith.mulf %588, %586 : vector<8x32xf32>
    %590 = arith.mulf %581, %517 : vector<8x32xf32>
    %591 = arith.addf %589, %590 : vector<8x32xf32>
    %592 = arith.index_cast %c7_i32_137 : i32 to index
    %c0_151 = arith.constant 0 : index
    %c0_152 = arith.constant 0 : index
    %593 = vector.load %arg9[%592, %c0_151, %c0_152] : memref<8x8x32xf32, #tpu.memory_space<vmem>>, vector<1x8x32xf32>
    %594 = vector.shape_cast %593 : vector<1x8x32xf32> to vector<8x32xf32>
    %595 = vector.shape_cast %558 : vector<8x32xf32> to vector<1x8x32xf32>
    tpu.vector_store %arg9[%592, %c0_151, %c0_152], %595 {strides = array<i32>} : memref<8x8x32xf32, #tpu.memory_space<vmem>>, vector<1x8x32xf32>,
    %c7_i32_153 = arith.constant 7 : i32
    %596 = arith.subi %c7_i32_153, %c7_i32_137 : i32
    %597 = arith.index_cast %596 : i32 to index
    %c0_154 = arith.constant 0 : index
    %c0_155 = arith.constant 0 : index
    %598 = vector.load %arg10[%597, %c0_154, %c0_155] : memref<8x8x32xf32, #tpu.memory_space<vmem>>, vector<1x8x32xf32>
    %599 = vector.shape_cast %598 : vector<1x8x32xf32> to vector<8x32xf32>
    %600 = vector.shape_cast %591 : vector<8x32xf32> to vector<1x8x32xf32>
    tpu.vector_store %arg10[%597, %c0_154, %c0_155], %600 {strides = array<i32>} : memref<8x8x32xf32, #tpu.memory_space<vmem>>, vector<1x8x32xf32>,
    %c8_i32 = arith.constant 8 : i32
    %c0_156 = arith.constant 0 : index
    %c0_157 = arith.constant 0 : index
    %601 = vector.load %arg12[%c0_156, %c0_157] : memref<8x32xf32, #tpu.memory_space<vmem>>, vector<8x32xf32>
    tpu.vector_store %arg12[%c0_156, %c0_157], %558 {strides = array<i32>} : memref<8x32xf32, #tpu.memory_space<vmem>>, vector<8x32xf32>,
    %c0_158 = arith.constant 0 : index
    %c0_159 = arith.constant 0 : index
    %602 = vector.load %arg13[%c0_158, %c0_159] : memref<8x32xf32, #tpu.memory_space<vmem>>, vector<8x32xf32>
    tpu.vector_store %arg13[%c0_158, %c0_159], %591 {strides = array<i32>} : memref<8x32xf32, #tpu.memory_space<vmem>>, vector<8x32xf32>,
    %c0_i32_160 = arith.constant 0 : i32
    %603 = arith.cmpi eq, %arg0, %c0_i32_160 : i32
    %604 = arith.extui %603 : i1 to i32
    %c0_i32_161 = arith.constant 0 : i32
    %605 = arith.cmpi ne, %604, %c0_i32_161 : i32
    scf.if %605 {
      %c0_162 = arith.constant 0 : index
      %c0_163 = arith.constant 0 : index
      %606 = vector.load %arg7[%c0_162, %c0_163] : memref<64x32xf32, #tpu.memory_space<vmem>>, vector<64x32xf32>
      %c0_164 = arith.constant 0 : index
      %c0_165 = arith.constant 0 : index
      %607 = vector.load %arg12[%c0_164, %c0_165] : memref<8x32xf32, #tpu.memory_space<vmem>>, vector<8x32xf32>
      %c0_166 = arith.constant 0 : index
      %c0_167 = arith.constant 0 : index
      %608 = vector.load %arg13[%c0_166, %c0_167] : memref<8x32xf32, #tpu.memory_space<vmem>>, vector<8x32xf32>
      %609 = vector.extract_strided_slice %606 {offsets = [0, 0], sizes = [32, 32], strides = [1, 1]} : vector<64x32xf32> to vector<32x32xf32>
      %cst_168 = arith.constant dense<0.000000e+00> : vector<8x32xf32>
      %610 = tpu.matmul %607, %609, %cst_168 {dimension_numbers = #tpu.dot_dimension_numbers<[1], [0], [0], [1], [0, 0, 1, 1], [], []>} : vector<8x32xf32>, vector<32x32xf32>, vector<8x32xf32> -> vector<8x32xf32>
      %611 = vector.extract_strided_slice %606 {offsets = [32, 0], sizes = [32, 32], strides = [1, 1]} : vector<64x32xf32> to vector<32x32xf32>
      %cst_169 = arith.constant dense<0.000000e+00> : vector<8x32xf32>
      %612 = tpu.matmul %608, %611, %cst_169 {dimension_numbers = #tpu.dot_dimension_numbers<[1], [0], [0], [1], [0, 0, 1, 1], [], []>} : vector<8x32xf32>, vector<32x32xf32>, vector<8x32xf32> -> vector<8x32xf32>
      %613 = arith.addf %610, %612 : vector<8x32xf32>
      %c0_170 = arith.constant 0 : index
      %c0_171 = arith.constant 0 : index
      %614 = vector.load %arg8[%c0_170, %c0_171] : memref<1x32xf32, #tpu.memory_space<vmem>>, vector<1x32xf32>
      %615 = vector.broadcast %614 : vector<1x32xf32> to vector<8x32xf32>
      %616 = arith.addf %613, %615 : vector<8x32xf32>
      %617 = math.tanh %616 : vector<8x32xf32>
      %c0_172 = arith.constant 0 : index
      %c0_173 = arith.constant 0 : index
      %618 = vector.load %arg11[%c0_172, %c0_173] : memref<8x32xf32, #tpu.memory_space<vmem>>, vector<8x32xf32>
      tpu.vector_store %arg11[%c0_172, %c0_173], %617 {strides = array<i32>} : memref<8x32xf32, #tpu.memory_space<vmem>>, vector<8x32xf32>,
    } else {
    }
    return
  }
  func.func @transform_0(%arg0: i32) -> (i32, i32, i32) {
    %c0_i32 = arith.constant 0 : i32
    %c0_i32_0 = arith.constant 0 : i32
    %c0_i32_1 = arith.constant 0 : i32
    return %arg0, %c0_i32, %c0_i32_0 : i32, i32, i32
  }
  func.func @transform_1(%arg0: i32) -> (i32, i32, i32) {
    %c0_i32 = arith.constant 0 : i32
    %0 = arith.subi %c0_i32, %arg0 : i32
    %c0_i32_0 = arith.constant 0 : i32
    %c0_i32_1 = arith.constant 0 : i32
    %c0_i32_2 = arith.constant 0 : i32
    return %0, %c0_i32_0, %c0_i32_1 : i32, i32, i32
  }
  func.func @transform_2(%arg0: i32) -> (i32, i32) {
    %c0_i32 = arith.constant 0 : i32
    %c0_i32_0 = arith.constant 0 : i32
    %c0_i32_1 = arith.constant 0 : i32
    return %c0_i32, %c0_i32_0 : i32, i32
  }
  func.func @transform_3(%arg0: i32) -> (i32, i32) {
    %c0_i32 = arith.constant 0 : i32
    %c0_i32_0 = arith.constant 0 : i32
    %c0_i32_1 = arith.constant 0 : i32
    return %c0_i32, %c0_i32_0 : i32, i32
  }
  func.func @transform_4(%arg0: i32) -> (i32, i32) {
    %c0_i32 = arith.constant 0 : i32
    %c0_i32_0 = arith.constant 0 : i32
    %c0_i32_1 = arith.constant 0 : i32
    return %c0_i32, %c0_i32_0 : i32, i32
  }
  func.func @transform_5(%arg0: i32) -> (i32, i32) {
    %c0_i32 = arith.constant 0 : i32
    %c0_i32_0 = arith.constant 0 : i32
    %c0_i32_1 = arith.constant 0 : i32
    return %c0_i32, %c0_i32_0 : i32, i32
  }
  func.func @transform_6(%arg0: i32) -> (i32, i32) {
    %c0_i32 = arith.constant 0 : i32
    %c0_i32_0 = arith.constant 0 : i32
    %c0_i32_1 = arith.constant 0 : i32
    return %c0_i32, %c0_i32_0 : i32, i32
  }
  func.func @transform_7(%arg0: i32) -> (i32, i32) {
    %c0_i32 = arith.constant 0 : i32
    %c0_i32_0 = arith.constant 0 : i32
    %c0_i32_1 = arith.constant 0 : i32
    return %c0_i32, %c0_i32_0 : i32, i32
  }
  func.func @transform_8(%arg0: i32) -> (i32, i32, i32) {
    %c0_i32 = arith.constant 0 : i32
    %c0_i32_0 = arith.constant 0 : i32
    %c0_i32_1 = arith.constant 0 : i32
    return %arg0, %c0_i32, %c0_i32_0 : i32, i32, i32
  }
  func.func @transform_9(%arg0: i32) -> (i32, i32, i32) {
    %c0_i32 = arith.constant 0 : i32
    %0 = arith.subi %c0_i32, %arg0 : i32
    %c0_i32_0 = arith.constant 0 : i32
    %c0_i32_1 = arith.constant 0 : i32
    %c0_i32_2 = arith.constant 0 : i32
    return %0, %c0_i32_0, %c0_i32_1 : i32, i32, i32
  }
  func.func @transform_10(%arg0: i32) -> (i32, i32) {
    %c0_i32 = arith.constant 0 : i32
    %c0_i32_0 = arith.constant 0 : i32
    %c0_i32_1 = arith.constant 0 : i32
    return %c0_i32, %c0_i32_0 : i32, i32
  }
}

</mosaic_0001>

<llo_original>
// kernel: encoder_forward.2
$region0: #{encoder_forward.2}
  #allocation0 [shape = 'u32[]', space=smem, size = 0x4, offset = 0x4, fixed_abs, tag = 'smem constant byte address 0x4 - core index']
  #allocation1 [shape = 'u32[144,128]{1,0:T(1,128)}', space=vmem, size = 0x12000, scoped, tag = 'internal scratch']
  %s0 = inlined_call_operand.vmem [shape: f32[64,32], index: 0, kind: input, shape index: {}]
  %s1 = inlined_call_operand.vmem [shape: f32[32,96], index: 1, kind: input, shape index: {}]
  %s2 = inlined_call_operand.vmem [shape: f32[32,96], index: 2, kind: input, shape index: {}]
  %s3 = inlined_call_operand.vmem [shape: f32[1,96], index: 3, kind: input, shape index: {}]
  %s4 = inlined_call_operand.vmem [shape: f32[1,96], index: 4, kind: input, shape index: {}]
  %s5 = inlined_call_operand.vmem [shape: f32[64,96], index: 5, kind: output, shape index: {0}]
  %s6 = inlined_call_operand.vmem [shape: f32[64,96], index: 6, kind: output, shape index: {1}]
  %7 = xla_tuple %s5, %s6
  %s8 = sld [smem:[#allocation0]]
  $region38: #{encoder_forward.2} parent=0
    _
  %s10 = ssub.s32 1, %s8
  %s11 = scalar_select 0, %s10, %s8
  // Predicated region
  $region2: #{encoder_forward.2} parent=0 // pred_check
    _
  $region3: #{encoder_forward.2} parent=0 // pred_check_branch
    %13 = sbr.rel (0) target = $region5
  $region4: #{encoder_forward.2} parent=0 // pred_region
    _
  $region5: #{encoder_forward.2} parent=0 // pred_fallthru
    _
  // Predicated region
  $region6: #{encoder_forward.2} parent=0 // pred_check
    _
  $region7: #{encoder_forward.2} parent=0 // pred_check_branch
    %15 = sbr.rel (0) target = $region9
  $region8: #{encoder_forward.2} parent=0 // pred_region
    _
  $region9: #{encoder_forward.2} parent=0 // pred_fallthru
    _
  // Predicated region
  $region10: #{encoder_forward.2} parent=0 // pred_check
    _
  $region11: #{encoder_forward.2} parent=0 // pred_check_branch
    %17 = sbr.rel (0) target = $region13
  $region12: #{encoder_forward.2} parent=0 // pred_region
    _
  $region13: #{encoder_forward.2} parent=0 // pred_fallthru
    _
  // Predicated region
  $region14: #{encoder_forward.2} parent=0 // pred_check
    _
  $region15: #{encoder_forward.2} parent=0 // pred_check_branch
    %19 = sbr.rel (0) target = $region17
  $region16: #{encoder_forward.2} parent=0 // pred_region
    _
  $region17: #{encoder_forward.2} parent=0 // pred_fallthru
    _
  // Predicated region
  $region18: #{encoder_forward.2} parent=0 // pred_check
    _
  $region19: #{encoder_forward.2} parent=0 // pred_check_branch
    %21 = sbr.rel (0) target = $region21
  $region20: #{encoder_forward.2} parent=0 // pred_region
    _
  $region21: #{encoder_forward.2} parent=0 // pred_fallthru
    _
  %v22 = vld [vmem:[%s0] sm:$0xff]
  %v23 = vld [vmem:[%s0 + $0x8] sm:$0xff]
  %v24 = vld [vmem:[%s0 + $0x10] sm:$0xff]
  %v25 = vld [vmem:[%s0 + $0x18] sm:$0xff]
  %v26 = vld [vmem:[%s0 + $0x20] sm:$0xff]
  %v27 = vld [vmem:[%s0 + $0x28] sm:$0xff]
  %v28 = vld [vmem:[%s0 + $0x30] sm:$0xff]
  %v29 = vld [vmem:[%s0 + $0x38] sm:$0xff]
  %v30 = vld [vmem:[%s1] sm:$0xff]
  %v31 = vld [vmem:[%s1 + $0x8] sm:$0xff]
  %v32 = vld [vmem:[%s1 + $0x10] sm:$0xff]
  %v33 = vld [vmem:[%s1 + $0x18] sm:$0xff]
  %v34 = vld [vmem:[%s3] sm:$0x1]
  %v36 = vlaneseq
  %v37 = vshrl.u32 %v36, 7
  %v38 = vsub.s32 0, %v37
  %v39 = vrot.slane %v34, %v38
  %vm41 = vcmask 261120
  %v43 = vsel %vm41, %v22, 0
  %v46 = vsel %vm41, %v23, 0
  %v49 = vsel %vm41, %v24, 0
  %v52 = vsel %vm41, %v25, 0
  %v55 = vsel %vm41, %v26, 0
  %v58 = vsel %vm41, %v27, 0
  %v61 = vsel %vm41, %v28, 0
  %v64 = vsel %vm41, %v29, 0
  %66 = vmatprep.subr.mxu0 0.0
  %67 = vmatpush1.msra.mxu0 %v30
  %68 = vmatprep.subr.mxu0 0.0
  %69 = vmatpush1.msra.mxu0 %v31
  %70 = vmatprep.subr.mxu0 0.0
  %71 = vmatpush1.msra.mxu0 %v32
  %72 = vmatprep.subr.mxu0 0.0
  %73 = vmatpush1.msra.mxu0 %v33
  %74 = vmatprep.subr.mxu0 0.0
  %75 = vmatpush1.msra.mxu0 0.0
  %76 = vmatprep.subr.mxu0 0.0
  %77 = vmatpush1.msra.mxu0 0.0
  %78 = vmatprep.subr.mxu0 0.0
  %79 = vmatpush1.msra.mxu0 0.0
  %80 = vmatprep.subr.mxu0 0.0
  %81 = vmatpush1.msra.mxu0 0.0
  %82 = vmatprep.subr.mxu0 0.0
  %83 = vmatpush1.msra.mxu0 0.0
  %84 = vmatprep.subr.mxu0 0.0
  %85 = vmatpush1.msra.mxu0 0.0
  %86 = vmatprep.subr.mxu0 0.0
  %87 = vmatpush1.msra.mxu0 0.0
  %88 = vmatprep.subr.mxu0 0.0
  %89 = vmatpush1.msra.mxu0 0.0
  %90 = vmatprep.subr.mxu0 0.0
  %91 = vmatpush1.msra.mxu0 0.0
  %92 = vmatprep.subr.mxu0 0.0
  %93 = vmatpush1.msra.mxu0 0.0
  %94 = vmatprep.subr.mxu0 0.0
  %95 = vmatpush1.msra.mxu0 0.0
  %96 = vmatprep.subr.mxu0 0.0
  %97 = vmatpush1.msra.mxu0 0.0
  %98 = vmatprep.subr.mxu0 0.0
  %99 = vmatpush1.msra.mxu0 0.0
  %100 = vmatprep.subr.mxu0 0.0
  %101 = vmatpush1.msra.mxu0 0.0
  %102 = vmatprep.subr.mxu0 0.0
  %103 = vmatpush1.msra.mxu0 0.0
  %104 = vmatprep.subr.mxu0 0.0
  %105 = vmatpush1.msra.mxu0 0.0
  %106 = vmatprep.subr.mxu0 0.0
  %107 = vmatpush1.msra.mxu0 0.0
  %108 = vmatprep.subr.mxu0 0.0
  %109 = vmatpush1.msra.mxu0 0.0
  %110 = vmatprep.subr.mxu0 0.0
  %111 = vmatpush1.msra.mxu0 0.0
  %112 = vmatprep.subr.mxu0 0.0
  %113 = vmatpush1.msra.mxu0 0.0
  %114 = vmatprep.subr.mxu0 0.0
  %115 = vmatpush1.msra.mxu0 0.0
  %116 = vmatprep.subr.mxu0 0.0
  %117 = vmatpush1.msra.mxu0 0.0
  %118 = vmatprep.subr.mxu0 0.0
  %119 = vmatpush1.msra.mxu0 0.0
  %120 = vmatprep.subr.mxu0 0.0
  %121 = vmatpush1.msra.mxu0 0.0
  %122 = vmatprep.subr.mxu0 0.0
  %123 = vmatpush1.msra.mxu0 0.0
  %124 = vmatprep.subr.mxu0 0.0
  %125 = vmatpush1.msra.mxu0 0.0
  %126 = vmatprep.subr.mxu0 0.0
  %127 = vmatpush1.msra.mxu0 0.0
  %128 = vmatprep.subr.mxu0 0.0
  %129 = vmatpush1.msra.mxu0 0.0
  %130 = vmatprep.mubr.f32.mxu0 0.0
  %131 = vmatmul.mubr.f32.gmra.mrb[0].mxu0 %v43
  %v132 = vpop.f32.mrb[0].mxu0
  %v133 = vadd.f32 %v39, %v132
  %v134 = vpop.f32.mrb[0].mxu0
  %135 = vmatprep.mubr.f32.mxu0 0.0
  %136 = vmatmul.mubr.f32.gmra.mrb[0].mxu0 %v46
  %v137 = vpop.f32.mrb[0].mxu0
  %v138 = vadd.f32 %v39, %v137
  %v139 = vpop.f32.mrb[0].mxu0
  %140 = vmatprep.mubr.f32.mxu0 0.0
  %141 = vmatmul.mubr.f32.gmra.mrb[0].mxu0 %v49
  %v142 = vpop.f32.mrb[0].mxu0
  %v143 = vadd.f32 %v39, %v142
  %v144 = vpop.f32.mrb[0].mxu0
  %145 = vmatprep.mubr.f32.mxu0 0.0
  %146 = vmatmul.mubr.f32.gmra.mrb[0].mxu0 %v52
  %v147 = vpop.f32.mrb[0].mxu0
  %v148 = vadd.f32 %v39, %v147
  %v149 = vpop.f32.mrb[0].mxu0
  %150 = vmatprep.mubr.f32.mxu0 0.0
  %151 = vmatmul.mubr.f32.gmra.mrb[0].mxu0 %v55
  %v152 = vpop.f32.mrb[0].mxu0
  %v153 = vadd.f32 %v39, %v152
  %v154 = vpop.f32.mrb[0].mxu0
  %155 = vmatprep.mubr.f32.mxu0 0.0
  %156 = vmatmul.mubr.f32.gmra.mrb[0].mxu0 %v58
  %v157 = vpop.f32.mrb[0].mxu0
  %v158 = vadd.f32 %v39, %v157
  %v159 = vpop.f32.mrb[0].mxu0
  %160 = vmatprep.mubr.f32.mxu0 0.0
  %161 = vmatmul.mubr.f32.gmra.mrb[0].mxu0 %v61
  %v162 = vpop.f32.mrb[0].mxu0
  %v163 = vadd.f32 %v39, %v162
  %v164 = vpop.f32.mrb[0].mxu0
  %165 = vmatprep.mubr.f32.mxu0 0.0
  %166 = vmatmul.mubr.f32.gmra.mrb[0].mxu0 %v64
  %v167 = vpop.f32.mrb[0].mxu0
  %v168 = vadd.f32 %v39, %v167
  %v169 = vpop.f32.mrb[0].mxu0
  %170 = vdwg.mxu0
  %vm171 = vcmask 785408
  %172 = vst.msk [vmem:[%s5] sm:$0xff] %vm171, %v133
  %173 = vst.msk [vmem:[%s5 + $0x8] sm:$0xff] %vm171, %v138
  %174 = vst.msk [vmem:[%s5 + $0x10] sm:$0xff] %vm171, %v143
  %175 = vst.msk [vmem:[%s5 + $0x18] sm:$0xff] %vm171, %v148
  %176 = vst.msk [vmem:[%s5 + $0x20] sm:$0xff] %vm171, %v153
  %177 = vst.msk [vmem:[%s5 + $0x28] sm:$0xff] %vm171, %v158
  %178 = vst.msk [vmem:[%s5 + $0x30] sm:$0xff] %vm171, %v163
  %179 = vst.msk [vmem:[%s5 + $0x38] sm:$0xff] %vm171, %v168
  %v180 = vld [vmem:[%s2] sm:$0xff]
  %v181 = vld [vmem:[%s2 + $0x8] sm:$0xff]
  %v182 = vld [vmem:[%s2 + $0x10] sm:$0xff]
  %v183 = vld [vmem:[%s2 + $0x18] sm:$0xff]
  %v184 = vld [vmem:[%s4] sm:$0x1]
  %v186 = vlaneseq
  %v187 = vshrl.u32 %v186, 7
  %v188 = vsub.s32 0, %v187
  %v189 = vrot.slane %v184, %v188
  %191 = vmatprep.subr.mxu0 0.0
  %192 = vmatpush1.msra.mxu0 %v180
  %193 = vmatprep.subr.mxu0 0.0
  %194 = vmatpush1.msra.mxu0 %v181
  %195 = vmatprep.subr.mxu0 0.0
  %196 = vmatpush1.msra.mxu0 %v182
  %197 = vmatprep.subr.mxu0 0.0
  %198 = vmatpush1.msra.mxu0 %v183
  %199 = vmatprep.subr.mxu0 0.0
  %200 = vmatpush1.msra.mxu0 0.0
  %201 = vmatprep.subr.mxu0 0.0
  %202 = vmatpush1.msra.mxu0 0.0
  %203 = vmatprep.subr.mxu0 0.0
  %204 = vmatpush1.msra.mxu0 0.0
  %205 = vmatprep.subr.mxu0 0.0
  %206 = vmatpush1.msra.mxu0 0.0
  %207 = vmatprep.subr.mxu0 0.0
  %208 = vmatpush1.msra.mxu0 0.0
  %209 = vmatprep.subr.mxu0 0.0
  %210 = vmatpush1.msra.mxu0 0.0
  %211 = vmatprep.subr.mxu0 0.0
  %212 = vmatpush1.msra.mxu0 0.0
  %213 = vmatprep.subr.mxu0 0.0
  %214 = vmatpush1.msra.mxu0 0.0
  %215 = vmatprep.subr.mxu0 0.0
  %216 = vmatpush1.msra.mxu0 0.0
  %217 = vmatprep.subr.mxu0 0.0
  %218 = vmatpush1.msra.mxu0 0.0
  %219 = vmatprep.subr.mxu0 0.0
  %220 = vmatpush1.msra.mxu0 0.0
  %221 = vmatprep.subr.mxu0 0.0
  %222 = vmatpush1.msra.mxu0 0.0
  %223 = vmatprep.subr.mxu0 0.0
  %224 = vmatpush1.msra.mxu0 0.0
  %225 = vmatprep.subr.mxu0 0.0
  %226 = vmatpush1.msra.mxu0 0.0
  %227 = vmatprep.subr.mxu0 0.0
  %228 = vmatpush1.msra.mxu0 0.0
  %229 = vmatprep.subr.mxu0 0.0
  %230 = vmatpush1.msra.mxu0 0.0
  %231 = vmatprep.subr.mxu0 0.0
  %232 = vmatpush1.msra.mxu0 0.0
  %233 = vmatprep.subr.mxu0 0.0
  %234 = vmatpush1.msra.mxu0 0.0
  %235 = vmatprep.subr.mxu0 0.0
  %236 = vmatpush1.msra.mxu0 0.0
  %237 = vmatprep.subr.mxu0 0.0
  %238 = vmatpush1.msra.mxu0 0.0
  %239 = vmatprep.subr.mxu0 0.0
  %240 = vmatpush1.msra.mxu0 0.0
  %241 = vmatprep.subr.mxu0 0.0
  %242 = vmatpush1.msra.mxu0 0.0
  %243 = vmatprep.subr.mxu0 0.0
  %244 = vmatpush1.msra.mxu0 0.0
  %245 = vmatprep.subr.mxu0 0.0
  %246 = vmatpush1.msra.mxu0 0.0
  %247 = vmatprep.subr.mxu0 0.0
  %248 = vmatpush1.msra.mxu0 0.0
  %249 = vmatprep.subr.mxu0 0.0
  %250 = vmatpush1.msra.mxu0 0.0
  %251 = vmatprep.subr.mxu0 0.0
  %252 = vmatpush1.msra.mxu0 0.0
  %253 = vmatprep.subr.mxu0 0.0
  %254 = vmatpush1.msra.mxu0 0.0
  %255 = vmatprep.mubr.f32.mxu0 0.0
  %256 = vmatmul.mubr.f32.gmra.mrb[0].mxu0 %v43
  %v257 = vpop.f32.mrb[0].mxu0
  %v258 = vadd.f32 %v189, %v257
  %v259 = vpop.f32.mrb[0].mxu0
  %260 = vmatprep.mubr.f32.mxu0 0.0
  %261 = vmatmul.mubr.f32.gmra.mrb[0].mxu0 %v46
  %v262 = vpop.f32.mrb[0].mxu0
  %v263 = vadd.f32 %v189, %v262
  %v264 = vpop.f32.mrb[0].mxu0
  %265 = vmatprep.mubr.f32.mxu0 0.0
  %266 = vmatmul.mubr.f32.gmra.mrb[0].mxu0 %v49
  %v267 = vpop.f32.mrb[0].mxu0
  %v268 = vadd.f32 %v189, %v267
  %v269 = vpop.f32.mrb[0].mxu0
  %270 = vmatprep.mubr.f32.mxu0 0.0
  %271 = vmatmul.mubr.f32.gmra.mrb[0].mxu0 %v52
  %v272 = vpop.f32.mrb[0].mxu0
  %v273 = vadd.f32 %v189, %v272
  %v274 = vpop.f32.mrb[0].mxu0
  %275 = vmatprep.mubr.f32.mxu0 0.0
  %276 = vmatmul.mubr.f32.gmra.mrb[0].mxu0 %v55
  %v277 = vpop.f32.mrb[0].mxu0
  %v278 = vadd.f32 %v189, %v277
  %v279 = vpop.f32.mrb[0].mxu0
  %280 = vmatprep.mubr.f32.mxu0 0.0
  %281 = vmatmul.mubr.f32.gmra.mrb[0].mxu0 %v58
  %v282 = vpop.f32.mrb[0].mxu0
  %v283 = vadd.f32 %v189, %v282
  %v284 = vpop.f32.mrb[0].mxu0
  %285 = vmatprep.mubr.f32.mxu0 0.0
  %286 = vmatmul.mubr.f32.gmra.mrb[0].mxu0 %v61
  %v287 = vpop.f32.mrb[0].mxu0
  %v288 = vadd.f32 %v189, %v287
  %v289 = vpop.f32.mrb[0].mxu0
  %290 = vmatprep.mubr.f32.mxu0 0.0
  %291 = vmatmul.mubr.f32.gmra.mrb[0].mxu0 %v64
  %v292 = vpop.f32.mrb[0].mxu0
  %v293 = vadd.f32 %v189, %v292
  %v294 = vpop.f32.mrb[0].mxu0
  %295 = vdwg.mxu0
  %296 = vst.msk [vmem:[%s6] sm:$0xff] %vm171, %v258
  %297 = vst.msk [vmem:[%s6 + $0x8] sm:$0xff] %vm171, %v263
  %298 = vst.msk [vmem:[%s6 + $0x10] sm:$0xff] %vm171, %v268
  %299 = vst.msk [vmem:[%s6 + $0x18] sm:$0xff] %vm171, %v273
  %300 = vst.msk [vmem:[%s6 + $0x20] sm:$0xff] %vm171, %v278
  %301 = vst.msk [vmem:[%s6 + $0x28] sm:$0xff] %vm171, %v283
  %302 = vst.msk [vmem:[%s6 + $0x30] sm:$0xff] %vm171, %v288
  %303 = vst.msk [vmem:[%s6 + $0x38] sm:$0xff] %vm171, %v293
  // Predicated region
  $region22: #{encoder_forward.2} parent=0 // pred_check
    _
  $region23: #{encoder_forward.2} parent=0 // pred_check_branch
    %305 = sbr.rel (0) target = $region25
  $region24: #{encoder_forward.2} parent=0 // pred_region
    _
  $region25: #{encoder_forward.2} parent=0 // pred_fallthru
    _
  // Predicated region
  $region26: #{encoder_forward.2} parent=0 // pred_check
    _
  $region27: #{encoder_forward.2} parent=0 // pred_check_branch
    %307 = sbr.rel (0) target = $region29
  $region28: #{encoder_forward.2} parent=0 // pred_region
    _
  $region29: #{encoder_forward.2} parent=0 // pred_fallthru
    _
  // Predicated region
  $region30: #{encoder_forward.2} parent=0 // pred_check
    _
  $region31: #{encoder_forward.2} parent=0 // pred_check_branch
    %309 = sbr.rel (0) target = $region33
  $region32: #{encoder_forward.2} parent=0 // pred_region
    _
  $region33: #{encoder_forward.2} parent=0 // pred_fallthru
    _
  // Predicated region
  $region34: #{encoder_forward.2} parent=0 // pred_check
    _
  $region35: #{encoder_forward.2} parent=0 // pred_check_branch
    %311 = sbr.rel (0) target = $region37
  $region36: #{encoder_forward.2} parent=0 // pred_region
    _
  $region37: #{encoder_forward.2} parent=0 // pred_fallthru
    _

// kernel: encoder_forward.3
$region0: #{encoder_forward.3}
  #allocation0 [shape = 'u32[]', space=smem, size = 0x4, offset = 0x4, fixed_abs, tag = 'smem constant byte address 0x4 - core index']
  #allocation1 [shape = 'u32[144,128]{1,0:T(1,128)}', space=vmem, size = 0x12000, scoped, tag = 'internal scratch']
  #allocation2 [shape = 'f32[8,32]{1,0:T(8,128)}', space=vmem, size = 0x1000, scoped, tag = 'scratch operand']
  #allocation3 [shape = 'f32[8,32]{1,0:T(8,128)}', space=vmem, size = 0x1000, scoped, tag = 'scratch operand']
  %s0 = inlined_call_operand.vmem [shape: f32[8,8,96], index: 0, kind: input, shape index: {}]
  %s1 = inlined_call_operand.vmem [shape: f32[8,8,96], index: 1, kind: input, shape index: {}]
  %s2 = inlined_call_operand.vmem [shape: f32[32,96], index: 2, kind: input, shape index: {}]
  %s3 = inlined_call_operand.vmem [shape: f32[32,96], index: 3, kind: input, shape index: {}]
  %s4 = inlined_call_operand.vmem [shape: f32[1,96], index: 4, kind: input, shape index: {}]
  %s5 = inlined_call_operand.vmem [shape: f32[1,96], index: 5, kind: input, shape index: {}]
  %s6 = inlined_call_operand.vmem [shape: f32[64,32], index: 6, kind: input, shape index: {}]
  %s7 = inlined_call_operand.vmem [shape: f32[1,32], index: 7, kind: input, shape index: {}]
  %s8 = inlined_call_operand.vmem [shape: f32[8,8,32], index: 8, kind: output, shape index: {0}]
  %s9 = inlined_call_operand.vmem [shape: f32[8,8,32], index: 9, kind: output, shape index: {1}]
  %s10 = inlined_call_operand.vmem [shape: f32[8,32], index: 10, kind: output, shape index: {2}]
  %11 = xla_tuple %s8, %s9, %s10
  %s12 = sld [smem:[#allocation0]]
  $region66: #{encoder_forward.3} parent=0
    _
  %s14 = ssub.s32 1, %s12
  %s15 = scalar_select 0, %s14, %s12
  // Predicated region
  $region2: #{encoder_forward.3} parent=0 // pred_check
    _
  $region3: #{encoder_forward.3} parent=0 // pred_check_branch
    %17 = sbr.rel (0) target = $region5
  $region4: #{encoder_forward.3} parent=0 // pred_region
    _
  $region5: #{encoder_forward.3} parent=0 // pred_fallthru
    _
  // Predicated region
  $region6: #{encoder_forward.3} parent=0 // pred_check
    _
  $region7: #{encoder_forward.3} parent=0 // pred_check_branch
    %19 = sbr.rel (0) target = $region9
  $region8: #{encoder_forward.3} parent=0 // pred_region
    %s20 = ssub.s32 0, 0
    %s21 = smul.u32 8, %s20
    %p22 = scmp.lt.s32.totalorder %s21, 7
    %s23 = scalar_select %p22, %s21, 7
    %s24 = smul.addr %s23, 8
    %s25 = scalar_lea.vmem %s1, %s24
    %s26 = ssub.s32 0, 0
    %s27 = smul.u32 8, %s26
  $region9: #{encoder_forward.3} parent=0 // pred_fallthru
    _
  // Predicated region
  $region10: #{encoder_forward.3} parent=0 // pred_check
    _
  $region11: #{encoder_forward.3} parent=0 // pred_check_branch
    %29 = sbr.rel (0) target = $region13
  $region12: #{encoder_forward.3} parent=0 // pred_region
    _
  $region13: #{encoder_forward.3} parent=0 // pred_fallthru
    _
  // Predicated region
  $region14: #{encoder_forward.3} parent=0 // pred_check
    _
  $region15: #{encoder_forward.3} parent=0 // pred_check_branch
    %31 = sbr.rel (0) target = $region17
  $region16: #{encoder_forward.3} parent=0 // pred_region
    _
  $region17: #{encoder_forward.3} parent=0 // pred_fallthru
    _
  // Predicated region
  $region18: #{encoder_forward.3} parent=0 // pred_check
    _
  $region19: #{encoder_forward.3} parent=0 // pred_check_branch
    %33 = sbr.rel (0) target = $region21
  $region20: #{encoder_forward.3} parent=0 // pred_region
    _
  $region21: #{encoder_forward.3} parent=0 // pred_fallthru
    _
  // Predicated region
  $region22: #{encoder_forward.3} parent=0 // pred_check
    _
  $region23: #{encoder_forward.3} parent=0 // pred_check_branch
    %35 = sbr.rel (0) target = $region25
  $region24: #{encoder_forward.3} parent=0 // pred_region
    _
  $region25: #{encoder_forward.3} parent=0 // pred_fallthru
    _
  // Predicated region
  $region26: #{encoder_forward.3} parent=0 // pred_check
    _
  $region27: #{encoder_forward.3} parent=0 // pred_check_branch
    %37 = sbr.rel (0) target = $region29
  $region28: #{encoder_forward.3} parent=0 // pred_region
    _
  $region29: #{encoder_forward.3} parent=0 // pred_fallthru
    _
  // Predicated region
  $region30: #{encoder_forward.3} parent=0 // pred_check
    _
  $region31: #{encoder_forward.3} parent=0 // pred_check_branch
    %39 = sbr.rel (0) target = $region33
  $region32: #{encoder_forward.3} parent=0 // pred_region
    _
  $region33: #{encoder_forward.3} parent=0 // pred_fallthru
    _
  %s40 = ssub.s32 0, 0
  %s41 = smul.u32 8, %s40
  %p42 = scmp.lt.s32.totalorder %s41, 7
  %s43 = scalar_select %p42, %s41, 7
  %s44 = smul.addr %s43, 8
  %s45 = scalar_lea.vmem %s1, %s44
  %s46 = ssub.s32 0, 0
  %s47 = smul.u32 8, %s46
  %p48 = scmp.lt.s32.totalorder %s47, 7
  %s49 = scalar_select %p48, %s47, 7
  %s50 = smul.addr %s49, 8
  %s51 = scalar_lea.vmem %s9, %s50
  %s52 = ssub.s32 0, 0
  %s53 = smul.u32 8, %s52
  %p54 = scmp.lt.s32.totalorder %s53, 7
  %s55 = scalar_select %p54, %s53, 7
  %s56 = smul.addr %s55, 8
  %s57 = scalar_lea.vmem %s1, %s56
  %s58 = ssub.s32 0, 0
  %s59 = smul.u32 8, %s58
  %s60 = ssub.s32 0, 0
  %s61 = smul.u32 8, %s60
  %p62 = scmp.lt.s32.totalorder %s61, 7
  %s63 = scalar_select %p62, %s61, 7
  %s64 = smul.addr %s63, 8
  %s65 = scalar_lea.vmem %s9, %s64
  %s66 = ssub.s32 0, 0
  %s67 = smul.u32 8, %s66
  %p68 = scmp.eq.s32.totalorder 0, 0
  // Predicated region
  $region34: #{encoder_forward.3} parent=0 // pred_check
    %p69 = pneg %p68
  $region35: #{encoder_forward.3} parent=0 // pred_check_branch
    %71 = sbr.rel (%p69) target = $region37
  $region36: #{encoder_forward.3} parent=0 // pred_region
    %vm72 = vcmask 261120
    %73 = vst.msk [vmem:[#allocation2] sm:$0xff] %vm72, 0.0
    %74 = vst.msk [vmem:[#allocation3] sm:$0xff] %vm72, 0.0
  $region37: #{encoder_forward.3} parent=0 // pred_fallthru
    _
  %v75 = vld [vmem:[%s2] sm:$0xff]
  %v76 = vld [vmem:[%s2 + $0x8] sm:$0xff]
  %v77 = vld [vmem:[%s2 + $0x10] sm:$0xff]
  %v78 = vld [vmem:[%s2 + $0x18] sm:$0xff]
  %v79 = vld [vmem:[%s3] sm:$0xff]
  %v80 = vld [vmem:[%s3 + $0x8] sm:$0xff]
  %v81 = vld [vmem:[%s3 + $0x10] sm:$0xff]
  %v82 = vld [vmem:[%s3 + $0x18] sm:$0xff]
  %v83 = vld [vmem:[%s4] sm:$0x1]
  %v84 = vld [vmem:[%s5] sm:$0x1]
  %v85 = vld [vmem:[#allocation2] sm:$0xff]
  %v86 = vld [vmem:[#allocation3] sm:$0xff]
  %v87 = vld [vmem:[%s0] sm:$0xff]
  %v89 = vlaneseq
  %v90 = vshrl.u32 %v89, 7
  %v91 = vsub.s32 0, %v90
  %v92 = vrot.slane %v83, %v91
  %vm94 = vcmask 261120
  %v96 = vsel %vm94, %v85, 0
  %98 = vmatprep.subr.mxu0 0.0
  %99 = vmatpush1.msra.mxu0 %v75
  %100 = vmatprep.subr.mxu0 0.0
  %101 = vmatpush1.msra.mxu0 %v76
  %102 = vmatprep.subr.mxu0 0.0
  %103 = vmatpush1.msra.mxu0 %v77
  %104 = vmatprep.subr.mxu0 0.0
  %105 = vmatpush1.msra.mxu0 %v78
  %106 = vmatprep.subr.mxu0 0.0
  %107 = vmatpush1.msra.mxu0 0.0
  %108 = vmatprep.subr.mxu0 0.0
  %109 = vmatpush1.msra.mxu0 0.0
  %110 = vmatprep.subr.mxu0 0.0
  %111 = vmatpush1.msra.mxu0 0.0
  %112 = vmatprep.subr.mxu0 0.0
  %113 = vmatpush1.msra.mxu0 0.0
  %114 = vmatprep.subr.mxu0 0.0
  %115 = vmatpush1.msra.mxu0 0.0
  %116 = vmatprep.subr.mxu0 0.0
  %117 = vmatpush1.msra.mxu0 0.0
  %118 = vmatprep.subr.mxu0 0.0
  %119 = vmatpush1.msra.mxu0 0.0
  %120 = vmatprep.subr.mxu0 0.0
  %121 = vmatpush1.msra.mxu0 0.0
  %122 = vmatprep.subr.mxu0 0.0
  %123 = vmatpush1.msra.mxu0 0.0
  %124 = vmatprep.subr.mxu0 0.0
  %125 = vmatpush1.msra.mxu0 0.0
  %126 = vmatprep.subr.mxu0 0.0
  %127 = vmatpush1.msra.mxu0 0.0
  %128 = vmatprep.subr.mxu0 0.0
  %129 = vmatpush1.msra.mxu0 0.0
  %130 = vmatprep.subr.mxu0 0.0
  %131 = vmatpush1.msra.mxu0 0.0
  %132 = vmatprep.subr.mxu0 0.0
  %133 = vmatpush1.msra.mxu0 0.0
  %134 = vmatprep.subr.mxu0 0.0
  %135 = vmatpush1.msra.mxu0 0.0
  %136 = vmatprep.subr.mxu0 0.0
  %137 = vmatpush1.msra.mxu0 0.0
  %138 = vmatprep.subr.mxu0 0.0
  %139 = vmatpush1.msra.mxu0 0.0
  %140 = vmatprep.subr.mxu0 0.0
  %141 = vmatpush1.msra.mxu0 0.0
  %142 = vmatprep.subr.mxu0 0.0
  %143 = vmatpush1.msra.mxu0 0.0
  %144 = vmatprep.subr.mxu0 0.0
  %145 = vmatpush1.msra.mxu0 0.0
  %146 = vmatprep.subr.mxu0 0.0
  %147 = vmatpush1.msra.mxu0 0.0
  %148 = vmatprep.subr.mxu0 0.0
  %149 = vmatpush1.msra.mxu0 0.0
  %150 = vmatprep.subr.mxu0 0.0
  %151 = vmatpush1.msra.mxu0 0.0
  %152 = vmatprep.subr.mxu0 0.0
  %153 = vmatpush1.msra.mxu0 0.0
  %154 = vmatprep.subr.mxu0 0.0
  %155 = vmatpush1.msra.mxu0 0.0
  %156 = vmatprep.subr.mxu0 0.0
  %157 = vmatpush1.msra.mxu0 0.0
  %158 = vmatprep.subr.mxu0 0.0
  %159 = vmatpush1.msra.mxu0 0.0
  %160 = vmatprep.subr.mxu0 0.0
  %161 = vmatpush1.msra.mxu0 0.0
  %162 = vmatprep.mubr.f32.mxu0 0.0
  %163 = vmatmul.mubr.f32.gmra.mrb[0].mxu0 %v96
  %v164 = vpop.f32.mrb[0].mxu0
  %v165 = vadd.f32 %v92, %v164
  %v166 = vpop.f32.mrb[0].mxu0
  %167 = vdwg.mxu0
  %v168 = vadd.f32 %v87, %v165
  %v169 = vxor.u32 %v168, 2147483648
  %v170 = vmul.f32 %v169, 1.442695
  %v171 = vpow.pop %v170
  %v172 = vadd.f32 %v171, 1.0
  %v173 = vrcp.pop %v172
  %v174 = vmul.f32 1.0, %v173
  %176 = vrot.lane.b32.xlu0 %v165, 64
  %v177 = vpop.permute.xlu0 %176
  %v179 = vmul.f32 %v174, %v177
  %181 = vrot.lane.b32.xlu0 %v179, 64
  %v182 = vpop.permute.xlu0 %181
  %v184 = vadd.f32 %v87, %v182
  %v185 = vtanh.pop %v184
  %v186 = vsub.f32 1.0, %v174
  %188 = vrot.lane.b32.xlu0 %v185, 96
  %v189 = vpop.permute.xlu0 %188
  %v191 = vmul.f32 %v186, %v189
  %192 = vrot.lane.b32.xlu0 %v85, 32
  %v193 = vpop.permute.xlu0 %192
  %v195 = vmul.f32 %v174, %v193
  %v196 = vadd.f32 %v191, %v195
  %s197 = scalar_lea.vmem %s57, 56
  %v198 = vld [vmem:[%s197] sm:$0xff]
  %v200 = vlaneseq
  %v201 = vshrl.u32 %v200, 7
  %v202 = vsub.s32 0, %v201
  %v203 = vrot.slane %v84, %v202
  %v206 = vsel %vm94, %v86, 0
  %208 = vmatprep.subr.mxu0 0.0
  %209 = vmatpush1.msra.mxu0 %v79
  %210 = vmatprep.subr.mxu0 0.0
  %211 = vmatpush1.msra.mxu0 %v80
  %212 = vmatprep.subr.mxu0 0.0
  %213 = vmatpush1.msra.mxu0 %v81
  %214 = vmatprep.subr.mxu0 0.0
  %215 = vmatpush1.msra.mxu0 %v82
  %216 = vmatprep.subr.mxu0 0.0
  %217 = vmatpush1.msra.mxu0 0.0
  %218 = vmatprep.subr.mxu0 0.0
  %219 = vmatpush1.msra.mxu0 0.0
  %220 = vmatprep.subr.mxu0 0.0
  %221 = vmatpush1.msra.mxu0 0.0
  %222 = vmatprep.subr.mxu0 0.0
  %223 = vmatpush1.msra.mxu0 0.0
  %224 = vmatprep.subr.mxu0 0.0
  %225 = vmatpush1.msra.mxu0 0.0
  %226 = vmatprep.subr.mxu0 0.0
  %227 = vmatpush1.msra.mxu0 0.0
  %228 = vmatprep.subr.mxu0 0.0
  %229 = vmatpush1.msra.mxu0 0.0
  %230 = vmatprep.subr.mxu0 0.0
  %231 = vmatpush1.msra.mxu0 0.0
  %232 = vmatprep.subr.mxu0 0.0
  %233 = vmatpush1.msra.mxu0 0.0
  %234 = vmatprep.subr.mxu0 0.0
  %235 = vmatpush1.msra.mxu0 0.0
  %236 = vmatprep.subr.mxu0 0.0
  %237 = vmatpush1.msra.mxu0 0.0
  %238 = vmatprep.subr.mxu0 0.0
  %239 = vmatpush1.msra.mxu0 0.0
  %240 = vmatprep.subr.mxu0 0.0
  %241 = vmatpush1.msra.mxu0 0.0
  %242 = vmatprep.subr.mxu0 0.0
  %243 = vmatpush1.msra.mxu0 0.0
  %244 = vmatprep.subr.mxu0 0.0
  %245 = vmatpush1.msra.mxu0 0.0
  %246 = vmatprep.subr.mxu0 0.0
  %247 = vmatpush1.msra.mxu0 0.0
  %248 = vmatprep.subr.mxu0 0.0
  %249 = vmatpush1.msra.mxu0 0.0
  %250 = vmatprep.subr.mxu0 0.0
  %251 = vmatpush1.msra.mxu0 0.0
  %252 = vmatprep.subr.mxu0 0.0
  %253 = vmatpush1.msra.mxu0 0.0
  %254 = vmatprep.subr.mxu0 0.0
  %255 = vmatpush1.msra.mxu0 0.0
  %256 = vmatprep.subr.mxu0 0.0
  %257 = vmatpush1.msra.mxu0 0.0
  %258 = vmatprep.subr.mxu0 0.0
  %259 = vmatpush1.msra.mxu0 0.0
  %260 = vmatprep.subr.mxu0 0.0
  %261 = vmatpush1.msra.mxu0 0.0
  %262 = vmatprep.subr.mxu0 0.0
  %263 = vmatpush1.msra.mxu0 0.0
  %264 = vmatprep.subr.mxu0 0.0
  %265 = vmatpush1.msra.mxu0 0.0
  %266 = vmatprep.subr.mxu0 0.0
  %267 = vmatpush1.msra.mxu0 0.0
  %268 = vmatprep.subr.mxu0 0.0
  %269 = vmatpush1.msra.mxu0 0.0
  %270 = vmatprep.subr.mxu0 0.0
  %271 = vmatpush1.msra.mxu0 0.0
  %272 = vmatprep.mubr.f32.mxu0 0.0
  %273 = vmatmul.mubr.f32.gmra.mrb[0].mxu0 %v206
  %v274 = vpop.f32.mrb[0].mxu0
  %v275 = vadd.f32 %v203, %v274
  %v276 = vpop.f32.mrb[0].mxu0
  %277 = vdwg.mxu0
  %v278 = vadd.f32 %v198, %v275
  %v279 = vxor.u32 %v278, 2147483648
  %v280 = vmul.f32 %v279, 1.442695
  %v281 = vpow.pop %v280
  %v282 = vadd.f32 %v281, 1.0
  %v283 = vrcp.pop %v282
  %v284 = vmul.f32 1.0, %v283
  %286 = vrot.lane.b32.xlu0 %v275, 64
  %v287 = vpop.permute.xlu0 %286
  %v289 = vmul.f32 %v284, %v287
  %291 = vrot.lane.b32.xlu0 %v289, 64
  %v292 = vpop.permute.xlu0 %291
  %v294 = vadd.f32 %v198, %v292
  %v295 = vtanh.pop %v294
  %v296 = vsub.f32 1.0, %v284
  %298 = vrot.lane.b32.xlu0 %v295, 96
  %v299 = vpop.permute.xlu0 %298
  %v301 = vmul.f32 %v296, %v299
  %302 = vrot.lane.b32.xlu0 %v86, 32
  %v303 = vpop.permute.xlu0 %302
  %v305 = vmul.f32 %v284, %v303
  %v306 = vadd.f32 %v301, %v305
  %308 = vrot.lane.b32.xlu0 %v196, 96
  %v309 = vpop.permute.xlu0 %308
  %311 = vst.msk [vmem:[%s8] sm:$0xff] %vm94, %v309
  %313 = vrot.lane.b32.xlu0 %v306, 96
  %v314 = vpop.permute.xlu0 %313
  %s316 = scalar_lea.vmem %s65, 56
  %317 = vst.msk [vmem:[%s316] sm:$0xff] %vm94, %v314
  %s318 = scalar_lea.vmem %s0, 8
  %v319 = vld [vmem:[%s318] sm:$0xff]
  %v320 = vsel %vm94, %v309, 0
  %322 = vmatprep.subr.mxu0 0.0
  %323 = vmatpush1.msra.mxu0 %v75
  %324 = vmatprep.subr.mxu0 0.0
  %325 = vmatpush1.msra.mxu0 %v76
  %326 = vmatprep.subr.mxu0 0.0
  %327 = vmatpush1.msra.mxu0 %v77
  %328 = vmatprep.subr.mxu0 0.0
  %329 = vmatpush1.msra.mxu0 %v78
  %330 = vmatprep.subr.mxu0 0.0
  %331 = vmatpush1.msra.mxu0 0.0
  %332 = vmatprep.subr.mxu0 0.0
  %333 = vmatpush1.msra.mxu0 0.0
  %334 = vmatprep.subr.mxu0 0.0
  %335 = vmatpush1.msra.mxu0 0.0
  %336 = vmatprep.subr.mxu0 0.0
  %337 = vmatpush1.msra.mxu0 0.0
  %338 = vmatprep.subr.mxu0 0.0
  %339 = vmatpush1.msra.mxu0 0.0
  %340 = vmatprep.subr.mxu0 0.0
  %341 = vmatpush1.msra.mxu0 0.0
  %342 = vmatprep.subr.mxu0 0.0
  %343 = vmatpush1.msra.mxu0 0.0
  %344 = vmatprep.subr.mxu0 0.0
  %345 = vmatpush1.msra.mxu0 0.0
  %346 = vmatprep.subr.mxu0 0.0
  %347 = vmatpush1.msra.mxu0 0.0
  %348 = vmatprep.subr.mxu0 0.0
  %349 = vmatpush1.msra.mxu0 0.0
  %350 = vmatprep.subr.mxu0 0.0
  %351 = vmatpush1.msra.mxu0 0.0
  %352 = vmatprep.subr.mxu0 0.0
  %353 = vmatpush1.msra.mxu0 0.0
  %354 = vmatprep.subr.mxu0 0.0
  %355 = vmatpush1.msra.mxu0 0.0
  %356 = vmatprep.subr.mxu0 0.0
  %357 = vmatpush1.msra.mxu0 0.0
  %358 = vmatprep.subr.mxu0 0.0
  %359 = vmatpush1.msra.mxu0 0.0
  %360 = vmatprep.subr.mxu0 0.0
  %361 = vmatpush1.msra.mxu0 0.0
  %362 = vmatprep.subr.mxu0 0.0
  %363 = vmatpush1.msra.mxu0 0.0
  %364 = vmatprep.subr.mxu0 0.0
  %365 = vmatpush1.msra.mxu0 0.0
  %366 = vmatprep.subr.mxu0 0.0
  %367 = vmatpush1.msra.mxu0 0.0
  %368 = vmatprep.subr.mxu0 0.0
  %369 = vmatpush1.msra.mxu0 0.0
  %370 = vmatprep.subr.mxu0 0.0
  %371 = vmatpush1.msra.mxu0 0.0
  %372 = vmatprep.subr.mxu0 0.0
  %373 = vmatpush1.msra.mxu0 0.0
  %374 = vmatprep.subr.mxu0 0.0
  %375 = vmatpush1.msra.mxu0 0.0
  %376 = vmatprep.subr.mxu0 0.0
  %377 = vmatpush1.msra.mxu0 0.0
  %378 = vmatprep.subr.mxu0 0.0
  %379 = vmatpush1.msra.mxu0 0.0
  %380 = vmatprep.subr.mxu0 0.0
  %381 = vmatpush1.msra.mxu0 0.0
  %382 = vmatprep.subr.mxu0 0.0
  %383 = vmatpush1.msra.mxu0 0.0
  %384 = vmatprep.subr.mxu0 0.0
  %385 = vmatpush1.msra.mxu0 0.0
  %386 = vmatprep.mubr.f32.mxu0 0.0
  %387 = vmatmul.mubr.f32.gmra.mrb[0].mxu0 %v320
  %v388 = vpop.f32.mrb[0].mxu0
  %v389 = vadd.f32 %v92, %v388
  %v390 = vpop.f32.mrb[0].mxu0
  %391 = vdwg.mxu0
  %v392 = vadd.f32 %v319, %v389
  %v393 = vxor.u32 %v392, 2147483648
  %v394 = vmul.f32 %v393, 1.442695
  %v395 = vpow.pop %v394
  %v396 = vadd.f32 %v395, 1.0
  %v397 = vrcp.pop %v396
  %v398 = vmul.f32 1.0, %v397
  %400 = vrot.lane.b32.xlu0 %v389, 64
  %v401 = vpop.permute.xlu0 %400
  %v403 = vmul.f32 %v398, %v401
  %405 = vrot.lane.b32.xlu0 %v403, 64
  %v406 = vpop.permute.xlu0 %405
  %v408 = vadd.f32 %v319, %v406
  %v409 = vtanh.pop %v408
  %v410 = vsub.f32 1.0, %v398
  %412 = vrot.lane.b32.xlu0 %v409, 96
  %v413 = vpop.permute.xlu0 %412
  %v415 = vmul.f32 %v410, %v413
  %v416 = vmul.f32 %v398, %v196
  %v417 = vadd.f32 %v415, %v416
  %s418 = scalar_lea.vmem %s57, 48
  %v419 = vld [vmem:[%s418] sm:$0xff]
  %v420 = vsel %vm94, %v314, 0
  %422 = vmatprep.subr.mxu0 0.0
  %423 = vmatpush1.msra.mxu0 %v79
  %424 = vmatprep.subr.mxu0 0.0
  %425 = vmatpush1.msra.mxu0 %v80
  %426 = vmatprep.subr.mxu0 0.0
  %427 = vmatpush1.msra.mxu0 %v81
  %428 = vmatprep.subr.mxu0 0.0
  %429 = vmatpush1.msra.mxu0 %v82
  %430 = vmatprep.subr.mxu0 0.0
  %431 = vmatpush1.msra.mxu0 0.0
  %432 = vmatprep.subr.mxu0 0.0
  %433 = vmatpush1.msra.mxu0 0.0
  %434 = vmatprep.subr.mxu0 0.0
  %435 = vmatpush1.msra.mxu0 0.0
  %436 = vmatprep.subr.mxu0 0.0
  %437 = vmatpush1.msra.mxu0 0.0
  %438 = vmatprep.subr.mxu0 0.0
  %439 = vmatpush1.msra.mxu0 0.0
  %440 = vmatprep.subr.mxu0 0.0
  %441 = vmatpush1.msra.mxu0 0.0
  %442 = vmatprep.subr.mxu0 0.0
  %443 = vmatpush1.msra.mxu0 0.0
  %444 = vmatprep.subr.mxu0 0.0
  %445 = vmatpush1.msra.mxu0 0.0
  %446 = vmatprep.subr.mxu0 0.0
  %447 = vmatpush1.msra.mxu0 0.0
  %448 = vmatprep.subr.mxu0 0.0
  %449 = vmatpush1.msra.mxu0 0.0
  %450 = vmatprep.subr.mxu0 0.0
  %451 = vmatpush1.msra.mxu0 0.0
  %452 = vmatprep.subr.mxu0 0.0
  %453 = vmatpush1.msra.mxu0 0.0
  %454 = vmatprep.subr.mxu0 0.0
  %455 = vmatpush1.msra.mxu0 0.0
  %456 = vmatprep.subr.mxu0 0.0
  %457 = vmatpush1.msra.mxu0 0.0
  %458 = vmatprep.subr.mxu0 0.0
  %459 = vmatpush1.msra.mxu0 0.0
  %460 = vmatprep.subr.mxu0 0.0
  %461 = vmatpush1.msra.mxu0 0.0
  %462 = vmatprep.subr.mxu0 0.0
  %463 = vmatpush1.msra.mxu0 0.0
  %464 = vmatprep.subr.mxu0 0.0
  %465 = vmatpush1.msra.mxu0 0.0
  %466 = vmatprep.subr.mxu0 0.0
  %467 = vmatpush1.msra.mxu0 0.0
  %468 = vmatprep.subr.mxu0 0.0
  %469 = vmatpush1.msra.mxu0 0.0
  %470 = vmatprep.subr.mxu0 0.0
  %471 = vmatpush1.msra.mxu0 0.0
  %472 = vmatprep.subr.mxu0 0.0
  %473 = vmatpush1.msra.mxu0 0.0
  %474 = vmatprep.subr.mxu0 0.0
  %475 = vmatpush1.msra.mxu0 0.0
  %476 = vmatprep.subr.mxu0 0.0
  %477 = vmatpush1.msra.mxu0 0.0
  %478 = vmatprep.subr.mxu0 0.0
  %479 = vmatpush1.msra.mxu0 0.0
  %480 = vmatprep.subr.mxu0 0.0
  %481 = vmatpush1.msra.mxu0 0.0
  %482 = vmatprep.subr.mxu0 0.0
  %483 = vmatpush1.msra.mxu0 0.0
  %484 = vmatprep.subr.mxu0 0.0
  %485 = vmatpush1.msra.mxu0 0.0
  %486 = vmatprep.mubr.f32.mxu0 0.0
  %487 = vmatmul.mubr.f32.gmra.mrb[0].mxu0 %v420
  %v488 = vpop.f32.mrb[0].mxu0
  %v489 = vadd.f32 %v203, %v488
  %v490 = vpop.f32.mrb[0].mxu0
  %491 = vdwg.mxu0
  %v492 = vadd.f32 %v419, %v489
  %v493 = vxor.u32 %v492, 2147483648
  %v494 = vmul.f32 %v493, 1.442695
  %v495 = vpow.pop %v494
  %v496 = vadd.f32 %v495, 1.0
  %v497 = vrcp.pop %v496
  %v498 = vmul.f32 1.0, %v497
  %500 = vrot.lane.b32.xlu0 %v489, 64
  %v501 = vpop.permute.xlu0 %500
  %v503 = vmul.f32 %v498, %v501
  %505 = vrot.lane.b32.xlu0 %v503, 64
  %v506 = vpop.permute.xlu0 %505
  %v508 = vadd.f32 %v419, %v506
  %v509 = vtanh.pop %v508
  %v510 = vsub.f32 1.0, %v498
  %512 = vrot.lane.b32.xlu0 %v509, 96
  %v513 = vpop.permute.xlu0 %512
  %v515 = vmul.f32 %v510, %v513
  %v516 = vmul.f32 %v498, %v306
  %v517 = vadd.f32 %v515, %v516
  %519 = vrot.lane.b32.xlu0 %v417, 96
  %v520 = vpop.permute.xlu0 %519
  %s522 = scalar_lea.vmem %s8, 8
  %523 = vst.msk [vmem:[%s522] sm:$0xff] %vm94, %v520
  %525 = vrot.lane.b32.xlu0 %v517, 96
  %v526 = vpop.permute.xlu0 %525
  %s528 = scalar_lea.vmem %s65, 48
  %529 = vst.msk [vmem:[%s528] sm:$0xff] %vm94, %v526
  %s530 = scalar_lea.vmem %s0, 16
  %v531 = vld [vmem:[%s530] sm:$0xff]
  %v532 = vsel %vm94, %v520, 0
  %534 = vmatprep.subr.mxu0 0.0
  %535 = vmatpush1.msra.mxu0 %v75
  %536 = vmatprep.subr.mxu0 0.0
  %537 = vmatpush1.msra.mxu0 %v76
  %538 = vmatprep.subr.mxu0 0.0
  %539 = vmatpush1.msra.mxu0 %v77
  %540 = vmatprep.subr.mxu0 0.0
  %541 = vmatpush1.msra.mxu0 %v78
  %542 = vmatprep.subr.mxu0 0.0
  %543 = vmatpush1.msra.mxu0 0.0
  %544 = vmatprep.subr.mxu0 0.0
  %545 = vmatpush1.msra.mxu0 0.0
  %546 = vmatprep.subr.mxu0 0.0
  %547 = vmatpush1.msra.mxu0 0.0
  %548 = vmatprep.subr.mxu0 0.0
  %549 = vmatpush1.msra.mxu0 0.0
  %550 = vmatprep.subr.mxu0 0.0
  %551 = vmatpush1.msra.mxu0 0.0
  %552 = vmatprep.subr.mxu0 0.0
  %553 = vmatpush1.msra.mxu0 0.0
  %554 = vmatprep.subr.mxu0 0.0
  %555 = vmatpush1.msra.mxu0 0.0
  %556 = vmatprep.subr.mxu0 0.0
  %557 = vmatpush1.msra.mxu0 0.0
  %558 = vmatprep.subr.mxu0 0.0
  %559 = vmatpush1.msra.mxu0 0.0
  %560 = vmatprep.subr.mxu0 0.0
  %561 = vmatpush1.msra.mxu0 0.0
  %562 = vmatprep.subr.mxu0 0.0
  %563 = vmatpush1.msra.mxu0 0.0
  %564 = vmatprep.subr.mxu0 0.0
  %565 = vmatpush1.msra.mxu0 0.0
  %566 = vmatprep.subr.mxu0 0.0
  %567 = vmatpush1.msra.mxu0 0.0
  %568 = vmatprep.subr.mxu0 0.0
  %569 = vmatpush1.msra.mxu0 0.0
  %570 = vmatprep.subr.mxu0 0.0
  %571 = vmatpush1.msra.mxu0 0.0
  %572 = vmatprep.subr.mxu0 0.0
  %573 = vmatpush1.msra.mxu0 0.0
  %574 = vmatprep.subr.mxu0 0.0
  %575 = vmatpush1.msra.mxu0 0.0
  %576 = vmatprep.subr.mxu0 0.0
  %577 = vmatpush1.msra.mxu0 0.0
  %578 = vmatprep.subr.mxu0 0.0
  %579 = vmatpush1.msra.mxu0 0.0
  %580 = vmatprep.subr.mxu0 0.0
  %581 = vmatpush1.msra.mxu0 0.0
  %582 = vmatprep.subr.mxu0 0.0
  %583 = vmatpush1.msra.mxu0 0.0
  %584 = vmatprep.subr.mxu0 0.0
  %585 = vmatpush1.msra.mxu0 0.0
  %586 = vmatprep.subr.mxu0 0.0
  %587 = vmatpush1.msra.mxu0 0.0
  %588 = vmatprep.subr.mxu0 0.0
  %589 = vmatpush1.msra.mxu0 0.0
  %590 = vmatprep.subr.mxu0 0.0
  %591 = vmatpush1.msra.mxu0 0.0
  %592 = vmatprep.subr.mxu0 0.0
  %593 = vmatpush1.msra.mxu0 0.0
  %594 = vmatprep.subr.mxu0 0.0
  %595 = vmatpush1.msra.mxu0 0.0
  %596 = vmatprep.subr.mxu0 0.0
  %597 = vmatpush1.msra.mxu0 0.0
  %598 = vmatprep.mubr.f32.mxu0 0.0
  %599 = vmatmul.mubr.f32.gmra.mrb[0].mxu0 %v532
  %v600 = vpop.f32.mrb[0].mxu0
  %v601 = vadd.f32 %v92, %v600
  %v602 = vpop.f32.mrb[0].mxu0
  %603 = vdwg.mxu0
  %v604 = vadd.f32 %v531, %v601
  %v605 = vxor.u32 %v604, 2147483648
  %v606 = vmul.f32 %v605, 1.442695
  %v607 = vpow.pop %v606
  %v608 = vadd.f32 %v607, 1.0
  %v609 = vrcp.pop %v608
  %v610 = vmul.f32 1.0, %v609
  %612 = vrot.lane.b32.xlu0 %v601, 64
  %v613 = vpop.permute.xlu0 %612
  %v615 = vmul.f32 %v610, %v613
  %617 = vrot.lane.b32.xlu0 %v615, 64
  %v618 = vpop.permute.xlu0 %617
  %v620 = vadd.f32 %v531, %v618
  %v621 = vtanh.pop %v620
  %v622 = vsub.f32 1.0, %v610
  %624 = vrot.lane.b32.xlu0 %v621, 96
  %v625 = vpop.permute.xlu0 %624
  %v627 = vmul.f32 %v622, %v625
  %v628 = vmul.f32 %v610, %v417
  %v629 = vadd.f32 %v627, %v628
  %s630 = scalar_lea.vmem %s57, 40
  %v631 = vld [vmem:[%s630] sm:$0xff]
  %v632 = vsel %vm94, %v526, 0
  %634 = vmatprep.subr.mxu0 0.0
  %635 = vmatpush1.msra.mxu0 %v79
  %636 = vmatprep.subr.mxu0 0.0
  %637 = vmatpush1.msra.mxu0 %v80
  %638 = vmatprep.subr.mxu0 0.0
  %639 = vmatpush1.msra.mxu0 %v81
  %640 = vmatprep.subr.mxu0 0.0
  %641 = vmatpush1.msra.mxu0 %v82
  %642 = vmatprep.subr.mxu0 0.0
  %643 = vmatpush1.msra.mxu0 0.0
  %644 = vmatprep.subr.mxu0 0.0
  %645 = vmatpush1.msra.mxu0 0.0
  %646 = vmatprep.subr.mxu0 0.0
  %647 = vmatpush1.msra.mxu0 0.0
  %648 = vmatprep.subr.mxu0 0.0
  %649 = vmatpush1.msra.mxu0 0.0
  %650 = vmatprep.subr.mxu0 0.0
  %651 = vmatpush1.msra.mxu0 0.0
  %652 = vmatprep.subr.mxu0 0.0
  %653 = vmatpush1.msra.mxu0 0.0
  %654 = vmatprep.subr.mxu0 0.0
  %655 = vmatpush1.msra.mxu0 0.0
  %656 = vmatprep.subr.mxu0 0.0
  %657 = vmatpush1.msra.mxu0 0.0
  %658 = vmatprep.subr.mxu0 0.0
  %659 = vmatpush1.msra.mxu0 0.0
  %660 = vmatprep.subr.mxu0 0.0
  %661 = vmatpush1.msra.mxu0 0.0
  %662 = vmatprep.subr.mxu0 0.0
  %663 = vmatpush1.msra.mxu0 0.0
  %664 = vmatprep.subr.mxu0 0.0
  %665 = vmatpush1.msra.mxu0 0.0
  %666 = vmatprep.subr.mxu0 0.0
  %667 = vmatpush1.msra.mxu0 0.0
  %668 = vmatprep.subr.mxu0 0.0
  %669 = vmatpush1.msra.mxu0 0.0
  %670 = vmatprep.subr.mxu0 0.0
  %671 = vmatpush1.msra.mxu0 0.0
  %672 = vmatprep.subr.mxu0 0.0
  %673 = vmatpush1.msra.mxu0 0.0
  %674 = vmatprep.subr.mxu0 0.0
  %675 = vmatpush1.msra.mxu0 0.0
  %676 = vmatprep.subr.mxu0 0.0
  %677 = vmatpush1.msra.mxu0 0.0
  %678 = vmatprep.subr.mxu0 0.0
  %679 = vmatpush1.msra.mxu0 0.0
  %680 = vmatprep.subr.mxu0 0.0
  %681 = vmatpush1.msra.mxu0 0.0
  %682 = vmatprep.subr.mxu0 0.0
  %683 = vmatpush1.msra.mxu0 0.0
  %684 = vmatprep.subr.mxu0 0.0
  %685 = vmatpush1.msra.mxu0 0.0
  %686 = vmatprep.subr.mxu0 0.0
  %687 = vmatpush1.msra.mxu0 0.0
  %688 = vmatprep.subr.mxu0 0.0
  %689 = vmatpush1.msra.mxu0 0.0
  %690 = vmatprep.subr.mxu0 0.0
  %691 = vmatpush1.msra.mxu0 0.0
  %692 = vmatprep.subr.mxu0 0.0
  %693 = vmatpush1.msra.mxu0 0.0
  %694 = vmatprep.subr.mxu0 0.0
  %695 = vmatpush1.msra.mxu0 0.0
  %696 = vmatprep.subr.mxu0 0.0
  %697 = vmatpush1.msra.mxu0 0.0
  %698 = vmatprep.mubr.f32.mxu0 0.0
  %699 = vmatmul.mubr.f32.gmra.mrb[0].mxu0 %v632
  %v700 = vpop.f32.mrb[0].mxu0
  %v701 = vadd.f32 %v203, %v700
  %v702 = vpop.f32.mrb[0].mxu0
  %703 = vdwg.mxu0
  %v704 = vadd.f32 %v631, %v701
  %v705 = vxor.u32 %v704, 2147483648
  %v706 = vmul.f32 %v705, 1.442695
  %v707 = vpow.pop %v706
  %v708 = vadd.f32 %v707, 1.0
  %v709 = vrcp.pop %v708
  %v710 = vmul.f32 1.0, %v709
  %712 = vrot.lane.b32.xlu0 %v701, 64
  %v713 = vpop.permute.xlu0 %712
  %v715 = vmul.f32 %v710, %v713
  %717 = vrot.lane.b32.xlu0 %v715, 64
  %v718 = vpop.permute.xlu0 %717
  %v720 = vadd.f32 %v631, %v718
  %v721 = vtanh.pop %v720
  %v722 = vsub.f32 1.0, %v710
  %724 = vrot.lane.b32.xlu0 %v721, 96
  %v725 = vpop.permute.xlu0 %724
  %v727 = vmul.f32 %v722, %v725
  %v728 = vmul.f32 %v710, %v517
  %v729 = vadd.f32 %v727, %v728
  %731 = vrot.lane.b32.xlu0 %v629, 96
  %v732 = vpop.permute.xlu0 %731
  %s734 = scalar_lea.vmem %s8, 16
  %735 = vst.msk [vmem:[%s734] sm:$0xff] %vm94, %v732
  %737 = vrot.lane.b32.xlu0 %v729, 96
  %v738 = vpop.permute.xlu0 %737
  %s740 = scalar_lea.vmem %s65, 40
  %741 = vst.msk [vmem:[%s740] sm:$0xff] %vm94, %v738
  %s742 = scalar_lea.vmem %s0, 24
  %v743 = vld [vmem:[%s742] sm:$0xff]
  %v744 = vsel %vm94, %v732, 0
  %746 = vmatprep.subr.mxu0 0.0
  %747 = vmatpush1.msra.mxu0 %v75
  %748 = vmatprep.subr.mxu0 0.0
  %749 = vmatpush1.msra.mxu0 %v76
  %750 = vmatprep.subr.mxu0 0.0
  %751 = vmatpush1.msra.mxu0 %v77
  %752 = vmatprep.subr.mxu0 0.0
  %753 = vmatpush1.msra.mxu0 %v78
  %754 = vmatprep.subr.mxu0 0.0
  %755 = vmatpush1.msra.mxu0 0.0
  %756 = vmatprep.subr.mxu0 0.0
  %757 = vmatpush1.msra.mxu0 0.0
  %758 = vmatprep.subr.mxu0 0.0
  %759 = vmatpush1.msra.mxu0 0.0
  %760 = vmatprep.subr.mxu0 0.0
  %761 = vmatpush1.msra.mxu0 0.0
  %762 = vmatprep.subr.mxu0 0.0
  %763 = vmatpush1.msra.mxu0 0.0
  %764 = vmatprep.subr.mxu0 0.0
  %765 = vmatpush1.msra.mxu0 0.0
  %766 = vmatprep.subr.mxu0 0.0
  %767 = vmatpush1.msra.mxu0 0.0
  %768 = vmatprep.subr.mxu0 0.0
  %769 = vmatpush1.msra.mxu0 0.0
  %770 = vmatprep.subr.mxu0 0.0
  %771 = vmatpush1.msra.mxu0 0.0
  %772 = vmatprep.subr.mxu0 0.0
  %773 = vmatpush1.msra.mxu0 0.0
  %774 = vmatprep.subr.mxu0 0.0
  %775 = vmatpush1.msra.mxu0 0.0
  %776 = vmatprep.subr.mxu0 0.0
  %777 = vmatpush1.msra.mxu0 0.0
  %778 = vmatprep.subr.mxu0 0.0
  %779 = vmatpush1.msra.mxu0 0.0
  %780 = vmatprep.subr.mxu0 0.0
  %781 = vmatpush1.msra.mxu0 0.0
  %782 = vmatprep.subr.mxu0 0.0
  %783 = vmatpush1.msra.mxu0 0.0
  %784 = vmatprep.subr.mxu0 0.0
  %785 = vmatpush1.msra.mxu0 0.0
  %786 = vmatprep.subr.mxu0 0.0
  %787 = vmatpush1.msra.mxu0 0.0
  %788 = vmatprep.subr.mxu0 0.0
  %789 = vmatpush1.msra.mxu0 0.0
  %790 = vmatprep.subr.mxu0 0.0
  %791 = vmatpush1.msra.mxu0 0.0
  %792 = vmatprep.subr.mxu0 0.0
  %793 = vmatpush1.msra.mxu0 0.0
  %794 = vmatprep.subr.mxu0 0.0
  %795 = vmatpush1.msra.mxu0 0.0
  %796 = vmatprep.subr.mxu0 0.0
  %797 = vmatpush1.msra.mxu0 0.0
  %798 = vmatprep.subr.mxu0 0.0
  %799 = vmatpush1.msra.mxu0 0.0
  %800 = vmatprep.subr.mxu0 0.0
  %801 = vmatpush1.msra.mxu0 0.0
  %802 = vmatprep.subr.mxu0 0.0
  %803 = vmatpush1.msra.mxu0 0.0
  %804 = vmatprep.subr.mxu0 0.0
  %805 = vmatpush1.msra.mxu0 0.0
  %806 = vmatprep.subr.mxu0 0.0
  %807 = vmatpush1.msra.mxu0 0.0
  %808 = vmatprep.subr.mxu0 0.0
  %809 = vmatpush1.msra.mxu0 0.0
  %810 = vmatprep.mubr.f32.mxu0 0.0
  %811 = vmatmul.mubr.f32.gmra.mrb[0].mxu0 %v744
  %v812 = vpop.f32.mrb[0].mxu0
  %v813 = vadd.f32 %v92, %v812
  %v814 = vpop.f32.mrb[0].mxu0
  %815 = vdwg.mxu0
  %v816 = vadd.f32 %v743, %v813
  %v817 = vxor.u32 %v816, 2147483648
  %v818 = vmul.f32 %v817, 1.442695
  %v819 = vpow.pop %v818
  %v820 = vadd.f32 %v819, 1.0
  %v821 = vrcp.pop %v820
  %v822 = vmul.f32 1.0, %v821
  %824 = vrot.lane.b32.xlu0 %v813, 64
  %v825 = vpop.permute.xlu0 %824
  %v827 = vmul.f32 %v822, %v825
  %829 = vrot.lane.b32.xlu0 %v827, 64
  %v830 = vpop.permute.xlu0 %829
  %v832 = vadd.f32 %v743, %v830
  %v833 = vtanh.pop %v832
  %v834 = vsub.f32 1.0, %v822
  %836 = vrot.lane.b32.xlu0 %v833, 96
  %v837 = vpop.permute.xlu0 %836
  %v839 = vmul.f32 %v834, %v837
  %v840 = vmul.f32 %v822, %v629
  %v841 = vadd.f32 %v839, %v840
  %s842 = scalar_lea.vmem %s57, 32
  %v843 = vld [vmem:[%s842] sm:$0xff]
  %v844 = vsel %vm94, %v738, 0
  %846 = vmatprep.subr.mxu0 0.0
  %847 = vmatpush1.msra.mxu0 %v79
  %848 = vmatprep.subr.mxu0 0.0
  %849 = vmatpush1.msra.mxu0 %v80
  %850 = vmatprep.subr.mxu0 0.0
  %851 = vmatpush1.msra.mxu0 %v81
  %852 = vmatprep.subr.mxu0 0.0
  %853 = vmatpush1.msra.mxu0 %v82
  %854 = vmatprep.subr.mxu0 0.0
  %855 = vmatpush1.msra.mxu0 0.0
  %856 = vmatprep.subr.mxu0 0.0
  %857 = vmatpush1.msra.mxu0 0.0
  %858 = vmatprep.subr.mxu0 0.0
  %859 = vmatpush1.msra.mxu0 0.0
  %860 = vmatprep.subr.mxu0 0.0
  %861 = vmatpush1.msra.mxu0 0.0
  %862 = vmatprep.subr.mxu0 0.0
  %863 = vmatpush1.msra.mxu0 0.0
  %864 = vmatprep.subr.mxu0 0.0
  %865 = vmatpush1.msra.mxu0 0.0
  %866 = vmatprep.subr.mxu0 0.0
  %867 = vmatpush1.msra.mxu0 0.0
  %868 = vmatprep.subr.mxu0 0.0
  %869 = vmatpush1.msra.mxu0 0.0
  %870 = vmatprep.subr.mxu0 0.0
  %871 = vmatpush1.msra.mxu0 0.0
  %872 = vmatprep.subr.mxu0 0.0
  %873 = vmatpush1.msra.mxu0 0.0
  %874 = vmatprep.subr.mxu0 0.0
  %875 = vmatpush1.msra.mxu0 0.0
  %876 = vmatprep.subr.mxu0 0.0
  %877 = vmatpush1.msra.mxu0 0.0
  %878 = vmatprep.subr.mxu0 0.0
  %879 = vmatpush1.msra.mxu0 0.0
  %880 = vmatprep.subr.mxu0 0.0
  %881 = vmatpush1.msra.mxu0 0.0
  %882 = vmatprep.subr.mxu0 0.0
  %883 = vmatpush1.msra.mxu0 0.0
  %884 = vmatprep.subr.mxu0 0.0
  %885 = vmatpush1.msra.mxu0 0.0
  %886 = vmatprep.subr.mxu0 0.0
  %887 = vmatpush1.msra.mxu0 0.0
  %888 = vmatprep.subr.mxu0 0.0
  %889 = vmatpush1.msra.mxu0 0.0
  %890 = vmatprep.subr.mxu0 0.0
  %891 = vmatpush1.msra.mxu0 0.0
  %892 = vmatprep.subr.mxu0 0.0
  %893 = vmatpush1.msra.mxu0 0.0
  %894 = vmatprep.subr.mxu0 0.0
  %895 = vmatpush1.msra.mxu0 0.0
  %896 = vmatprep.subr.mxu0 0.0
  %897 = vmatpush1.msra.mxu0 0.0
  %898 = vmatprep.subr.mxu0 0.0
  %899 = vmatpush1.msra.mxu0 0.0
  %900 = vmatprep.subr.mxu0 0.0
  %901 = vmatpush1.msra.mxu0 0.0
  %902 = vmatprep.subr.mxu0 0.0
  %903 = vmatpush1.msra.mxu0 0.0
  %904 = vmatprep.subr.mxu0 0.0
  %905 = vmatpush1.msra.mxu0 0.0
  %906 = vmatprep.subr.mxu0 0.0
  %907 = vmatpush1.msra.mxu0 0.0
  %908 = vmatprep.subr.mxu0 0.0
  %909 = vmatpush1.msra.mxu0 0.0
  %910 = vmatprep.mubr.f32.mxu0 0.0
  %911 = vmatmul.mubr.f32.gmra.mrb[0].mxu0 %v844
  %v912 = vpop.f32.mrb[0].mxu0
  %v913 = vadd.f32 %v203, %v912
  %v914 = vpop.f32.mrb[0].mxu0
  %915 = vdwg.mxu0
  %v916 = vadd.f32 %v843, %v913
  %v917 = vxor.u32 %v916, 2147483648
  %v918 = vmul.f32 %v917, 1.442695
  %v919 = vpow.pop %v918
  %v920 = vadd.f32 %v919, 1.0
  %v921 = vrcp.pop %v920
  %v922 = vmul.f32 1.0, %v921
  %924 = vrot.lane.b32.xlu0 %v913, 64
  %v925 = vpop.permute.xlu0 %924
  %v927 = vmul.f32 %v922, %v925
  %929 = vrot.lane.b32.xlu0 %v927, 64
  %v930 = vpop.permute.xlu0 %929
  %v932 = vadd.f32 %v843, %v930
  %v933 = vtanh.pop %v932
  %v934 = vsub.f32 1.0, %v922
  %936 = vrot.lane.b32.xlu0 %v933, 96
  %v937 = vpop.permute.xlu0 %936
  %v939 = vmul.f32 %v934, %v937
  %v940 = vmul.f32 %v922, %v729
  %v941 = vadd.f32 %v939, %v940
  %943 = vrot.lane.b32.xlu0 %v841, 96
  %v944 = vpop.permute.xlu0 %943
  %s946 = scalar_lea.vmem %s8, 24
  %947 = vst.msk [vmem:[%s946] sm:$0xff] %vm94, %v944
  %949 = vrot.lane.b32.xlu0 %v941, 96
  %v950 = vpop.permute.xlu0 %949
  %s952 = scalar_lea.vmem %s65, 32
  %953 = vst.msk [vmem:[%s952] sm:$0xff] %vm94, %v950
  %s954 = scalar_lea.vmem %s0, 32
  %v955 = vld [vmem:[%s954] sm:$0xff]
  %v956 = vsel %vm94, %v944, 0
  %958 = vmatprep.subr.mxu0 0.0
  %959 = vmatpush1.msra.mxu0 %v75
  %960 = vmatprep.subr.mxu0 0.0
  %961 = vmatpush1.msra.mxu0 %v76
  %962 = vmatprep.subr.mxu0 0.0
  %963 = vmatpush1.msra.mxu0 %v77
  %964 = vmatprep.subr.mxu0 0.0
  %965 = vmatpush1.msra.mxu0 %v78
  %966 = vmatprep.subr.mxu0 0.0
  %967 = vmatpush1.msra.mxu0 0.0
  %968 = vmatprep.subr.mxu0 0.0
  %969 = vmatpush1.msra.mxu0 0.0
  %970 = vmatprep.subr.mxu0 0.0
  %971 = vmatpush1.msra.mxu0 0.0
  %972 = vmatprep.subr.mxu0 0.0
  %973 = vmatpush1.msra.mxu0 0.0
  %974 = vmatprep.subr.mxu0 0.0
  %975 = vmatpush1.msra.mxu0 0.0
  %976 = vmatprep.subr.mxu0 0.0
  %977 = vmatpush1.msra.mxu0 0.0
  %978 = vmatprep.subr.mxu0 0.0
  %979 = vmatpush1.msra.mxu0 0.0
  %980 = vmatprep.subr.mxu0 0.0
  %981 = vmatpush1.msra.mxu0 0.0
  %982 = vmatprep.subr.mxu0 0.0
  %983 = vmatpush1.msra.mxu0 0.0
  %984 = vmatprep.subr.mxu0 0.0
  %985 = vmatpush1.msra.mxu0 0.0
  %986 = vmatprep.subr.mxu0 0.0
  %987 = vmatpush1.msra.mxu0 0.0
  %988 = vmatprep.subr.mxu0 0.0
  %989 = vmatpush1.msra.mxu0 0.0
  %990 = vmatprep.subr.mxu0 0.0
  %991 = vmatpush1.msra.mxu0 0.0
  %992 = vmatprep.subr.mxu0 0.0
  %993 = vmatpush1.msra.mxu0 0.0
  %994 = vmatprep.subr.mxu0 0.0
  %995 = vmatpush1.msra.mxu0 0.0
  %996 = vmatprep.subr.mxu0 0.0
  %997 = vmatpush1.msra.mxu0 0.0
  %998 = vmatprep.subr.mxu0 0.0
  %999 = vmatpush1.msra.mxu0 0.0
  %1000 = vmatprep.subr.mxu0 0.0
  %1001 = vmatpush1.msra.mxu0 0.0
  %1002 = vmatprep.subr.mxu0 0.0
  %1003 = vmatpush1.msra.mxu0 0.0
  %1004 = vmatprep.subr.mxu0 0.0
  %1005 = vmatpush1.msra.mxu0 0.0
  %1006 = vmatprep.subr.mxu0 0.0
  %1007 = vmatpush1.msra.mxu0 0.0
  %1008 = vmatprep.subr.mxu0 0.0
  %1009 = vmatpush1.msra.mxu0 0.0
  %1010 = vmatprep.subr.mxu0 0.0
  %1011 = vmatpush1.msra.mxu0 0.0
  %1012 = vmatprep.subr.mxu0 0.0
  %1013 = vmatpush1.msra.mxu0 0.0
  %1014 = vmatprep.subr.mxu0 0.0
  %1015 = vmatpush1.msra.mxu0 0.0
  %1016 = vmatprep.subr.mxu0 0.0
  %1017 = vmatpush1.msra.mxu0 0.0
  %1018 = vmatprep.subr.mxu0 0.0
  %1019 = vmatpush1.msra.mxu0 0.0
  %1020 = vmatprep.subr.mxu0 0.0
  %1021 = vmatpush1.msra.mxu0 0.0
  %1022 = vmatprep.mubr.f32.mxu0 0.0
  %1023 = vmatmul.mubr.f32.gmra.mrb[0].mxu0 %v956
  %v1024 = vpop.f32.mrb[0].mxu0
  %v1025 = vadd.f32 %v92, %v1024
  %v1026 = vpop.f32.mrb[0].mxu0
  %1027 = vdwg.mxu0
  %v1028 = vadd.f32 %v955, %v1025
  %v1029 = vxor.u32 %v1028, 2147483648
  %v1030 = vmul.f32 %v1029, 1.442695
  %v1031 = vpow.pop %v1030
  %v1032 = vadd.f32 %v1031, 1.0
  %v1033 = vrcp.pop %v1032
  %v1034 = vmul.f32 1.0, %v1033
  %1036 = vrot.lane.b32.xlu0 %v1025, 64
  %v1037 = vpop.permute.xlu0 %1036
  %v1039 = vmul.f32 %v1034, %v1037
  %1041 = vrot.lane.b32.xlu0 %v1039, 64
  %v1042 = vpop.permute.xlu0 %1041
  %v1044 = vadd.f32 %v955, %v1042
  %v1045 = vtanh.pop %v1044
  %v1046 = vsub.f32 1.0, %v1034
  %1048 = vrot.lane.b32.xlu0 %v1045, 96
  %v1049 = vpop.permute.xlu0 %1048
  %v1051 = vmul.f32 %v1046, %v1049
  %v1052 = vmul.f32 %v1034, %v841
  %v1053 = vadd.f32 %v1051, %v1052
  %s1054 = scalar_lea.vmem %s57, 24
  %v1055 = vld [vmem:[%s1054] sm:$0xff]
  %v1056 = vsel %vm94, %v950, 0
  %1058 = vmatprep.subr.mxu0 0.0
  %1059 = vmatpush1.msra.mxu0 %v79
  %1060 = vmatprep.subr.mxu0 0.0
  %1061 = vmatpush1.msra.mxu0 %v80
  %1062 = vmatprep.subr.mxu0 0.0
  %1063 = vmatpush1.msra.mxu0 %v81
  %1064 = vmatprep.subr.mxu0 0.0
  %1065 = vmatpush1.msra.mxu0 %v82
  %1066 = vmatprep.subr.mxu0 0.0
  %1067 = vmatpush1.msra.mxu0 0.0
  %1068 = vmatprep.subr.mxu0 0.0
  %1069 = vmatpush1.msra.mxu0 0.0
  %1070 = vmatprep.subr.mxu0 0.0
  %1071 = vmatpush1.msra.mxu0 0.0
  %1072 = vmatprep.subr.mxu0 0.0
  %1073 = vmatpush1.msra.mxu0 0.0
  %1074 = vmatprep.subr.mxu0 0.0
  %1075 = vmatpush1.msra.mxu0 0.0
  %1076 = vmatprep.subr.mxu0 0.0
  %1077 = vmatpush1.msra.mxu0 0.0
  %1078 = vmatprep.subr.mxu0 0.0
  %1079 = vmatpush1.msra.mxu0 0.0
  %1080 = vmatprep.subr.mxu0 0.0
  %1081 = vmatpush1.msra.mxu0 0.0
  %1082 = vmatprep.subr.mxu0 0.0
  %1083 = vmatpush1.msra.mxu0 0.0
  %1084 = vmatprep.subr.mxu0 0.0
  %1085 = vmatpush1.msra.mxu0 0.0
  %1086 = vmatprep.subr.mxu0 0.0
  %1087 = vmatpush1.msra.mxu0 0.0
  %1088 = vmatprep.subr.mxu0 0.0
  %1089 = vmatpush1.msra.mxu0 0.0
  %1090 = vmatprep.subr.mxu0 0.0
  %1091 = vmatpush1.msra.mxu0 0.0
  %1092 = vmatprep.subr.mxu0 0.0
  %1093 = vmatpush1.msra.mxu0 0.0
  %1094 = vmatprep.subr.mxu0 0.0
  %1095 = vmatpush1.msra.mxu0 0.0
  %1096 = vmatprep.subr.mxu0 0.0
  %1097 = vmatpush1.msra.mxu0 0.0
  %1098 = vmatprep.subr.mxu0 0.0
  %1099 = vmatpush1.msra.mxu0 0.0
  %1100 = vmatprep.subr.mxu0 0.0
  %1101 = vmatpush1.msra.mxu0 0.0
  %1102 = vmatprep.subr.mxu0 0.0
  %1103 = vmatpush1.msra.mxu0 0.0
  %1104 = vmatprep.subr.mxu0 0.0
  %1105 = vmatpush1.msra.mxu0 0.0
  %1106 = vmatprep.subr.mxu0 0.0
  %1107 = vmatpush1.msra.mxu0 0.0
  %1108 = vmatprep.subr.mxu0 0.0
  %1109 = vmatpush1.msra.mxu0 0.0
  %1110 = vmatprep.subr.mxu0 0.0
  %1111 = vmatpush1.msra.mxu0 0.0
  %1112 = vmatprep.subr.mxu0 0.0
  %1113 = vmatpush1.msra.mxu0 0.0
  %1114 = vmatprep.subr.mxu0 0.0
  %1115 = vmatpush1.msra.mxu0 0.0
  %1116 = vmatprep.subr.mxu0 0.0
  %1117 = vmatpush1.msra.mxu0 0.0
  %1118 = vmatprep.subr.mxu0 0.0
  %1119 = vmatpush1.msra.mxu0 0.0
  %1120 = vmatprep.subr.mxu0 0.0
  %1121 = vmatpush1.msra.mxu0 0.0
  %1122 = vmatprep.mubr.f32.mxu0 0.0
  %1123 = vmatmul.mubr.f32.gmra.mrb[0].mxu0 %v1056
  %v1124 = vpop.f32.mrb[0].mxu0
  %v1125 = vadd.f32 %v203, %v1124
  %v1126 = vpop.f32.mrb[0].mxu0
  %1127 = vdwg.mxu0
  %v1128 = vadd.f32 %v1055, %v1125
  %v1129 = vxor.u32 %v1128, 2147483648
  %v1130 = vmul.f32 %v1129, 1.442695
  %v1131 = vpow.pop %v1130
  %v1132 = vadd.f32 %v1131, 1.0
  %v1133 = vrcp.pop %v1132
  %v1134 = vmul.f32 1.0, %v1133
  %1136 = vrot.lane.b32.xlu0 %v1125, 64
  %v1137 = vpop.permute.xlu0 %1136
  %v1139 = vmul.f32 %v1134, %v1137
  %1141 = vrot.lane.b32.xlu0 %v1139, 64
  %v1142 = vpop.permute.xlu0 %1141
  %v1144 = vadd.f32 %v1055, %v1142
  %v1145 = vtanh.pop %v1144
  %v1146 = vsub.f32 1.0, %v1134
  %1148 = vrot.lane.b32.xlu0 %v1145, 96
  %v1149 = vpop.permute.xlu0 %1148
  %v1151 = vmul.f32 %v1146, %v1149
  %v1152 = vmul.f32 %v1134, %v941
  %v1153 = vadd.f32 %v1151, %v1152
  %1155 = vrot.lane.b32.xlu0 %v1053, 96
  %v1156 = vpop.permute.xlu0 %1155
  %s1158 = scalar_lea.vmem %s8, 32
  %1159 = vst.msk [vmem:[%s1158] sm:$0xff] %vm94, %v1156
  %1161 = vrot.lane.b32.xlu0 %v1153, 96
  %v1162 = vpop.permute.xlu0 %1161
  %s1164 = scalar_lea.vmem %s65, 24
  %1165 = vst.msk [vmem:[%s1164] sm:$0xff] %vm94, %v1162
  %s1166 = scalar_lea.vmem %s0, 40
  %v1167 = vld [vmem:[%s1166] sm:$0xff]
  %v1168 = vsel %vm94, %v1156, 0
  %1170 = vmatprep.subr.mxu0 0.0
  %1171 = vmatpush1.msra.mxu0 %v75
  %1172 = vmatprep.subr.mxu0 0.0
  %1173 = vmatpush1.msra.mxu0 %v76
  %1174 = vmatprep.subr.mxu0 0.0
  %1175 = vmatpush1.msra.mxu0 %v77
  %1176 = vmatprep.subr.mxu0 0.0
  %1177 = vmatpush1.msra.mxu0 %v78
  %1178 = vmatprep.subr.mxu0 0.0
  %1179 = vmatpush1.msra.mxu0 0.0
  %1180 = vmatprep.subr.mxu0 0.0
  %1181 = vmatpush1.msra.mxu0 0.0
  %1182 = vmatprep.subr.mxu0 0.0
  %1183 = vmatpush1.msra.mxu0 0.0
  %1184 = vmatprep.subr.mxu0 0.0
  %1185 = vmatpush1.msra.mxu0 0.0
  %1186 = vmatprep.subr.mxu0 0.0
  %1187 = vmatpush1.msra.mxu0 0.0
  %1188 = vmatprep.subr.mxu0 0.0
  %1189 = vmatpush1.msra.mxu0 0.0
  %1190 = vmatprep.subr.mxu0 0.0
  %1191 = vmatpush1.msra.mxu0 0.0
  %1192 = vmatprep.subr.mxu0 0.0
  %1193 = vmatpush1.msra.mxu0 0.0
  %1194 = vmatprep.subr.mxu0 0.0
  %1195 = vmatpush1.msra.mxu0 0.0
  %1196 = vmatprep.subr.mxu0 0.0
  %1197 = vmatpush1.msra.mxu0 0.0
  %1198 = vmatprep.subr.mxu0 0.0
  %1199 = vmatpush1.msra.mxu0 0.0
  %1200 = vmatprep.subr.mxu0 0.0
  %1201 = vmatpush1.msra.mxu0 0.0
  %1202 = vmatprep.subr.mxu0 0.0
  %1203 = vmatpush1.msra.mxu0 0.0
  %1204 = vmatprep.subr.mxu0 0.0
  %1205 = vmatpush1.msra.mxu0 0.0
  %1206 = vmatprep.subr.mxu0 0.0
  %1207 = vmatpush1.msra.mxu0 0.0
  %1208 = vmatprep.subr.mxu0 0.0
  %1209 = vmatpush1.msra.mxu0 0.0
  %1210 = vmatprep.subr.mxu0 0.0
  %1211 = vmatpush1.msra.mxu0 0.0
  %1212 = vmatprep.subr.mxu0 0.0
  %1213 = vmatpush1.msra.mxu0 0.0
  %1214 = vmatprep.subr.mxu0 0.0
  %1215 = vmatpush1.msra.mxu0 0.0
  %1216 = vmatprep.subr.mxu0 0.0
  %1217 = vmatpush1.msra.mxu0 0.0
  %1218 = vmatprep.subr.mxu0 0.0
  %1219 = vmatpush1.msra.mxu0 0.0
  %1220 = vmatprep.subr.mxu0 0.0
  %1221 = vmatpush1.msra.mxu0 0.0
  %1222 = vmatprep.subr.mxu0 0.0
  %1223 = vmatpush1.msra.mxu0 0.0
  %1224 = vmatprep.subr.mxu0 0.0
  %1225 = vmatpush1.msra.mxu0 0.0
  %1226 = vmatprep.subr.mxu0 0.0
  %1227 = vmatpush1.msra.mxu0 0.0
  %1228 = vmatprep.subr.mxu0 0.0
  %1229 = vmatpush1.msra.mxu0 0.0
  %1230 = vmatprep.subr.mxu0 0.0
  %1231 = vmatpush1.msra.mxu0 0.0
  %1232 = vmatprep.subr.mxu0 0.0
  %1233 = vmatpush1.msra.mxu0 0.0
  %1234 = vmatprep.mubr.f32.mxu0 0.0
  %1235 = vmatmul.mubr.f32.gmra.mrb[0].mxu0 %v1168
  %v1236 = vpop.f32.mrb[0].mxu0
  %v1237 = vadd.f32 %v92, %v1236
  %v1238 = vpop.f32.mrb[0].mxu0
  %1239 = vdwg.mxu0
  %v1240 = vadd.f32 %v1167, %v1237
  %v1241 = vxor.u32 %v1240, 2147483648
  %v1242 = vmul.f32 %v1241, 1.442695
  %v1243 = vpow.pop %v1242
  %v1244 = vadd.f32 %v1243, 1.0
  %v1245 = vrcp.pop %v1244
  %v1246 = vmul.f32 1.0, %v1245
  %1248 = vrot.lane.b32.xlu0 %v1237, 64
  %v1249 = vpop.permute.xlu0 %1248
  %v1251 = vmul.f32 %v1246, %v1249
  %1253 = vrot.lane.b32.xlu0 %v1251, 64
  %v1254 = vpop.permute.xlu0 %1253
  %v1256 = vadd.f32 %v1167, %v1254
  %v1257 = vtanh.pop %v1256
  %v1258 = vsub.f32 1.0, %v1246
  %1260 = vrot.lane.b32.xlu0 %v1257, 96
  %v1261 = vpop.permute.xlu0 %1260
  %v1263 = vmul.f32 %v1258, %v1261
  %v1264 = vmul.f32 %v1246, %v1053
  %v1265 = vadd.f32 %v1263, %v1264
  %s1266 = scalar_lea.vmem %s57, 16
  %v1267 = vld [vmem:[%s1266] sm:$0xff]
  %v1268 = vsel %vm94, %v1162, 0
  %1270 = vmatprep.subr.mxu0 0.0
  %1271 = vmatpush1.msra.mxu0 %v79
  %1272 = vmatprep.subr.mxu0 0.0
  %1273 = vmatpush1.msra.mxu0 %v80
  %1274 = vmatprep.subr.mxu0 0.0
  %1275 = vmatpush1.msra.mxu0 %v81
  %1276 = vmatprep.subr.mxu0 0.0
  %1277 = vmatpush1.msra.mxu0 %v82
  %1278 = vmatprep.subr.mxu0 0.0
  %1279 = vmatpush1.msra.mxu0 0.0
  %1280 = vmatprep.subr.mxu0 0.0
  %1281 = vmatpush1.msra.mxu0 0.0
  %1282 = vmatprep.subr.mxu0 0.0
  %1283 = vmatpush1.msra.mxu0 0.0
  %1284 = vmatprep.subr.mxu0 0.0
  %1285 = vmatpush1.msra.mxu0 0.0
  %1286 = vmatprep.subr.mxu0 0.0
  %1287 = vmatpush1.msra.mxu0 0.0
  %1288 = vmatprep.subr.mxu0 0.0
  %1289 = vmatpush1.msra.mxu0 0.0
  %1290 = vmatprep.subr.mxu0 0.0
  %1291 = vmatpush1.msra.mxu0 0.0
  %1292 = vmatprep.subr.mxu0 0.0
  %1293 = vmatpush1.msra.mxu0 0.0
  %1294 = vmatprep.subr.mxu0 0.0
  %1295 = vmatpush1.msra.mxu0 0.0
  %1296 = vmatprep.subr.mxu0 0.0
  %1297 = vmatpush1.msra.mxu0 0.0
  %1298 = vmatprep.subr.mxu0 0.0
  %1299 = vmatpush1.msra.mxu0 0.0
  %1300 = vmatprep.subr.mxu0 0.0
  %1301 = vmatpush1.msra.mxu0 0.0
  %1302 = vmatprep.subr.mxu0 0.0
  %1303 = vmatpush1.msra.mxu0 0.0
  %1304 = vmatprep.subr.mxu0 0.0
  %1305 = vmatpush1.msra.mxu0 0.0
  %1306 = vmatprep.subr.mxu0 0.0
  %1307 = vmatpush1.msra.mxu0 0.0
  %1308 = vmatprep.subr.mxu0 0.0
  %1309 = vmatpush1.msra.mxu0 0.0
  %1310 = vmatprep.subr.mxu0 0.0
  %1311 = vmatpush1.msra.mxu0 0.0
  %1312 = vmatprep.subr.mxu0 0.0
  %1313 = vmatpush1.msra.mxu0 0.0
  %1314 = vmatprep.subr.mxu0 0.0
  %1315 = vmatpush1.msra.mxu0 0.0
  %1316 = vmatprep.subr.mxu0 0.0
  %1317 = vmatpush1.msra.mxu0 0.0
  %1318 = vmatprep.subr.mxu0 0.0
  %1319 = vmatpush1.msra.mxu0 0.0
  %1320 = vmatprep.subr.mxu0 0.0
  %1321 = vmatpush1.msra.mxu0 0.0
  %1322 = vmatprep.subr.mxu0 0.0
  %1323 = vmatpush1.msra.mxu0 0.0
  %1324 = vmatprep.subr.mxu0 0.0
  %1325 = vmatpush1.msra.mxu0 0.0
  %1326 = vmatprep.subr.mxu0 0.0
  %1327 = vmatpush1.msra.mxu0 0.0
  %1328 = vmatprep.subr.mxu0 0.0
  %1329 = vmatpush1.msra.mxu0 0.0
  %1330 = vmatprep.subr.mxu0 0.0
  %1331 = vmatpush1.msra.mxu0 0.0
  %1332 = vmatprep.subr.mxu0 0.0
  %1333 = vmatpush1.msra.mxu0 0.0
  %1334 = vmatprep.mubr.f32.mxu0 0.0
  %1335 = vmatmul.mubr.f32.gmra.mrb[0].mxu0 %v1268
  %v1336 = vpop.f32.mrb[0].mxu0
  %v1337 = vadd.f32 %v203, %v1336
  %v1338 = vpop.f32.mrb[0].mxu0
  %1339 = vdwg.mxu0
  %v1340 = vadd.f32 %v1267, %v1337
  %v1341 = vxor.u32 %v1340, 2147483648
  %v1342 = vmul.f32 %v1341, 1.442695
  %v1343 = vpow.pop %v1342
  %v1344 = vadd.f32 %v1343, 1.0
  %v1345 = vrcp.pop %v1344
  %v1346 = vmul.f32 1.0, %v1345
  %1348 = vrot.lane.b32.xlu0 %v1337, 64
  %v1349 = vpop.permute.xlu0 %1348
  %v1351 = vmul.f32 %v1346, %v1349
  %1353 = vrot.lane.b32.xlu0 %v1351, 64
  %v1354 = vpop.permute.xlu0 %1353
  %v1356 = vadd.f32 %v1267, %v1354
  %v1357 = vtanh.pop %v1356
  %v1358 = vsub.f32 1.0, %v1346
  %1360 = vrot.lane.b32.xlu0 %v1357, 96
  %v1361 = vpop.permute.xlu0 %1360
  %v1363 = vmul.f32 %v1358, %v1361
  %v1364 = vmul.f32 %v1346, %v1153
  %v1365 = vadd.f32 %v1363, %v1364
  %1367 = vrot.lane.b32.xlu0 %v1265, 96
  %v1368 = vpop.permute.xlu0 %1367
  %s1370 = scalar_lea.vmem %s8, 40
  %1371 = vst.msk [vmem:[%s1370] sm:$0xff] %vm94, %v1368
  %1373 = vrot.lane.b32.xlu0 %v1365, 96
  %v1374 = vpop.permute.xlu0 %1373
  %s1376 = scalar_lea.vmem %s65, 16
  %1377 = vst.msk [vmem:[%s1376] sm:$0xff] %vm94, %v1374
  %s1378 = scalar_lea.vmem %s0, 48
  %v1379 = vld [vmem:[%s1378] sm:$0xff]
  %v1380 = vsel %vm94, %v1368, 0
  %1382 = vmatprep.subr.mxu0 0.0
  %1383 = vmatpush1.msra.mxu0 %v75
  %1384 = vmatprep.subr.mxu0 0.0
  %1385 = vmatpush1.msra.mxu0 %v76
  %1386 = vmatprep.subr.mxu0 0.0
  %1387 = vmatpush1.msra.mxu0 %v77
  %1388 = vmatprep.subr.mxu0 0.0
  %1389 = vmatpush1.msra.mxu0 %v78
  %1390 = vmatprep.subr.mxu0 0.0
  %1391 = vmatpush1.msra.mxu0 0.0
  %1392 = vmatprep.subr.mxu0 0.0
  %1393 = vmatpush1.msra.mxu0 0.0
  %1394 = vmatprep.subr.mxu0 0.0
  %1395 = vmatpush1.msra.mxu0 0.0
  %1396 = vmatprep.subr.mxu0 0.0
  %1397 = vmatpush1.msra.mxu0 0.0
  %1398 = vmatprep.subr.mxu0 0.0
  %1399 = vmatpush1.msra.mxu0 0.0
  %1400 = vmatprep.subr.mxu0 0.0
  %1401 = vmatpush1.msra.mxu0 0.0
  %1402 = vmatprep.subr.mxu0 0.0
  %1403 = vmatpush1.msra.mxu0 0.0
  %1404 = vmatprep.subr.mxu0 0.0
  %1405 = vmatpush1.msra.mxu0 0.0
  %1406 = vmatprep.subr.mxu0 0.0
  %1407 = vmatpush1.msra.mxu0 0.0
  %1408 = vmatprep.subr.mxu0 0.0
  %1409 = vmatpush1.msra.mxu0 0.0
  %1410 = vmatprep.subr.mxu0 0.0
  %1411 = vmatpush1.msra.mxu0 0.0
  %1412 = vmatprep.subr.mxu0 0.0
  %1413 = vmatpush1.msra.mxu0 0.0
  %1414 = vmatprep.subr.mxu0 0.0
  %1415 = vmatpush1.msra.mxu0 0.0
  %1416 = vmatprep.subr.mxu0 0.0
  %1417 = vmatpush1.msra.mxu0 0.0
  %1418 = vmatprep.subr.mxu0 0.0
  %1419 = vmatpush1.msra.mxu0 0.0
  %1420 = vmatprep.subr.mxu0 0.0
  %1421 = vmatpush1.msra.mxu0 0.0
  %1422 = vmatprep.subr.mxu0 0.0
  %1423 = vmatpush1.msra.mxu0 0.0
  %1424 = vmatprep.subr.mxu0 0.0
  %1425 = vmatpush1.msra.mxu0 0.0
  %1426 = vmatprep.subr.mxu0 0.0
  %1427 = vmatpush1.msra.mxu0 0.0
  %1428 = vmatprep.subr.mxu0 0.0
  %1429 = vmatpush1.msra.mxu0 0.0
  %1430 = vmatprep.subr.mxu0 0.0
  %1431 = vmatpush1.msra.mxu0 0.0
  %1432 = vmatprep.subr.mxu0 0.0
  %1433 = vmatpush1.msra.mxu0 0.0
  %1434 = vmatprep.subr.mxu0 0.0
  %1435 = vmatpush1.msra.mxu0 0.0
  %1436 = vmatprep.subr.mxu0 0.0
  %1437 = vmatpush1.msra.mxu0 0.0
  %1438 = vmatprep.subr.mxu0 0.0
  %1439 = vmatpush1.msra.mxu0 0.0
  %1440 = vmatprep.subr.mxu0 0.0
  %1441 = vmatpush1.msra.mxu0 0.0
  %1442 = vmatprep.subr.mxu0 0.0
  %1443 = vmatpush1.msra.mxu0 0.0
  %1444 = vmatprep.subr.mxu0 0.0
  %1445 = vmatpush1.msra.mxu0 0.0
  %1446 = vmatprep.mubr.f32.mxu0 0.0
  %1447 = vmatmul.mubr.f32.gmra.mrb[0].mxu0 %v1380
  %v1448 = vpop.f32.mrb[0].mxu0
  %v1449 = vadd.f32 %v92, %v1448
  %v1450 = vpop.f32.mrb[0].mxu0
  %1451 = vdwg.mxu0
  %v1452 = vadd.f32 %v1379, %v1449
  %v1453 = vxor.u32 %v1452, 2147483648
  %v1454 = vmul.f32 %v1453, 1.442695
  %v1455 = vpow.pop %v1454
  %v1456 = vadd.f32 %v1455, 1.0
  %v1457 = vrcp.pop %v1456
  %v1458 = vmul.f32 1.0, %v1457
  %1460 = vrot.lane.b32.xlu0 %v1449, 64
  %v1461 = vpop.permute.xlu0 %1460
  %v1463 = vmul.f32 %v1458, %v1461
  %1465 = vrot.lane.b32.xlu0 %v1463, 64
  %v1466 = vpop.permute.xlu0 %1465
  %v1468 = vadd.f32 %v1379, %v1466
  %v1469 = vtanh.pop %v1468
  %v1470 = vsub.f32 1.0, %v1458
  %1472 = vrot.lane.b32.xlu0 %v1469, 96
  %v1473 = vpop.permute.xlu0 %1472
  %v1475 = vmul.f32 %v1470, %v1473
  %v1476 = vmul.f32 %v1458, %v1265
  %v1477 = vadd.f32 %v1475, %v1476
  %s1478 = scalar_lea.vmem %s57, 8
  %v1479 = vld [vmem:[%s1478] sm:$0xff]
  %v1480 = vsel %vm94, %v1374, 0
  %1482 = vmatprep.subr.mxu0 0.0
  %1483 = vmatpush1.msra.mxu0 %v79
  %1484 = vmatprep.subr.mxu0 0.0
  %1485 = vmatpush1.msra.mxu0 %v80
  %1486 = vmatprep.subr.mxu0 0.0
  %1487 = vmatpush1.msra.mxu0 %v81
  %1488 = vmatprep.subr.mxu0 0.0
  %1489 = vmatpush1.msra.mxu0 %v82
  %1490 = vmatprep.subr.mxu0 0.0
  %1491 = vmatpush1.msra.mxu0 0.0
  %1492 = vmatprep.subr.mxu0 0.0
  %1493 = vmatpush1.msra.mxu0 0.0
  %1494 = vmatprep.subr.mxu0 0.0
  %1495 = vmatpush1.msra.mxu0 0.0
  %1496 = vmatprep.subr.mxu0 0.0
  %1497 = vmatpush1.msra.mxu0 0.0
  %1498 = vmatprep.subr.mxu0 0.0
  %1499 = vmatpush1.msra.mxu0 0.0
  %1500 = vmatprep.subr.mxu0 0.0
  %1501 = vmatpush1.msra.mxu0 0.0
  %1502 = vmatprep.subr.mxu0 0.0
  %1503 = vmatpush1.msra.mxu0 0.0
  %1504 = vmatprep.subr.mxu0 0.0
  %1505 = vmatpush1.msra.mxu0 0.0
  %1506 = vmatprep.subr.mxu0 0.0
  %1507 = vmatpush1.msra.mxu0 0.0
  %1508 = vmatprep.subr.mxu0 0.0
  %1509 = vmatpush1.msra.mxu0 0.0
  %1510 = vmatprep.subr.mxu0 0.0
  %1511 = vmatpush1.msra.mxu0 0.0
  %1512 = vmatprep.subr.mxu0 0.0
  %1513 = vmatpush1.msra.mxu0 0.0
  %1514 = vmatprep.subr.mxu0 0.0
  %1515 = vmatpush1.msra.mxu0 0.0
  %1516 = vmatprep.subr.mxu0 0.0
  %1517 = vmatpush1.msra.mxu0 0.0
  %1518 = vmatprep.subr.mxu0 0.0
  %1519 = vmatpush1.msra.mxu0 0.0
  %1520 = vmatprep.subr.mxu0 0.0
  %1521 = vmatpush1.msra.mxu0 0.0
  %1522 = vmatprep.subr.mxu0 0.0
  %1523 = vmatpush1.msra.mxu0 0.0
  %1524 = vmatprep.subr.mxu0 0.0
  %1525 = vmatpush1.msra.mxu0 0.0
  %1526 = vmatprep.subr.mxu0 0.0
  %1527 = vmatpush1.msra.mxu0 0.0
  %1528 = vmatprep.subr.mxu0 0.0
  %1529 = vmatpush1.msra.mxu0 0.0
  %1530 = vmatprep.subr.mxu0 0.0
  %1531 = vmatpush1.msra.mxu0 0.0
  %1532 = vmatprep.subr.mxu0 0.0
  %1533 = vmatpush1.msra.mxu0 0.0
  %1534 = vmatprep.subr.mxu0 0.0
  %1535 = vmatpush1.msra.mxu0 0.0
  %1536 = vmatprep.subr.mxu0 0.0
  %1537 = vmatpush1.msra.mxu0 0.0
  %1538 = vmatprep.subr.mxu0 0.0
  %1539 = vmatpush1.msra.mxu0 0.0
  %1540 = vmatprep.subr.mxu0 0.0
  %1541 = vmatpush1.msra.mxu0 0.0
  %1542 = vmatprep.subr.mxu0 0.0
  %1543 = vmatpush1.msra.mxu0 0.0
  %1544 = vmatprep.subr.mxu0 0.0
  %1545 = vmatpush1.msra.mxu0 0.0
  %1546 = vmatprep.mubr.f32.mxu0 0.0
  %1547 = vmatmul.mubr.f32.gmra.mrb[0].mxu0 %v1480
  %v1548 = vpop.f32.mrb[0].mxu0
  %v1549 = vadd.f32 %v203, %v1548
  %v1550 = vpop.f32.mrb[0].mxu0
  %1551 = vdwg.mxu0
  %v1552 = vadd.f32 %v1479, %v1549
  %v1553 = vxor.u32 %v1552, 2147483648
  %v1554 = vmul.f32 %v1553, 1.442695
  %v1555 = vpow.pop %v1554
  %v1556 = vadd.f32 %v1555, 1.0
  %v1557 = vrcp.pop %v1556
  %v1558 = vmul.f32 1.0, %v1557
  %1560 = vrot.lane.b32.xlu0 %v1549, 64
  %v1561 = vpop.permute.xlu0 %1560
  %v1563 = vmul.f32 %v1558, %v1561
  %1565 = vrot.lane.b32.xlu0 %v1563, 64
  %v1566 = vpop.permute.xlu0 %1565
  %v1568 = vadd.f32 %v1479, %v1566
  %v1569 = vtanh.pop %v1568
  %v1570 = vsub.f32 1.0, %v1558
  %1572 = vrot.lane.b32.xlu0 %v1569, 96
  %v1573 = vpop.permute.xlu0 %1572
  %v1575 = vmul.f32 %v1570, %v1573
  %v1576 = vmul.f32 %v1558, %v1365
  %v1577 = vadd.f32 %v1575, %v1576
  %1579 = vrot.lane.b32.xlu0 %v1477, 96
  %v1580 = vpop.permute.xlu0 %1579
  %s1582 = scalar_lea.vmem %s8, 48
  %1583 = vst.msk [vmem:[%s1582] sm:$0xff] %vm94, %v1580
  %1585 = vrot.lane.b32.xlu0 %v1577, 96
  %v1586 = vpop.permute.xlu0 %1585
  %s1588 = scalar_lea.vmem %s65, 8
  %1589 = vst.msk [vmem:[%s1588] sm:$0xff] %vm94, %v1586
  %s1590 = scalar_lea.vmem %s0, 56
  %v1591 = vld [vmem:[%s1590] sm:$0xff]
  %v1592 = vsel %vm94, %v1580, 0
  %1594 = vmatprep.subr.mxu0 0.0
  %1595 = vmatpush1.msra.mxu0 %v75
  %1596 = vmatprep.subr.mxu0 0.0
  %1597 = vmatpush1.msra.mxu0 %v76
  %1598 = vmatprep.subr.mxu0 0.0
  %1599 = vmatpush1.msra.mxu0 %v77
  %1600 = vmatprep.subr.mxu0 0.0
  %1601 = vmatpush1.msra.mxu0 %v78
  %1602 = vmatprep.subr.mxu0 0.0
  %1603 = vmatpush1.msra.mxu0 0.0
  %1604 = vmatprep.subr.mxu0 0.0
  %1605 = vmatpush1.msra.mxu0 0.0
  %1606 = vmatprep.subr.mxu0 0.0
  %1607 = vmatpush1.msra.mxu0 0.0
  %1608 = vmatprep.subr.mxu0 0.0
  %1609 = vmatpush1.msra.mxu0 0.0
  %1610 = vmatprep.subr.mxu0 0.0
  %1611 = vmatpush1.msra.mxu0 0.0
  %1612 = vmatprep.subr.mxu0 0.0
  %1613 = vmatpush1.msra.mxu0 0.0
  %1614 = vmatprep.subr.mxu0 0.0
  %1615 = vmatpush1.msra.mxu0 0.0
  %1616 = vmatprep.subr.mxu0 0.0
  %1617 = vmatpush1.msra.mxu0 0.0
  %1618 = vmatprep.subr.mxu0 0.0
  %1619 = vmatpush1.msra.mxu0 0.0
  %1620 = vmatprep.subr.mxu0 0.0
  %1621 = vmatpush1.msra.mxu0 0.0
  %1622 = vmatprep.subr.mxu0 0.0
  %1623 = vmatpush1.msra.mxu0 0.0
  %1624 = vmatprep.subr.mxu0 0.0
  %1625 = vmatpush1.msra.mxu0 0.0
  %1626 = vmatprep.subr.mxu0 0.0
  %1627 = vmatpush1.msra.mxu0 0.0
  %1628 = vmatprep.subr.mxu0 0.0
  %1629 = vmatpush1.msra.mxu0 0.0
  %1630 = vmatprep.subr.mxu0 0.0
  %1631 = vmatpush1.msra.mxu0 0.0
  %1632 = vmatprep.subr.mxu0 0.0
  %1633 = vmatpush1.msra.mxu0 0.0
  %1634 = vmatprep.subr.mxu0 0.0
  %1635 = vmatpush1.msra.mxu0 0.0
  %1636 = vmatprep.subr.mxu0 0.0
  %1637 = vmatpush1.msra.mxu0 0.0
  %1638 = vmatprep.subr.mxu0 0.0
  %1639 = vmatpush1.msra.mxu0 0.0
  %1640 = vmatprep.subr.mxu0 0.0
  %1641 = vmatpush1.msra.mxu0 0.0
  %1642 = vmatprep.subr.mxu0 0.0
  %1643 = vmatpush1.msra.mxu0 0.0
  %1644 = vmatprep.subr.mxu0 0.0
  %1645 = vmatpush1.msra.mxu0 0.0
  %1646 = vmatprep.subr.mxu0 0.0
  %1647 = vmatpush1.msra.mxu0 0.0
  %1648 = vmatprep.subr.mxu0 0.0
  %1649 = vmatpush1.msra.mxu0 0.0
  %1650 = vmatprep.subr.mxu0 0.0
  %1651 = vmatpush1.msra.mxu0 0.0
  %1652 = vmatprep.subr.mxu0 0.0
  %1653 = vmatpush1.msra.mxu0 0.0
  %1654 = vmatprep.subr.mxu0 0.0
  %1655 = vmatpush1.msra.mxu0 0.0
  %1656 = vmatprep.subr.mxu0 0.0
  %1657 = vmatpush1.msra.mxu0 0.0
  %1658 = vmatprep.mubr.f32.mxu0 0.0
  %1659 = vmatmul.mubr.f32.gmra.mrb[0].mxu0 %v1592
  %v1660 = vpop.f32.mrb[0].mxu0
  %v1661 = vadd.f32 %v92, %v1660
  %v1662 = vpop.f32.mrb[0].mxu0
  %1663 = vdwg.mxu0
  %v1664 = vadd.f32 %v1591, %v1661
  %v1665 = vxor.u32 %v1664, 2147483648
  %v1666 = vmul.f32 %v1665, 1.442695
  %v1667 = vpow.pop %v1666
  %v1668 = vadd.f32 %v1667, 1.0
  %v1669 = vrcp.pop %v1668
  %v1670 = vmul.f32 1.0, %v1669
  %1672 = vrot.lane.b32.xlu0 %v1661, 64
  %v1673 = vpop.permute.xlu0 %1672
  %v1675 = vmul.f32 %v1670, %v1673
  %1677 = vrot.lane.b32.xlu0 %v1675, 64
  %v1678 = vpop.permute.xlu0 %1677
  %v1680 = vadd.f32 %v1591, %v1678
  %v1681 = vtanh.pop %v1680
  %v1682 = vsub.f32 1.0, %v1670
  %1684 = vrot.lane.b32.xlu0 %v1681, 96
  %v1685 = vpop.permute.xlu0 %1684
  %v1687 = vmul.f32 %v1682, %v1685
  %v1688 = vmul.f32 %v1670, %v1477
  %v1689 = vadd.f32 %v1687, %v1688
  %v1690 = vld [vmem:[%s57] sm:$0xff]
  %v1691 = vsel %vm94, %v1586, 0
  %1693 = vmatprep.subr.mxu0 0.0
  %1694 = vmatpush1.msra.mxu0 %v79
  %1695 = vmatprep.subr.mxu0 0.0
  %1696 = vmatpush1.msra.mxu0 %v80
  %1697 = vmatprep.subr.mxu0 0.0
  %1698 = vmatpush1.msra.mxu0 %v81
  %1699 = vmatprep.subr.mxu0 0.0
  %1700 = vmatpush1.msra.mxu0 %v82
  %1701 = vmatprep.subr.mxu0 0.0
  %1702 = vmatpush1.msra.mxu0 0.0
  %1703 = vmatprep.subr.mxu0 0.0
  %1704 = vmatpush1.msra.mxu0 0.0
  %1705 = vmatprep.subr.mxu0 0.0
  %1706 = vmatpush1.msra.mxu0 0.0
  %1707 = vmatprep.subr.mxu0 0.0
  %1708 = vmatpush1.msra.mxu0 0.0
  %1709 = vmatprep.subr.mxu0 0.0
  %1710 = vmatpush1.msra.mxu0 0.0
  %1711 = vmatprep.subr.mxu0 0.0
  %1712 = vmatpush1.msra.mxu0 0.0
  %1713 = vmatprep.subr.mxu0 0.0
  %1714 = vmatpush1.msra.mxu0 0.0
  %1715 = vmatprep.subr.mxu0 0.0
  %1716 = vmatpush1.msra.mxu0 0.0
  %1717 = vmatprep.subr.mxu0 0.0
  %1718 = vmatpush1.msra.mxu0 0.0
  %1719 = vmatprep.subr.mxu0 0.0
  %1720 = vmatpush1.msra.mxu0 0.0
  %1721 = vmatprep.subr.mxu0 0.0
  %1722 = vmatpush1.msra.mxu0 0.0
  %1723 = vmatprep.subr.mxu0 0.0
  %1724 = vmatpush1.msra.mxu0 0.0
  %1725 = vmatprep.subr.mxu0 0.0
  %1726 = vmatpush1.msra.mxu0 0.0
  %1727 = vmatprep.subr.mxu0 0.0
  %1728 = vmatpush1.msra.mxu0 0.0
  %1729 = vmatprep.subr.mxu0 0.0
  %1730 = vmatpush1.msra.mxu0 0.0
  %1731 = vmatprep.subr.mxu0 0.0
  %1732 = vmatpush1.msra.mxu0 0.0
  %1733 = vmatprep.subr.mxu0 0.0
  %1734 = vmatpush1.msra.mxu0 0.0
  %1735 = vmatprep.subr.mxu0 0.0
  %1736 = vmatpush1.msra.mxu0 0.0
  %1737 = vmatprep.subr.mxu0 0.0
  %1738 = vmatpush1.msra.mxu0 0.0
  %1739 = vmatprep.subr.mxu0 0.0
  %1740 = vmatpush1.msra.mxu0 0.0
  %1741 = vmatprep.subr.mxu0 0.0
  %1742 = vmatpush1.msra.mxu0 0.0
  %1743 = vmatprep.subr.mxu0 0.0
  %1744 = vmatpush1.msra.mxu0 0.0
  %1745 = vmatprep.subr.mxu0 0.0
  %1746 = vmatpush1.msra.mxu0 0.0
  %1747 = vmatprep.subr.mxu0 0.0
  %1748 = vmatpush1.msra.mxu0 0.0
  %1749 = vmatprep.subr.mxu0 0.0
  %1750 = vmatpush1.msra.mxu0 0.0
  %1751 = vmatprep.subr.mxu0 0.0
  %1752 = vmatpush1.msra.mxu0 0.0
  %1753 = vmatprep.subr.mxu0 0.0
  %1754 = vmatpush1.msra.mxu0 0.0
  %1755 = vmatprep.subr.mxu0 0.0
  %1756 = vmatpush1.msra.mxu0 0.0
  %1757 = vmatprep.mubr.f32.mxu0 0.0
  %1758 = vmatmul.mubr.f32.gmra.mrb[0].mxu0 %v1691
  %v1759 = vpop.f32.mrb[0].mxu0
  %v1760 = vadd.f32 %v203, %v1759
  %v1761 = vpop.f32.mrb[0].mxu0
  %1762 = vdwg.mxu0
  %v1763 = vadd.f32 %v1690, %v1760
  %v1764 = vxor.u32 %v1763, 2147483648
  %v1765 = vmul.f32 %v1764, 1.442695
  %v1766 = vpow.pop %v1765
  %v1767 = vadd.f32 %v1766, 1.0
  %v1768 = vrcp.pop %v1767
  %v1769 = vmul.f32 1.0, %v1768
  %1771 = vrot.lane.b32.xlu0 %v1760, 64
  %v1772 = vpop.permute.xlu0 %1771
  %v1774 = vmul.f32 %v1769, %v1772
  %1776 = vrot.lane.b32.xlu0 %v1774, 64
  %v1777 = vpop.permute.xlu0 %1776
  %v1779 = vadd.f32 %v1690, %v1777
  %v1780 = vtanh.pop %v1779
  %v1781 = vsub.f32 1.0, %v1769
  %1783 = vrot.lane.b32.xlu0 %v1780, 96
  %v1784 = vpop.permute.xlu0 %1783
  %v1786 = vmul.f32 %v1781, %v1784
  %v1787 = vmul.f32 %v1769, %v1577
  %v1788 = vadd.f32 %v1786, %v1787
  %1790 = vrot.lane.b32.xlu0 %v1689, 96
  %v1791 = vpop.permute.xlu0 %1790
  %s1793 = scalar_lea.vmem %s8, 56
  %1794 = vst.msk [vmem:[%s1793] sm:$0xff] %vm94, %v1791
  %1796 = vrot.lane.b32.xlu0 %v1788, 96
  %v1797 = vpop.permute.xlu0 %1796
  %1799 = vst.msk [vmem:[%s65] sm:$0xff] %vm94, %v1797
  %1800 = vst.msk [vmem:[#allocation2] sm:$0xff] %vm94, %v1791
  %1801 = vst.msk [vmem:[#allocation3] sm:$0xff] %vm94, %v1797
  // Predicated region
  $region38: #{encoder_forward.3} parent=0 // pred_check
    %p1802 = pneg %p68
  $region39: #{encoder_forward.3} parent=0 // pred_check_branch
    %1804 = sbr.rel (%p1802) target = $region41
  $region40: #{encoder_forward.3} parent=0 // pred_region
    %v1805 = vld [vmem:[%s6] sm:$0xff]
    %v1806 = vld [vmem:[%s6 + $0x8] sm:$0xff]
    %v1807 = vld [vmem:[%s6 + $0x10] sm:$0xff]
    %v1808 = vld [vmem:[%s6 + $0x18] sm:$0xff]
    %v1809 = vld [vmem:[%s6 + $0x20] sm:$0xff]
    %v1810 = vld [vmem:[%s6 + $0x28] sm:$0xff]
    %v1811 = vld [vmem:[%s6 + $0x30] sm:$0xff]
    %v1812 = vld [vmem:[%s6 + $0x38] sm:$0xff]
    %v1813 = vld [vmem:[#allocation2] sm:$0xff]
    %v1814 = vld [vmem:[#allocation3] sm:$0xff]
    %v1816 = vsel %vm94, %v1814, 0
    %1818 = vmatprep.subr.mxu0 0.0
    %1819 = vmatpush1.msra.mxu0 %v1809
    %1820 = vmatprep.subr.mxu0 0.0
    %1821 = vmatpush1.msra.mxu0 %v1810
    %1822 = vmatprep.subr.mxu0 0.0
    %1823 = vmatpush1.msra.mxu0 %v1811
    %1824 = vmatprep.subr.mxu0 0.0
    %1825 = vmatpush1.msra.mxu0 %v1812
    %1826 = vmatprep.subr.mxu0 0.0
    %1827 = vmatpush1.msra.mxu0 0.0
    %1828 = vmatprep.subr.mxu0 0.0
    %1829 = vmatpush1.msra.mxu0 0.0
    %1830 = vmatprep.subr.mxu0 0.0
    %1831 = vmatpush1.msra.mxu0 0.0
    %1832 = vmatprep.subr.mxu0 0.0
    %1833 = vmatpush1.msra.mxu0 0.0
    %1834 = vmatprep.subr.mxu0 0.0
    %1835 = vmatpush1.msra.mxu0 0.0
    %1836 = vmatprep.subr.mxu0 0.0
    %1837 = vmatpush1.msra.mxu0 0.0
    %1838 = vmatprep.subr.mxu0 0.0
    %1839 = vmatpush1.msra.mxu0 0.0
    %1840 = vmatprep.subr.mxu0 0.0
    %1841 = vmatpush1.msra.mxu0 0.0
    %1842 = vmatprep.subr.mxu0 0.0
    %1843 = vmatpush1.msra.mxu0 0.0
    %1844 = vmatprep.subr.mxu0 0.0
    %1845 = vmatpush1.msra.mxu0 0.0
    %1846 = vmatprep.subr.mxu0 0.0
    %1847 = vmatpush1.msra.mxu0 0.0
    %1848 = vmatprep.subr.mxu0 0.0
    %1849 = vmatpush1.msra.mxu0 0.0
    %1850 = vmatprep.subr.mxu0 0.0
    %1851 = vmatpush1.msra.mxu0 0.0
    %1852 = vmatprep.subr.mxu0 0.0
    %1853 = vmatpush1.msra.mxu0 0.0
    %1854 = vmatprep.subr.mxu0 0.0
    %1855 = vmatpush1.msra.mxu0 0.0
    %1856 = vmatprep.subr.mxu0 0.0
    %1857 = vmatpush1.msra.mxu0 0.0
    %1858 = vmatprep.subr.mxu0 0.0
    %1859 = vmatpush1.msra.mxu0 0.0
    %1860 = vmatprep.subr.mxu0 0.0
    %1861 = vmatpush1.msra.mxu0 0.0
    %1862 = vmatprep.subr.mxu0 0.0
    %1863 = vmatpush1.msra.mxu0 0.0
    %1864 = vmatprep.subr.mxu0 0.0
    %1865 = vmatpush1.msra.mxu0 0.0
    %1866 = vmatprep.subr.mxu0 0.0
    %1867 = vmatpush1.msra.mxu0 0.0
    %1868 = vmatprep.subr.mxu0 0.0
    %1869 = vmatpush1.msra.mxu0 0.0
    %1870 = vmatprep.subr.mxu0 0.0
    %1871 = vmatpush1.msra.mxu0 0.0
    %1872 = vmatprep.subr.mxu0 0.0
    %1873 = vmatpush1.msra.mxu0 0.0
    %1874 = vmatprep.subr.mxu0 0.0
    %1875 = vmatpush1.msra.mxu0 0.0
    %1876 = vmatprep.subr.mxu0 0.0
    %1877 = vmatpush1.msra.mxu0 0.0
    %1878 = vmatprep.subr.mxu0 0.0
    %1879 = vmatpush1.msra.mxu0 0.0
    %1880 = vmatprep.subr.mxu0 0.0
    %1881 = vmatpush1.msra.mxu0 0.0
    %1882 = vmatprep.mubr.f32.mxu0 0.0
    %1883 = vmatmul.mubr.f32.gmra.mrb[0].mxu0 %v1816
    %v1884 = vpop.f32.mrb[0].mxu0
    %v1885 = vadd.f32 0.0, %v1884
    %v1886 = vpop.f32.mrb[0].mxu0
    %1887 = vdwg.mxu0
    %v1889 = vsel %vm94, %v1813, 0
    %1891 = vmatprep.subr.mxu0 0.0
    %1892 = vmatpush1.msra.mxu0 %v1805
    %1893 = vmatprep.subr.mxu0 0.0
    %1894 = vmatpush1.msra.mxu0 %v1806
    %1895 = vmatprep.subr.mxu0 0.0
    %1896 = vmatpush1.msra.mxu0 %v1807
    %1897 = vmatprep.subr.mxu0 0.0
    %1898 = vmatpush1.msra.mxu0 %v1808
    %1899 = vmatprep.subr.mxu0 0.0
    %1900 = vmatpush1.msra.mxu0 0.0
    %1901 = vmatprep.subr.mxu0 0.0
    %1902 = vmatpush1.msra.mxu0 0.0
    %1903 = vmatprep.subr.mxu0 0.0
    %1904 = vmatpush1.msra.mxu0 0.0
    %1905 = vmatprep.subr.mxu0 0.0
    %1906 = vmatpush1.msra.mxu0 0.0
    %1907 = vmatprep.subr.mxu0 0.0
    %1908 = vmatpush1.msra.mxu0 0.0
    %1909 = vmatprep.subr.mxu0 0.0
    %1910 = vmatpush1.msra.mxu0 0.0
    %1911 = vmatprep.subr.mxu0 0.0
    %1912 = vmatpush1.msra.mxu0 0.0
    %1913 = vmatprep.subr.mxu0 0.0
    %1914 = vmatpush1.msra.mxu0 0.0
    %1915 = vmatprep.subr.mxu0 0.0
    %1916 = vmatpush1.msra.mxu0 0.0
    %1917 = vmatprep.subr.mxu0 0.0
    %1918 = vmatpush1.msra.mxu0 0.0
    %1919 = vmatprep.subr.mxu0 0.0
    %1920 = vmatpush1.msra.mxu0 0.0
    %1921 = vmatprep.subr.mxu0 0.0
    %1922 = vmatpush1.msra.mxu0 0.0
    %1923 = vmatprep.subr.mxu0 0.0
    %1924 = vmatpush1.msra.mxu0 0.0
    %1925 = vmatprep.subr.mxu0 0.0
    %1926 = vmatpush1.msra.mxu0 0.0
    %1927 = vmatprep.subr.mxu0 0.0
    %1928 = vmatpush1.msra.mxu0 0.0
    %1929 = vmatprep.subr.mxu0 0.0
    %1930 = vmatpush1.msra.mxu0 0.0
    %1931 = vmatprep.subr.mxu0 0.0
    %1932 = vmatpush1.msra.mxu0 0.0
    %1933 = vmatprep.subr.mxu0 0.0
    %1934 = vmatpush1.msra.mxu0 0.0
    %1935 = vmatprep.subr.mxu0 0.0
    %1936 = vmatpush1.msra.mxu0 0.0
    %1937 = vmatprep.subr.mxu0 0.0
    %1938 = vmatpush1.msra.mxu0 0.0
    %1939 = vmatprep.subr.mxu0 0.0
    %1940 = vmatpush1.msra.mxu0 0.0
    %1941 = vmatprep.subr.mxu0 0.0
    %1942 = vmatpush1.msra.mxu0 0.0
    %1943 = vmatprep.subr.mxu0 0.0
    %1944 = vmatpush1.msra.mxu0 0.0
    %1945 = vmatprep.subr.mxu0 0.0
    %1946 = vmatpush1.msra.mxu0 0.0
    %1947 = vmatprep.subr.mxu0 0.0
    %1948 = vmatpush1.msra.mxu0 0.0
    %1949 = vmatprep.subr.mxu0 0.0
    %1950 = vmatpush1.msra.mxu0 0.0
    %1951 = vmatprep.subr.mxu0 0.0
    %1952 = vmatpush1.msra.mxu0 0.0
    %1953 = vmatprep.subr.mxu0 0.0
    %1954 = vmatpush1.msra.mxu0 0.0
    %1955 = vmatprep.mubr.f32.mxu0 0.0
    %1956 = vmatmul.mubr.f32.gmra.mrb[0].mxu0 %v1889
    %v1957 = vpop.f32.mrb[0].mxu0
    %v1958 = vadd.f32 %v1885, %v1957
    %v1959 = vpop.f32.mrb[0].mxu0
    %1960 = vdwg.mxu0
    %v1961 = vld [vmem:[%s7] sm:$0x1]
    %v1963 = vlaneseq
    %v1964 = vshrl.u32 %v1963, 7
    %v1965 = vsub.s32 0, %v1964
    %v1966 = vrot.slane %v1961, %v1965
    %v1968 = vadd.f32 %v1958, %v1966
    %v1969 = vtanh.pop %v1968
    %1970 = vst.msk [vmem:[%s10] sm:$0xff] %vm94, %v1969
  $region41: #{encoder_forward.3} parent=0 // pred_fallthru
    _
  %s1971 = ssub.s32 0, 0
  %s1972 = smul.u32 8, %s1971
  %p1973 = scmp.lt.s32.totalorder %s1972, 7
  %s1974 = scalar_select %p1973, %s1972, 7
  %s1975 = smul.addr %s1974, 8
  %s1976 = scalar_lea.vmem %s9, %s1975
  // Predicated region
  $region42: #{encoder_forward.3} parent=0 // pred_check
    _
  $region43: #{encoder_forward.3} parent=0 // pred_check_branch
    %1978 = sbr.rel (0) target = $region45
  $region44: #{encoder_forward.3} parent=0 // pred_region
    _
  $region45: #{encoder_forward.3} parent=0 // pred_fallthru
    _
  // Predicated region
  $region46: #{encoder_forward.3} parent=0 // pred_check
    _
  $region47: #{encoder_forward.3} parent=0 // pred_check_branch
    %1980 = sbr.rel (0) target = $region49
  $region48: #{encoder_forward.3} parent=0 // pred_region
    %s1981 = ssub.s32 0, 0
    %s1982 = smul.u32 8, %s1981
  $region49: #{encoder_forward.3} parent=0 // pred_fallthru
    _
  // Predicated region
  $region50: #{encoder_forward.3} parent=0 // pred_check
    _
  $region51: #{encoder_forward.3} parent=0 // pred_check_branch
    %1984 = sbr.rel (0) target = $region53
  $region52: #{encoder_forward.3} parent=0 // pred_region
    _
  $region53: #{encoder_forward.3} parent=0 // pred_fallthru
    _
  // Predicated region
  $region54: #{encoder_forward.3} parent=0 // pred_check
    _
  $region55: #{encoder_forward.3} parent=0 // pred_check_branch
    %1986 = sbr.rel (0) target = $region57
  $region56: #{encoder_forward.3} parent=0 // pred_region
    _
  $region57: #{encoder_forward.3} parent=0 // pred_fallthru
    _
  // Predicated region
  $region58: #{encoder_forward.3} parent=0 // pred_check
    _
  $region59: #{encoder_forward.3} parent=0 // pred_check_branch
    %1988 = sbr.rel (0) target = $region61
  $region60: #{encoder_forward.3} parent=0 // pred_region
    %s1989 = ssub.s32 0, 0
    %s1990 = smul.u32 8, %s1989
    %p1991 = scmp.lt.s32.totalorder %s1990, 7
    %s1992 = scalar_select %p1991, %s1990, 7
    %s1993 = smul.addr %s1992, 8
    %s1994 = scalar_lea.vmem %s9, %s1993
  $region61: #{encoder_forward.3} parent=0 // pred_fallthru
    _
  // Predicated region
  $region62: #{encoder_forward.3} parent=0 // pred_check
    _
  $region63: #{encoder_forward.3} parent=0 // pred_check_branch
    %1996 = sbr.rel (0) target = $region65
  $region64: #{encoder_forward.3} parent=0 // pred_region
    _
  $region65: #{encoder_forward.3} parent=0 // pred_fallthru
    _

</llo_original>
